<compile_context>
chip_gen: v7x
topology: tpu7x:2x2x1
jax: 0.10.0
libtpu: 0.0.40
codegen_flags: <defaults>
</compile_context>

<pallas_src>
import jax
import jax.numpy as jnp
from jax import lax
from jax.experimental import pallas as pl
from jax.experimental.pallas import tpu as pltpu


def _make_fused_kernel(n_enc, n_layers, heights, h_pad, batch, lanes):
    rows = batch * h_pad

    def kernel(*refs):
        x_ref, w_ref, cb_ref = refs[0], refs[1], refs[2]
        mlp_w_refs = refs[3:3 + n_layers]
        mb_ref = refs[3 + n_layers]
        fcw_ref = refs[4 + n_layers]
        fcb_ref = refs[5 + n_layers]
        feats_ref = refs[6 + n_layers]
        score_ref = refs[7 + n_layers]

        # Within-batch row position (hoisted once; masks invalid conv rows).
        row = lax.broadcasted_iota(jnp.int32, (rows, lanes), 0)
        if h_pad & (h_pad - 1) == 0:
            pos = jnp.bitwise_and(row, h_pad - 1)
        else:
            pos = lax.rem(row, h_pad)

        feats = None
        for e in range(n_enc):
            xe = x_ref[e]                                    # (rows, W_max)
            acc = None
            for kh in range(3):
                # (rows, W_max) @ (W_max, lanes): lane-dense MXU dot.
                y = jnp.dot(xe, w_ref[e, kh],
                            preferred_element_type=jnp.float32)
                if kh:
                    # Align tap kh: out[r] = y[r + kh]  (circular sublane roll;
                    # wrapped / cross-batch rows are masked below).
                    y = pltpu.roll(y, shift=rows - kh, axis=0)
                acc = y if acc is None else acc + y
            # Valid conv positions are p in [0, H_e - 3]; height padding,
            # cross-batch taps and roll wrap-around land on p >= H_e - 2.
            acc = jnp.where(pos < (heights[e] - 2), acc, jnp.float32(-3e38))
            # F.max_pool1d over the full conv length: one sublane reduction on
            # a layout-preserving (batch, h_pad, lanes) view.
            pooled = jnp.max(acc.reshape(batch, h_pad, lanes), axis=1)
            # Lanes not owned by encoder e pool to exactly 0 (zero weight
            # columns), so torch.hstack == plain VPU sum of pooled blocks.
            feats = pooled if feats is None else feats + pooled

        # Conv bias is constant along the pooled axis -> commutes with max.
        feats = feats + cb_ref[...]
        feats_ref[...] = feats                               # one 128-lane store

        # features = (Linear + ReLU + Dropout) * n_layers
        h = feats
        for i in range(n_layers):
            h = jnp.maximum(
                jnp.dot(h, mlp_w_refs[i][...],
                        preferred_element_type=jnp.float32) + mb_ref[i], 0.0)
            # TODO(synk): nn.Dropout is stochastic in training mode; the
            # deterministic eval-mode identity is implemented here.

        # fc (hidden -> 1) + sigmoid: broadcast-mul + lane reduce (VPU/XLU)
        # instead of a lane-sparse N=1 MXU matmul.
        logits = jnp.sum(h * fcw_ref[...], axis=-1, keepdims=True) + fcb_ref[...]
        score_ref[...] = jax.nn.sigmoid(logits)

    return kernel


def comvex_conv_forward(xs, conv_ws, conv_bs, layer_params, fc_w, fc_b):
    """Fused COMVEXConv forward.

    xs:           list of (B, 1, H_i, W_i) NCHW inputs (C == 1).
    conv_ws:      list of (E, 3, W_i) Conv2d weights (input channel squeezed).
    conv_bs:      list of (E,) Conv2d biases.
    layer_params: list of (W: (d_in, hidden), b: (hidden,)) Linear params.
    fc_w:         (hidden, 1);  fc_b: (1,).
    Returns (encodings: list of (B, E), score: (B,)).
    """
    n_enc = len(xs)
    batch = xs[0].shape[0]
    emb = conv_ws[0].shape[0]
    n_layers = len(layer_params)
    hidden = layer_params[0][0].shape[1]
    lanes = n_enc * emb

    heights = [int(x.shape[2]) for x in xs]
    widths = [int(x.shape[3]) for x in xs]
    w_max = max(widths)
    h_pad = -(-max(heights) // 8) * 8           # sublane-aligned common height
    rows = batch * h_pad

    # ---- host-side packing: a few big, lane/sublane-dense operands ---------
    # (Width/height padding is cheap at these sizes; for very ragged real
    #  in_features, pack per-width groups instead.)
    x_slabs, w_slabs = [], []
    for e, (x, w) in enumerate(zip(xs, conv_ws)):
        h, wd = heights[e], widths[e]
        x3 = jnp.pad(x[:, 0], ((0, 0), (0, h_pad - h), (0, w_max - wd)))
        x_slabs.append(x3.reshape(rows, w_max))              # flattened slab
        wt = jnp.transpose(w, (1, 2, 0))                     # (3, W, E)
        wt = jnp.pad(wt, ((0, 0), (0, w_max - wd),
                          (e * emb, lanes - (e + 1) * emb)))  # lane offset e*E
        w_slabs.append(wt)
    x_all = jnp.stack(x_slabs, axis=0)                       # (n_enc, rows, Wmax)
    w_all = jnp.stack(w_slabs, axis=0)                       # (n_enc, 3, Wmax, lanes)
    conv_b_all = jnp.concatenate(conv_bs).reshape(1, lanes)  # (1, lanes)

    mlp_ws = [w for (w, _) in layer_params]
    mlp_b_all = jnp.stack([b for (_, b) in layer_params])[:, None, :]  # (L,1,hid)
    fcw_row = fc_w.reshape(1, hidden)
    fcb2 = fc_b.reshape(1, 1)

    feats, score = pl.pallas_call(
        _make_fused_kernel(n_enc, n_layers, tuple(heights), h_pad, batch, lanes),
        out_shape=(
            jax.ShapeDtypeStruct((batch, lanes), jnp.float32),  # hstacked feats
            jax.ShapeDtypeStruct((batch, 1), jnp.float32),      # sigmoid(fc(...))
        ),
        # No grid / specs: whole (tiny) arrays resident in VMEM, single
        # invocation, no pipelined-grid bookkeeping.
    )(x_all, w_all, conv_b_all, *mlp_ws, mlp_b_all, fcw_row, fcb2)

    # Per-encoder encodings are cheap slices of the fused feats output.
    encodings = [feats[:, e * emb:(e + 1) * emb] for e in range(n_enc)]
    return encodings, jnp.squeeze(score)     # matches torch .squeeze() on (B, 1)


# ----------------------------------------------------------------------------
# Pure-JAX reference (correctness sanity check only)
# ----------------------------------------------------------------------------
def _reference_forward(xs, conv_ws, conv_bs, layer_params, fc_w, fc_b):
    encs = []
    for x, w, b in zip(xs, conv_ws, conv_bs):
        xb = x[:, 0]
        p = xb.shape[1] - 2
        cols = jnp.concatenate([xb[:, kh:kh + p, :] for kh in range(3)], axis=-1)
        y = jnp.einsum('bpk,ek->bpe', cols, w.reshape(w.shape[0], -1),
                       precision=jax.lax.Precision.HIGHEST) + b
        encs.append(jnp.max(y, axis=1))
    h = jnp.concatenate(encs, axis=-1)
    for w, b in layer_params:
        h = jnp.maximum(
            jnp.dot(h, w, precision=jax.lax.Precision.HIGHEST) + b, 0.0)
    logits = jnp.dot(h, fc_w, precision=jax.lax.Precision.HIGHEST) + fc_b
    return encs, jax.nn.sigmoid(logits)[:, 0]


if __name__ == "__main__":
    key = jax.random.PRNGKey(0)
    keys = iter(jax.random.split(key, 64))

    # small, module-consistent shapes
    B = 8                  # batch (>=8 fills sublanes / amortizes fixed cost)
    E = 32                 # embedding_dim
    hidden = 32            # hidden_size
    n_layers = 2
    in_features = [16, 32, 32, 8]
    heights = [10, 12, 12, 10]

    xs = [jax.random.normal(next(keys), (B, 1, h, w), dtype=jnp.float32)
          for h, w in zip(heights, in_features)]
    conv_ws = [0.05 * jax.random.normal(next(keys), (E, 3, w), dtype=jnp.float32)
               for w in in_features]
    conv_bs = [0.05 * jax.random.normal(next(keys), (E,), dtype=jnp.float32)
               for _ in in_features]

    d_in = E * len(in_features)
    layer_params = []
    for i in range(n_layers):
        din = d_in if i == 0 else hidden
        w = 0.05 * jax.random.normal(next(keys), (din, hidden), dtype=jnp.float32)
        b = 0.05 * jax.random.normal(next(keys), (hidden,), dtype=jnp.float32)
        layer_params.append((w, b))
    fc_w = 0.05 * jax.random.normal(next(keys), (hidden, 1), dtype=jnp.float32)
    fc_b = 0.05 * jax.random.normal(next(keys), (1,), dtype=jnp.float32)

    fwd = jax.jit(comvex_conv_forward)
    encodings, score = fwd(xs, conv_ws, conv_bs, layer_params, fc_w, fc_b)
    jax.block_until_ready((encodings, score))

    # shape + numerical sanity check vs pure-JAX reference
    ref_encs, ref_score = _reference_forward(
        xs, conv_ws, conv_bs, layer_params, fc_w, fc_b)
    assert all(e.shape == (B, E) for e in encodings)
    assert score.shape == (B,)
    for e, r in zip(encodings, ref_encs):
        assert float(jnp.max(jnp.abs(e - r))) < 1e-2
    assert float(jnp.max(jnp.abs(score - ref_score))) < 1e-2

    print("KERNEL_OK")
</pallas_src>

<mosaic_0001>
module attributes {stable_mosaic.version = 11 : i64} {
  func.func @kernel(%arg0: memref<4x128x32xf32, #tpu.memory_space<vmem>>, %arg1: memref<4x3x32x128xf32, #tpu.memory_space<vmem>>, %arg2: memref<1x128xf32, #tpu.memory_space<vmem>>, %arg3: memref<128x32xf32, #tpu.memory_space<vmem>>, %arg4: memref<32x32xf32, #tpu.memory_space<vmem>>, %arg5: memref<2x1x32xf32, #tpu.memory_space<vmem>>, %arg6: memref<1x32xf32, #tpu.memory_space<vmem>>, %arg7: memref<1x1xf32, #tpu.memory_space<vmem>>, %arg8: memref<8x128xf32, #tpu.memory_space<vmem>>, %arg9: memref<8x1xf32, #tpu.memory_space<vmem>>) attributes {dimension_semantics = [], scalar_prefetch = 0 : i64, scratch_operands = 0 : i64, tpu.core_type = #tpu.core_type<tc>} {
    %0 = tpu.iota {dimensions = array<i32: 0>} : vector<128x128xi32>
    %c15_i32 = arith.constant 15 : i32
    %1 = vector.broadcast %c15_i32 : i32 to vector<128x128xi32>
    %2 = arith.andi %0, %1 : vector<128x128xi32>
    %c0 = arith.constant 0 : index
    %c0_0 = arith.constant 0 : index
    %c0_1 = arith.constant 0 : index
    %3 = vector.load %arg0[%c0, %c0_0, %c0_1] : memref<4x128x32xf32, #tpu.memory_space<vmem>>, vector<1x128x32xf32>
    %4 = vector.shape_cast %3 : vector<1x128x32xf32> to vector<128x32xf32>
    %c0_2 = arith.constant 0 : index
    %c0_3 = arith.constant 0 : index
    %c0_4 = arith.constant 0 : index
    %c0_5 = arith.constant 0 : index
    %5 = vector.load %arg1[%c0_2, %c0_3, %c0_4, %c0_5] : memref<4x3x32x128xf32, #tpu.memory_space<vmem>>, vector<1x1x32x128xf32>
    %6 = vector.shape_cast %5 : vector<1x1x32x128xf32> to vector<32x128xf32>
    %cst = arith.constant dense<0.000000e+00> : vector<128x128xf32>
    %7 = tpu.matmul %4, %6, %cst {dimension_numbers = #tpu.dot_dimension_numbers<[1], [0], [0], [1], [0, 0, 1, 1], [], []>} : vector<128x32xf32>, vector<32x128xf32>, vector<128x128xf32> -> vector<128x128xf32>
    %c0_6 = arith.constant 0 : index
    %c1 = arith.constant 1 : index
    %c0_7 = arith.constant 0 : index
    %c0_8 = arith.constant 0 : index
    %8 = vector.load %arg1[%c0_6, %c1, %c0_7, %c0_8] : memref<4x3x32x128xf32, #tpu.memory_space<vmem>>, vector<1x1x32x128xf32>
    %9 = vector.shape_cast %8 : vector<1x1x32x128xf32> to vector<32x128xf32>
    %cst_9 = arith.constant dense<0.000000e+00> : vector<128x128xf32>
    %10 = tpu.matmul %4, %9, %cst_9 {dimension_numbers = #tpu.dot_dimension_numbers<[1], [0], [0], [1], [0, 0, 1, 1], [], []>} : vector<128x32xf32>, vector<32x128xf32>, vector<128x128xf32> -> vector<128x128xf32>
    %c127_i32 = arith.constant 127 : i32
    %11 = tpu.dynamic_rotate %10 by %c127_i32 dim 0 : vector<128x128xf32>, i32 -> vector<128x128xf32>
    %12 = arith.addf %7, %11 : vector<128x128xf32>
    %c0_10 = arith.constant 0 : index
    %c2 = arith.constant 2 : index
    %c0_11 = arith.constant 0 : index
    %c0_12 = arith.constant 0 : index
    %13 = vector.load %arg1[%c0_10, %c2, %c0_11, %c0_12] : memref<4x3x32x128xf32, #tpu.memory_space<vmem>>, vector<1x1x32x128xf32>
    %14 = vector.shape_cast %13 : vector<1x1x32x128xf32> to vector<32x128xf32>
    %cst_13 = arith.constant dense<0.000000e+00> : vector<128x128xf32>
    %15 = tpu.matmul %4, %14, %cst_13 {dimension_numbers = #tpu.dot_dimension_numbers<[1], [0], [0], [1], [0, 0, 1, 1], [], []>} : vector<128x32xf32>, vector<32x128xf32>, vector<128x128xf32> -> vector<128x128xf32>
    %c126_i32 = arith.constant 126 : i32
    %16 = tpu.dynamic_rotate %15 by %c126_i32 dim 0 : vector<128x128xf32>, i32 -> vector<128x128xf32>
    %17 = arith.addf %12, %16 : vector<128x128xf32>
    %c8_i32 = arith.constant 8 : i32
    %18 = vector.broadcast %c8_i32 : i32 to vector<128x128xi32>
    %19 = arith.cmpi slt, %2, %18 : vector<128x128xi32>
    %cst_14 = arith.constant -3.000000e+38 : f32
    %20 = vector.broadcast %cst_14 : f32 to vector<128x128xf32>
    %21 = arith.select %19, %17, %20 : vector<128x128xi1>, vector<128x128xf32>
    %22 = vector.shape_cast %21 : vector<128x128xf32> to vector<8x16x128xf32>
    %cst_15 = arith.constant dense<0xFF800000> : vector<8x128xf32>
    %23 = vector.multi_reduction <maximumf>, %22, %cst_15 [1] : vector<8x16x128xf32> to vector<8x128xf32>
    %c1_16 = arith.constant 1 : index
    %c0_17 = arith.constant 0 : index
    %c0_18 = arith.constant 0 : index
    %24 = vector.load %arg0[%c1_16, %c0_17, %c0_18] : memref<4x128x32xf32, #tpu.memory_space<vmem>>, vector<1x128x32xf32>
    %25 = vector.shape_cast %24 : vector<1x128x32xf32> to vector<128x32xf32>
    %c1_19 = arith.constant 1 : index
    %c0_20 = arith.constant 0 : index
    %c0_21 = arith.constant 0 : index
    %c0_22 = arith.constant 0 : index
    %26 = vector.load %arg1[%c1_19, %c0_20, %c0_21, %c0_22] : memref<4x3x32x128xf32, #tpu.memory_space<vmem>>, vector<1x1x32x128xf32>
    %27 = vector.shape_cast %26 : vector<1x1x32x128xf32> to vector<32x128xf32>
    %cst_23 = arith.constant dense<0.000000e+00> : vector<128x128xf32>
    %28 = tpu.matmul %25, %27, %cst_23 {dimension_numbers = #tpu.dot_dimension_numbers<[1], [0], [0], [1], [0, 0, 1, 1], [], []>} : vector<128x32xf32>, vector<32x128xf32>, vector<128x128xf32> -> vector<128x128xf32>
    %c1_24 = arith.constant 1 : index
    %c1_25 = arith.constant 1 : index
    %c0_26 = arith.constant 0 : index
    %c0_27 = arith.constant 0 : index
    %29 = vector.load %arg1[%c1_24, %c1_25, %c0_26, %c0_27] : memref<4x3x32x128xf32, #tpu.memory_space<vmem>>, vector<1x1x32x128xf32>
    %30 = vector.shape_cast %29 : vector<1x1x32x128xf32> to vector<32x128xf32>
    %cst_28 = arith.constant dense<0.000000e+00> : vector<128x128xf32>
    %31 = tpu.matmul %25, %30, %cst_28 {dimension_numbers = #tpu.dot_dimension_numbers<[1], [0], [0], [1], [0, 0, 1, 1], [], []>} : vector<128x32xf32>, vector<32x128xf32>, vector<128x128xf32> -> vector<128x128xf32>
    %c127_i32_29 = arith.constant 127 : i32
    %32 = tpu.dynamic_rotate %31 by %c127_i32_29 dim 0 : vector<128x128xf32>, i32 -> vector<128x128xf32>
    %33 = arith.addf %28, %32 : vector<128x128xf32>
    %c1_30 = arith.constant 1 : index
    %c2_31 = arith.constant 2 : index
    %c0_32 = arith.constant 0 : index
    %c0_33 = arith.constant 0 : index
    %34 = vector.load %arg1[%c1_30, %c2_31, %c0_32, %c0_33] : memref<4x3x32x128xf32, #tpu.memory_space<vmem>>, vector<1x1x32x128xf32>
    %35 = vector.shape_cast %34 : vector<1x1x32x128xf32> to vector<32x128xf32>
    %cst_34 = arith.constant dense<0.000000e+00> : vector<128x128xf32>
    %36 = tpu.matmul %25, %35, %cst_34 {dimension_numbers = #tpu.dot_dimension_numbers<[1], [0], [0], [1], [0, 0, 1, 1], [], []>} : vector<128x32xf32>, vector<32x128xf32>, vector<128x128xf32> -> vector<128x128xf32>
    %c126_i32_35 = arith.constant 126 : i32
    %37 = tpu.dynamic_rotate %36 by %c126_i32_35 dim 0 : vector<128x128xf32>, i32 -> vector<128x128xf32>
    %38 = arith.addf %33, %37 : vector<128x128xf32>
    %c10_i32 = arith.constant 10 : i32
    %39 = vector.broadcast %c10_i32 : i32 to vector<128x128xi32>
    %40 = arith.cmpi slt, %2, %39 : vector<128x128xi32>
    %cst_36 = arith.constant -3.000000e+38 : f32
    %41 = vector.broadcast %cst_36 : f32 to vector<128x128xf32>
    %42 = arith.select %40, %38, %41 : vector<128x128xi1>, vector<128x128xf32>
    %43 = vector.shape_cast %42 : vector<128x128xf32> to vector<8x16x128xf32>
    %cst_37 = arith.constant dense<0xFF800000> : vector<8x128xf32>
    %44 = vector.multi_reduction <maximumf>, %43, %cst_37 [1] : vector<8x16x128xf32> to vector<8x128xf32>
    %45 = arith.addf %23, %44 : vector<8x128xf32>
    %c2_38 = arith.constant 2 : index
    %c0_39 = arith.constant 0 : index
    %c0_40 = arith.constant 0 : index
    %46 = vector.load %arg0[%c2_38, %c0_39, %c0_40] : memref<4x128x32xf32, #tpu.memory_space<vmem>>, vector<1x128x32xf32>
    %47 = vector.shape_cast %46 : vector<1x128x32xf32> to vector<128x32xf32>
    %c2_41 = arith.constant 2 : index
    %c0_42 = arith.constant 0 : index
    %c0_43 = arith.constant 0 : index
    %c0_44 = arith.constant 0 : index
    %48 = vector.load %arg1[%c2_41, %c0_42, %c0_43, %c0_44] : memref<4x3x32x128xf32, #tpu.memory_space<vmem>>, vector<1x1x32x128xf32>
    %49 = vector.shape_cast %48 : vector<1x1x32x128xf32> to vector<32x128xf32>
    %cst_45 = arith.constant dense<0.000000e+00> : vector<128x128xf32>
    %50 = tpu.matmul %47, %49, %cst_45 {dimension_numbers = #tpu.dot_dimension_numbers<[1], [0], [0], [1], [0, 0, 1, 1], [], []>} : vector<128x32xf32>, vector<32x128xf32>, vector<128x128xf32> -> vector<128x128xf32>
    %c2_46 = arith.constant 2 : index
    %c1_47 = arith.constant 1 : index
    %c0_48 = arith.constant 0 : index
    %c0_49 = arith.constant 0 : index
    %51 = vector.load %arg1[%c2_46, %c1_47, %c0_48, %c0_49] : memref<4x3x32x128xf32, #tpu.memory_space<vmem>>, vector<1x1x32x128xf32>
    %52 = vector.shape_cast %51 : vector<1x1x32x128xf32> to vector<32x128xf32>
    %cst_50 = arith.constant dense<0.000000e+00> : vector<128x128xf32>
    %53 = tpu.matmul %47, %52, %cst_50 {dimension_numbers = #tpu.dot_dimension_numbers<[1], [0], [0], [1], [0, 0, 1, 1], [], []>} : vector<128x32xf32>, vector<32x128xf32>, vector<128x128xf32> -> vector<128x128xf32>
    %c127_i32_51 = arith.constant 127 : i32
    %54 = tpu.dynamic_rotate %53 by %c127_i32_51 dim 0 : vector<128x128xf32>, i32 -> vector<128x128xf32>
    %55 = arith.addf %50, %54 : vector<128x128xf32>
    %c2_52 = arith.constant 2 : index
    %c2_53 = arith.constant 2 : index
    %c0_54 = arith.constant 0 : index
    %c0_55 = arith.constant 0 : index
    %56 = vector.load %arg1[%c2_52, %c2_53, %c0_54, %c0_55] : memref<4x3x32x128xf32, #tpu.memory_space<vmem>>, vector<1x1x32x128xf32>
    %57 = vector.shape_cast %56 : vector<1x1x32x128xf32> to vector<32x128xf32>
    %cst_56 = arith.constant dense<0.000000e+00> : vector<128x128xf32>
    %58 = tpu.matmul %47, %57, %cst_56 {dimension_numbers = #tpu.dot_dimension_numbers<[1], [0], [0], [1], [0, 0, 1, 1], [], []>} : vector<128x32xf32>, vector<32x128xf32>, vector<128x128xf32> -> vector<128x128xf32>
    %c126_i32_57 = arith.constant 126 : i32
    %59 = tpu.dynamic_rotate %58 by %c126_i32_57 dim 0 : vector<128x128xf32>, i32 -> vector<128x128xf32>
    %60 = arith.addf %55, %59 : vector<128x128xf32>
    %c10_i32_58 = arith.constant 10 : i32
    %61 = vector.broadcast %c10_i32_58 : i32 to vector<128x128xi32>
    %62 = arith.cmpi slt, %2, %61 : vector<128x128xi32>
    %cst_59 = arith.constant -3.000000e+38 : f32
    %63 = vector.broadcast %cst_59 : f32 to vector<128x128xf32>
    %64 = arith.select %62, %60, %63 : vector<128x128xi1>, vector<128x128xf32>
    %65 = vector.shape_cast %64 : vector<128x128xf32> to vector<8x16x128xf32>
    %cst_60 = arith.constant dense<0xFF800000> : vector<8x128xf32>
    %66 = vector.multi_reduction <maximumf>, %65, %cst_60 [1] : vector<8x16x128xf32> to vector<8x128xf32>
    %67 = arith.addf %45, %66 : vector<8x128xf32>
    %c3 = arith.constant 3 : index
    %c0_61 = arith.constant 0 : index
    %c0_62 = arith.constant 0 : index
    %68 = vector.load %arg0[%c3, %c0_61, %c0_62] : memref<4x128x32xf32, #tpu.memory_space<vmem>>, vector<1x128x32xf32>
    %69 = vector.shape_cast %68 : vector<1x128x32xf32> to vector<128x32xf32>
    %c3_63 = arith.constant 3 : index
    %c0_64 = arith.constant 0 : index
    %c0_65 = arith.constant 0 : index
    %c0_66 = arith.constant 0 : index
    %70 = vector.load %arg1[%c3_63, %c0_64, %c0_65, %c0_66] : memref<4x3x32x128xf32, #tpu.memory_space<vmem>>, vector<1x1x32x128xf32>
    %71 = vector.shape_cast %70 : vector<1x1x32x128xf32> to vector<32x128xf32>
    %cst_67 = arith.constant dense<0.000000e+00> : vector<128x128xf32>
    %72 = tpu.matmul %69, %71, %cst_67 {dimension_numbers = #tpu.dot_dimension_numbers<[1], [0], [0], [1], [0, 0, 1, 1], [], []>} : vector<128x32xf32>, vector<32x128xf32>, vector<128x128xf32> -> vector<128x128xf32>
    %c3_68 = arith.constant 3 : index
    %c1_69 = arith.constant 1 : index
    %c0_70 = arith.constant 0 : index
    %c0_71 = arith.constant 0 : index
    %73 = vector.load %arg1[%c3_68, %c1_69, %c0_70, %c0_71] : memref<4x3x32x128xf32, #tpu.memory_space<vmem>>, vector<1x1x32x128xf32>
    %74 = vector.shape_cast %73 : vector<1x1x32x128xf32> to vector<32x128xf32>
    %cst_72 = arith.constant dense<0.000000e+00> : vector<128x128xf32>
    %75 = tpu.matmul %69, %74, %cst_72 {dimension_numbers = #tpu.dot_dimension_numbers<[1], [0], [0], [1], [0, 0, 1, 1], [], []>} : vector<128x32xf32>, vector<32x128xf32>, vector<128x128xf32> -> vector<128x128xf32>
    %c127_i32_73 = arith.constant 127 : i32
    %76 = tpu.dynamic_rotate %75 by %c127_i32_73 dim 0 : vector<128x128xf32>, i32 -> vector<128x128xf32>
    %77 = arith.addf %72, %76 : vector<128x128xf32>
    %c3_74 = arith.constant 3 : index
    %c2_75 = arith.constant 2 : index
    %c0_76 = arith.constant 0 : index
    %c0_77 = arith.constant 0 : index
    %78 = vector.load %arg1[%c3_74, %c2_75, %c0_76, %c0_77] : memref<4x3x32x128xf32, #tpu.memory_space<vmem>>, vector<1x1x32x128xf32>
    %79 = vector.shape_cast %78 : vector<1x1x32x128xf32> to vector<32x128xf32>
    %cst_78 = arith.constant dense<0.000000e+00> : vector<128x128xf32>
    %80 = tpu.matmul %69, %79, %cst_78 {dimension_numbers = #tpu.dot_dimension_numbers<[1], [0], [0], [1], [0, 0, 1, 1], [], []>} : vector<128x32xf32>, vector<32x128xf32>, vector<128x128xf32> -> vector<128x128xf32>
    %c126_i32_79 = arith.constant 126 : i32
    %81 = tpu.dynamic_rotate %80 by %c126_i32_79 dim 0 : vector<128x128xf32>, i32 -> vector<128x128xf32>
    %82 = arith.addf %77, %81 : vector<128x128xf32>
    %c8_i32_80 = arith.constant 8 : i32
    %83 = vector.broadcast %c8_i32_80 : i32 to vector<128x128xi32>
    %84 = arith.cmpi slt, %2, %83 : vector<128x128xi32>
    %cst_81 = arith.constant -3.000000e+38 : f32
    %85 = vector.broadcast %cst_81 : f32 to vector<128x128xf32>
    %86 = arith.select %84, %82, %85 : vector<128x128xi1>, vector<128x128xf32>
    %87 = vector.shape_cast %86 : vector<128x128xf32> to vector<8x16x128xf32>
    %cst_82 = arith.constant dense<0xFF800000> : vector<8x128xf32>
    %88 = vector.multi_reduction <maximumf>, %87, %cst_82 [1] : vector<8x16x128xf32> to vector<8x128xf32>
    %89 = arith.addf %67, %88 : vector<8x128xf32>
    %c0_83 = arith.constant 0 : index
    %c0_84 = arith.constant 0 : index
    %90 = vector.load %arg2[%c0_83, %c0_84] : memref<1x128xf32, #tpu.memory_space<vmem>>, vector<1x128xf32>
    %91 = vector.broadcast %90 : vector<1x128xf32> to vector<8x128xf32>
    %92 = arith.addf %89, %91 : vector<8x128xf32>
    %c0_85 = arith.constant 0 : index
    %c0_86 = arith.constant 0 : index
    %93 = vector.load %arg8[%c0_85, %c0_86] : memref<8x128xf32, #tpu.memory_space<vmem>>, vector<8x128xf32>
    tpu.vector_store %arg8[%c0_85, %c0_86], %92 {strides = array<i32>} : memref<8x128xf32, #tpu.memory_space<vmem>>, vector<8x128xf32>,
    %c0_87 = arith.constant 0 : index
    %c0_88 = arith.constant 0 : index
    %94 = vector.load %arg3[%c0_87, %c0_88] : memref<128x32xf32, #tpu.memory_space<vmem>>, vector<128x32xf32>
    %cst_89 = arith.constant dense<0.000000e+00> : vector<8x32xf32>
    %95 = tpu.matmul %92, %94, %cst_89 {dimension_numbers = #tpu.dot_dimension_numbers<[1], [0], [0], [1], [0, 0, 1, 1], [], []>} : vector<8x128xf32>, vector<128x32xf32>, vector<8x32xf32> -> vector<8x32xf32>
    %c0_90 = arith.constant 0 : index
    %c0_91 = arith.constant 0 : index
    %c0_92 = arith.constant 0 : index
    %96 = vector.load %arg5[%c0_90, %c0_91, %c0_92] : memref<2x1x32xf32, #tpu.memory_space<vmem>>, vector<1x1x32xf32>
    %97 = vector.shape_cast %96 : vector<1x1x32xf32> to vector<1x32xf32>
    %98 = vector.broadcast %97 : vector<1x32xf32> to vector<8x32xf32>
    %99 = arith.addf %95, %98 : vector<8x32xf32>
    %cst_93 = arith.constant 0.000000e+00 : f32
    %100 = vector.broadcast %cst_93 : f32 to vector<8x32xf32>
    %101 = arith.maximumf %99, %100 : vector<8x32xf32>
    %c0_94 = arith.constant 0 : index
    %c0_95 = arith.constant 0 : index
    %102 = vector.load %arg4[%c0_94, %c0_95] : memref<32x32xf32, #tpu.memory_space<vmem>>, vector<32x32xf32>
    %cst_96 = arith.constant dense<0.000000e+00> : vector<8x32xf32>
    %103 = tpu.matmul %101, %102, %cst_96 {dimension_numbers = #tpu.dot_dimension_numbers<[1], [0], [0], [1], [0, 0, 1, 1], [], []>} : vector<8x32xf32>, vector<32x32xf32>, vector<8x32xf32> -> vector<8x32xf32>
    %c1_97 = arith.constant 1 : index
    %c0_98 = arith.constant 0 : index
    %c0_99 = arith.constant 0 : index
    %104 = vector.load %arg5[%c1_97, %c0_98, %c0_99] : memref<2x1x32xf32, #tpu.memory_space<vmem>>, vector<1x1x32xf32>
    %105 = vector.shape_cast %104 : vector<1x1x32xf32> to vector<1x32xf32>
    %106 = vector.broadcast %105 : vector<1x32xf32> to vector<8x32xf32>
    %107 = arith.addf %103, %106 : vector<8x32xf32>
    %cst_100 = arith.constant 0.000000e+00 : f32
    %108 = vector.broadcast %cst_100 : f32 to vector<8x32xf32>
    %109 = arith.maximumf %107, %108 : vector<8x32xf32>
    %c0_101 = arith.constant 0 : index
    %c0_102 = arith.constant 0 : index
    %110 = vector.load %arg6[%c0_101, %c0_102] : memref<1x32xf32, #tpu.memory_space<vmem>>, vector<1x32xf32>
    %111 = vector.broadcast %110 : vector<1x32xf32> to vector<8x32xf32>
    %112 = arith.mulf %109, %111 : vector<8x32xf32>
    %cst_103 = arith.constant dense<0.000000e+00> : vector<8xf32>
    %113 = vector.multi_reduction <add>, %112, %cst_103 [1] : vector<8x32xf32> to vector<8xf32>
    %114 = vector.shape_cast %113 : vector<8xf32> to vector<8x1xf32>
    %c0_104 = arith.constant 0 : index
    %c0_105 = arith.constant 0 : index
    %115 = vector.load %arg7[%c0_104, %c0_105] : memref<1x1xf32, #tpu.memory_space<vmem>>, vector<1x1xf32>
    %116 = vector.broadcast %115 : vector<1x1xf32> to vector<8x1xf32>
    %117 = arith.addf %114, %116 : vector<8x1xf32>
    %118 = arith.negf %117 : vector<8x1xf32>
    %119 = math.exp %118 : vector<8x1xf32>
    %cst_106 = arith.constant 1.000000e+00 : f32
    %120 = vector.broadcast %cst_106 : f32 to vector<8x1xf32>
    %121 = arith.addf %120, %119 : vector<8x1xf32>
    %122 = arith.divf %120, %121 : vector<8x1xf32>
    %c0_107 = arith.constant 0 : index
    %c0_108 = arith.constant 0 : index
    %123 = vector.load %arg9[%c0_107, %c0_108] : memref<8x1xf32, #tpu.memory_space<vmem>>, vector<8x1xf32>
    tpu.vector_store %arg9[%c0_107, %c0_108], %122 {strides = array<i32>} : memref<8x1xf32, #tpu.memory_space<vmem>>, vector<8x1xf32>,
    return
  }
}

</mosaic_0001>

<llo_original>
// kernel: comvex_conv_forward.1
$region0: #{comvex_conv_forward.1}
  #allocation0 [shape = 'u32[]', space=smem, size = 0x4, offset = 0x4, fixed_abs, tag = 'smem constant byte address 0x4 - core index']
  #allocation1 [shape = 'u32[144,128]{1,0:T(1,128)}', space=vmem, size = 0x12000, scoped, tag = 'internal scratch']
  #allocation2 [shape = 'f32[1,1]{1,0:T(1,128)S(1)}', space=vmem, size = 0x200, scoped, tag = 'scoped memory for comvex_conv_forward.1']
  %s0 = inlined_call_operand.vmem [shape: f32[4,128,32], index: 0, kind: input, shape index: {}]
  %s1 = inlined_call_operand.vmem [shape: f32[4,3,32,128], index: 1, kind: input, shape index: {}]
  %s2 = inlined_call_operand.vmem [shape: f32[1,128], index: 2, kind: input, shape index: {}]
  %s3 = inlined_call_operand.vmem [shape: f32[128,32], index: 3, kind: input, shape index: {}]
  %s4 = inlined_call_operand.vmem [shape: f32[32,32], index: 4, kind: input, shape index: {}]
  %s5 = inlined_call_operand.vmem [shape: f32[2,1,32], index: 5, kind: input, shape index: {}]
  %s6 = inlined_call_operand.vmem [shape: f32[1,32], index: 6, kind: input, shape index: {}]
  %s7 = inlined_call_operand.<no memory space> [shape: f32[1,1], index: 7, kind: input, shape index: {}]
  %s8 = inlined_call_operand.vmem [shape: f32[8,128], index: 8, kind: output, shape index: {0}]
  %s9 = inlined_call_operand.vmem [shape: f32[8,1], index: 9, kind: output, shape index: {1}]
  %10 = xla_tuple %s8, %s9
  %s11 = sld [smem:[#allocation0]]
  $region50: #{comvex_conv_forward.1} parent=0
    _
  %s13 = ssub.s32 1, %s11
  %s14 = scalar_select 0, %s13, %s11
  %v15 = vstv %s7
  %16 = vst [vmem:[#allocation2] sm:$0x1] %v15
  // Predicated region
  $region2: #{comvex_conv_forward.1} parent=0 // pred_check
    _
  $region3: #{comvex_conv_forward.1} parent=0 // pred_check_branch
    %18 = sbr.rel (0) target = $region5
  $region4: #{comvex_conv_forward.1} parent=0 // pred_region
    _
  $region5: #{comvex_conv_forward.1} parent=0 // pred_fallthru
    _
  // Predicated region
  $region6: #{comvex_conv_forward.1} parent=0 // pred_check
    _
  $region7: #{comvex_conv_forward.1} parent=0 // pred_check_branch
    %20 = sbr.rel (0) target = $region9
  $region8: #{comvex_conv_forward.1} parent=0 // pred_region
    _
  $region9: #{comvex_conv_forward.1} parent=0 // pred_fallthru
    _
  // Predicated region
  $region10: #{comvex_conv_forward.1} parent=0 // pred_check
    _
  $region11: #{comvex_conv_forward.1} parent=0 // pred_check_branch
    %22 = sbr.rel (0) target = $region13
  $region12: #{comvex_conv_forward.1} parent=0 // pred_region
    _
  $region13: #{comvex_conv_forward.1} parent=0 // pred_fallthru
    _
  // Predicated region
  $region14: #{comvex_conv_forward.1} parent=0 // pred_check
    _
  $region15: #{comvex_conv_forward.1} parent=0 // pred_check_branch
    %24 = sbr.rel (0) target = $region17
  $region16: #{comvex_conv_forward.1} parent=0 // pred_region
    _
  $region17: #{comvex_conv_forward.1} parent=0 // pred_fallthru
    _
  // Predicated region
  $region18: #{comvex_conv_forward.1} parent=0 // pred_check
    _
  $region19: #{comvex_conv_forward.1} parent=0 // pred_check_branch
    %26 = sbr.rel (0) target = $region21
  $region20: #{comvex_conv_forward.1} parent=0 // pred_region
    _
  $region21: #{comvex_conv_forward.1} parent=0 // pred_fallthru
    _
  // Predicated region
  $region22: #{comvex_conv_forward.1} parent=0 // pred_check
    _
  $region23: #{comvex_conv_forward.1} parent=0 // pred_check_branch
    %28 = sbr.rel (0) target = $region25
  $region24: #{comvex_conv_forward.1} parent=0 // pred_region
    _
  $region25: #{comvex_conv_forward.1} parent=0 // pred_fallthru
    _
  // Predicated region
  $region26: #{comvex_conv_forward.1} parent=0 // pred_check
    _
  $region27: #{comvex_conv_forward.1} parent=0 // pred_check_branch
    %30 = sbr.rel (0) target = $region29
  $region28: #{comvex_conv_forward.1} parent=0 // pred_region
    _
  $region29: #{comvex_conv_forward.1} parent=0 // pred_fallthru
    _
  // Predicated region
  $region30: #{comvex_conv_forward.1} parent=0 // pred_check
    _
  $region31: #{comvex_conv_forward.1} parent=0 // pred_check_branch
    %32 = sbr.rel (0) target = $region33
  $region32: #{comvex_conv_forward.1} parent=0 // pred_region
    _
  $region33: #{comvex_conv_forward.1} parent=0 // pred_fallthru
    _
  %v33 = vlaneseq
  %v34 = vshrl.u32 %v33, 7
  %v35 = vadd.s32 %v34, 8
  %v36 = vadd.s32 %v34, 16
  %v37 = vadd.s32 %v34, 24
  %v38 = vadd.s32 %v34, 32
  %v39 = vadd.s32 %v34, 40
  %v40 = vadd.s32 %v34, 48
  %v41 = vadd.s32 %v34, 56
  %v42 = vadd.s32 %v34, 64
  %v43 = vadd.s32 %v34, 72
  %v44 = vadd.s32 %v34, 80
  %v45 = vadd.s32 %v34, 88
  %v46 = vadd.s32 %v34, 96
  %v47 = vadd.s32 %v34, 104
  %v48 = vadd.s32 %v34, 112
  %v49 = vadd.s32 %v34, 120
  %v50 = vand.u32 %v34, 15
  %v51 = vand.u32 %v35, 15
  %v52 = vand.u32 %v36, 15
  %v53 = vand.u32 %v37, 15
  %v54 = vand.u32 %v38, 15
  %v55 = vand.u32 %v39, 15
  %v56 = vand.u32 %v40, 15
  %v57 = vand.u32 %v41, 15
  %v58 = vand.u32 %v42, 15
  %v59 = vand.u32 %v43, 15
  %v60 = vand.u32 %v44, 15
  %v61 = vand.u32 %v45, 15
  %v62 = vand.u32 %v46, 15
  %v63 = vand.u32 %v47, 15
  %v64 = vand.u32 %v48, 15
  %v65 = vand.u32 %v49, 15
  %v66 = vld [vmem:[%s0] sm:$0xff]
  %v67 = vld [vmem:[%s0 + $0x8] sm:$0xff]
  %v68 = vld [vmem:[%s0 + $0x10] sm:$0xff]
  %v69 = vld [vmem:[%s0 + $0x18] sm:$0xff]
  %v70 = vld [vmem:[%s0 + $0x20] sm:$0xff]
  %v71 = vld [vmem:[%s0 + $0x28] sm:$0xff]
  %v72 = vld [vmem:[%s0 + $0x30] sm:$0xff]
  %v73 = vld [vmem:[%s0 + $0x38] sm:$0xff]
  %v74 = vld [vmem:[%s0 + $0x40] sm:$0xff]
  %v75 = vld [vmem:[%s0 + $0x48] sm:$0xff]
  %v76 = vld [vmem:[%s0 + $0x50] sm:$0xff]
  %v77 = vld [vmem:[%s0 + $0x58] sm:$0xff]
  %v78 = vld [vmem:[%s0 + $0x60] sm:$0xff]
  %v79 = vld [vmem:[%s0 + $0x68] sm:$0xff]
  %v80 = vld [vmem:[%s0 + $0x70] sm:$0xff]
  %v81 = vld [vmem:[%s0 + $0x78] sm:$0xff]
  %v82 = vld [vmem:[%s1] sm:$0xff]
  %v83 = vld [vmem:[%s1 + $0x8] sm:$0xff]
  %v84 = vld [vmem:[%s1 + $0x10] sm:$0xff]
  %v85 = vld [vmem:[%s1 + $0x18] sm:$0xff]
  %s86 = scalar_lea.vmem %s1, 32
  %v87 = vld [vmem:[%s86] sm:$0xff]
  %v88 = vld [vmem:[%s86 + $0x8] sm:$0xff]
  %v89 = vld [vmem:[%s86 + $0x10] sm:$0xff]
  %v90 = vld [vmem:[%s86 + $0x18] sm:$0xff]
  %vm91 = vcmask 261120
  %v93 = vsel %vm91, %v66, 0
  %v96 = vsel %vm91, %v67, 0
  %v99 = vsel %vm91, %v68, 0
  %v102 = vsel %vm91, %v69, 0
  %v105 = vsel %vm91, %v70, 0
  %v108 = vsel %vm91, %v71, 0
  %v111 = vsel %vm91, %v72, 0
  %v114 = vsel %vm91, %v73, 0
  %v117 = vsel %vm91, %v74, 0
  %v120 = vsel %vm91, %v75, 0
  %v123 = vsel %vm91, %v76, 0
  %v126 = vsel %vm91, %v77, 0
  %v129 = vsel %vm91, %v78, 0
  %v132 = vsel %vm91, %v79, 0
  %v135 = vsel %vm91, %v80, 0
  %v138 = vsel %vm91, %v81, 0
  %140 = vmatprep.subr.mxu0 0.0
  %141 = vmatpush1.msra.mxu0 %v87
  %142 = vmatprep.subr.mxu0 0.0
  %143 = vmatpush1.msra.mxu0 %v88
  %144 = vmatprep.subr.mxu0 0.0
  %145 = vmatpush1.msra.mxu0 %v89
  %146 = vmatprep.subr.mxu0 0.0
  %147 = vmatpush1.msra.mxu0 %v90
  %148 = vmatprep.subr.mxu0 0.0
  %149 = vmatpush1.msra.mxu0 0.0
  %150 = vmatprep.subr.mxu0 0.0
  %151 = vmatpush1.msra.mxu0 0.0
  %152 = vmatprep.subr.mxu0 0.0
  %153 = vmatpush1.msra.mxu0 0.0
  %154 = vmatprep.subr.mxu0 0.0
  %155 = vmatpush1.msra.mxu0 0.0
  %156 = vmatprep.subr.mxu0 0.0
  %157 = vmatpush1.msra.mxu0 0.0
  %158 = vmatprep.subr.mxu0 0.0
  %159 = vmatpush1.msra.mxu0 0.0
  %160 = vmatprep.subr.mxu0 0.0
  %161 = vmatpush1.msra.mxu0 0.0
  %162 = vmatprep.subr.mxu0 0.0
  %163 = vmatpush1.msra.mxu0 0.0
  %164 = vmatprep.subr.mxu0 0.0
  %165 = vmatpush1.msra.mxu0 0.0
  %166 = vmatprep.subr.mxu0 0.0
  %167 = vmatpush1.msra.mxu0 0.0
  %168 = vmatprep.subr.mxu0 0.0
  %169 = vmatpush1.msra.mxu0 0.0
  %170 = vmatprep.subr.mxu0 0.0
  %171 = vmatpush1.msra.mxu0 0.0
  %172 = vmatprep.subr.mxu0 0.0
  %173 = vmatpush1.msra.mxu0 0.0
  %174 = vmatprep.subr.mxu0 0.0
  %175 = vmatpush1.msra.mxu0 0.0
  %176 = vmatprep.subr.mxu0 0.0
  %177 = vmatpush1.msra.mxu0 0.0
  %178 = vmatprep.subr.mxu0 0.0
  %179 = vmatpush1.msra.mxu0 0.0
  %180 = vmatprep.subr.mxu0 0.0
  %181 = vmatpush1.msra.mxu0 0.0
  %182 = vmatprep.subr.mxu0 0.0
  %183 = vmatpush1.msra.mxu0 0.0
  %184 = vmatprep.subr.mxu0 0.0
  %185 = vmatpush1.msra.mxu0 0.0
  %186 = vmatprep.subr.mxu0 0.0
  %187 = vmatpush1.msra.mxu0 0.0
  %188 = vmatprep.subr.mxu0 0.0
  %189 = vmatpush1.msra.mxu0 0.0
  %190 = vmatprep.subr.mxu0 0.0
  %191 = vmatpush1.msra.mxu0 0.0
  %192 = vmatprep.subr.mxu0 0.0
  %193 = vmatpush1.msra.mxu0 0.0
  %194 = vmatprep.subr.mxu0 0.0
  %195 = vmatpush1.msra.mxu0 0.0
  %196 = vmatprep.subr.mxu0 0.0
  %197 = vmatpush1.msra.mxu0 0.0
  %198 = vmatprep.subr.mxu0 0.0
  %199 = vmatpush1.msra.mxu0 0.0
  %200 = vmatprep.subr.mxu0 0.0
  %201 = vmatpush1.msra.mxu0 0.0
  %202 = vmatprep.subr.mxu0 0.0
  %203 = vmatpush1.msra.mxu0 0.0
  %204 = vmatprep.mubr.f32.mxu0 0.0
  %205 = vmatmul.mubr.f32.gmra.mrb[0].mxu0 %v93
  %v206 = vpop.f32.mrb[0].mxu0
  %v207 = vadd.f32 0.0, %v206
  %v208 = vpop.f32.mrb[0].mxu0
  %209 = vmatprep.mubr.f32.mxu0 0.0
  %210 = vmatmul.mubr.f32.gmra.mrb[0].mxu0 %v96
  %v211 = vpop.f32.mrb[0].mxu0
  %v212 = vadd.f32 0.0, %v211
  %v213 = vpop.f32.mrb[0].mxu0
  %214 = vmatprep.mubr.f32.mxu0 0.0
  %215 = vmatmul.mubr.f32.gmra.mrb[0].mxu0 %v99
  %v216 = vpop.f32.mrb[0].mxu0
  %v217 = vadd.f32 0.0, %v216
  %v218 = vpop.f32.mrb[0].mxu0
  %219 = vmatprep.mubr.f32.mxu0 0.0
  %220 = vmatmul.mubr.f32.gmra.mrb[0].mxu0 %v102
  %v221 = vpop.f32.mrb[0].mxu0
  %v222 = vadd.f32 0.0, %v221
  %v223 = vpop.f32.mrb[0].mxu0
  %224 = vmatprep.mubr.f32.mxu0 0.0
  %225 = vmatmul.mubr.f32.gmra.mrb[0].mxu0 %v105
  %v226 = vpop.f32.mrb[0].mxu0
  %v227 = vadd.f32 0.0, %v226
  %v228 = vpop.f32.mrb[0].mxu0
  %229 = vmatprep.mubr.f32.mxu0 0.0
  %230 = vmatmul.mubr.f32.gmra.mrb[0].mxu0 %v108
  %v231 = vpop.f32.mrb[0].mxu0
  %v232 = vadd.f32 0.0, %v231
  %v233 = vpop.f32.mrb[0].mxu0
  %234 = vmatprep.mubr.f32.mxu0 0.0
  %235 = vmatmul.mubr.f32.gmra.mrb[0].mxu0 %v111
  %v236 = vpop.f32.mrb[0].mxu0
  %v237 = vadd.f32 0.0, %v236
  %v238 = vpop.f32.mrb[0].mxu0
  %239 = vmatprep.mubr.f32.mxu0 0.0
  %240 = vmatmul.mubr.f32.gmra.mrb[0].mxu0 %v114
  %v241 = vpop.f32.mrb[0].mxu0
  %v242 = vadd.f32 0.0, %v241
  %v243 = vpop.f32.mrb[0].mxu0
  %244 = vmatprep.mubr.f32.mxu0 0.0
  %245 = vmatmul.mubr.f32.gmra.mrb[0].mxu0 %v117
  %v246 = vpop.f32.mrb[0].mxu0
  %v247 = vadd.f32 0.0, %v246
  %v248 = vpop.f32.mrb[0].mxu0
  %249 = vmatprep.mubr.f32.mxu0 0.0
  %250 = vmatmul.mubr.f32.gmra.mrb[0].mxu0 %v120
  %v251 = vpop.f32.mrb[0].mxu0
  %v252 = vadd.f32 0.0, %v251
  %v253 = vpop.f32.mrb[0].mxu0
  %254 = vmatprep.mubr.f32.mxu0 0.0
  %255 = vmatmul.mubr.f32.gmra.mrb[0].mxu0 %v123
  %v256 = vpop.f32.mrb[0].mxu0
  %v257 = vadd.f32 0.0, %v256
  %v258 = vpop.f32.mrb[0].mxu0
  %259 = vmatprep.mubr.f32.mxu0 0.0
  %260 = vmatmul.mubr.f32.gmra.mrb[0].mxu0 %v126
  %v261 = vpop.f32.mrb[0].mxu0
  %v262 = vadd.f32 0.0, %v261
  %v263 = vpop.f32.mrb[0].mxu0
  %264 = vmatprep.mubr.f32.mxu0 0.0
  %265 = vmatmul.mubr.f32.gmra.mrb[0].mxu0 %v129
  %v266 = vpop.f32.mrb[0].mxu0
  %v267 = vadd.f32 0.0, %v266
  %v268 = vpop.f32.mrb[0].mxu0
  %269 = vmatprep.mubr.f32.mxu0 0.0
  %270 = vmatmul.mubr.f32.gmra.mrb[0].mxu0 %v132
  %v271 = vpop.f32.mrb[0].mxu0
  %v272 = vadd.f32 0.0, %v271
  %v273 = vpop.f32.mrb[0].mxu0
  %274 = vmatprep.mubr.f32.mxu0 0.0
  %275 = vmatmul.mubr.f32.gmra.mrb[0].mxu0 %v135
  %v276 = vpop.f32.mrb[0].mxu0
  %v277 = vadd.f32 0.0, %v276
  %v278 = vpop.f32.mrb[0].mxu0
  %279 = vmatprep.mubr.f32.mxu0 0.0
  %280 = vmatmul.mubr.f32.gmra.mrb[0].mxu0 %v138
  %v281 = vpop.f32.mrb[0].mxu0
  %v282 = vadd.f32 0.0, %v281
  %v283 = vpop.f32.mrb[0].mxu0
  %284 = vdwg.mxu0
  %v285 = vrot.slane %v207, 1
  %v286 = vrot.slane %v212, 1
  %v287 = vrot.slane %v217, 1
  %v288 = vrot.slane %v222, 1
  %v289 = vrot.slane %v227, 1
  %v290 = vrot.slane %v232, 1
  %v291 = vrot.slane %v237, 1
  %v292 = vrot.slane %v242, 1
  %v293 = vrot.slane %v247, 1
  %v294 = vrot.slane %v252, 1
  %v295 = vrot.slane %v257, 1
  %v296 = vrot.slane %v262, 1
  %v297 = vrot.slane %v267, 1
  %v298 = vrot.slane %v272, 1
  %v299 = vrot.slane %v277, 1
  %v300 = vrot.slane %v282, 1
  %vm301 = vcmp.lt.s32.totalorder %v34, 7
  %v302 = vsel %vm301, %v299, %v300
  %v303 = vsel %vm301, %v298, %v299
  %v304 = vsel %vm301, %v297, %v298
  %v305 = vsel %vm301, %v296, %v297
  %v306 = vsel %vm301, %v295, %v296
  %v307 = vsel %vm301, %v294, %v295
  %v308 = vsel %vm301, %v293, %v294
  %v309 = vsel %vm301, %v292, %v293
  %v310 = vsel %vm301, %v291, %v292
  %v311 = vsel %vm301, %v290, %v291
  %v312 = vsel %vm301, %v289, %v290
  %v313 = vsel %vm301, %v288, %v289
  %v314 = vsel %vm301, %v287, %v288
  %v315 = vsel %vm301, %v286, %v287
  %v316 = vsel %vm301, %v285, %v286
  %v317 = vsel %vm301, %v300, %v285
  %318 = vmatprep.subr.mxu0 0.0
  %319 = vmatpush1.msra.mxu0 %v82
  %320 = vmatprep.subr.mxu0 0.0
  %321 = vmatpush1.msra.mxu0 %v83
  %322 = vmatprep.subr.mxu0 0.0
  %323 = vmatpush1.msra.mxu0 %v84
  %324 = vmatprep.subr.mxu0 0.0
  %325 = vmatpush1.msra.mxu0 %v85
  %326 = vmatprep.subr.mxu0 0.0
  %327 = vmatpush1.msra.mxu0 0.0
  %328 = vmatprep.subr.mxu0 0.0
  %329 = vmatpush1.msra.mxu0 0.0
  %330 = vmatprep.subr.mxu0 0.0
  %331 = vmatpush1.msra.mxu0 0.0
  %332 = vmatprep.subr.mxu0 0.0
  %333 = vmatpush1.msra.mxu0 0.0
  %334 = vmatprep.subr.mxu0 0.0
  %335 = vmatpush1.msra.mxu0 0.0
  %336 = vmatprep.subr.mxu0 0.0
  %337 = vmatpush1.msra.mxu0 0.0
  %338 = vmatprep.subr.mxu0 0.0
  %339 = vmatpush1.msra.mxu0 0.0
  %340 = vmatprep.subr.mxu0 0.0
  %341 = vmatpush1.msra.mxu0 0.0
  %342 = vmatprep.subr.mxu0 0.0
  %343 = vmatpush1.msra.mxu0 0.0
  %344 = vmatprep.subr.mxu0 0.0
  %345 = vmatpush1.msra.mxu0 0.0
  %346 = vmatprep.subr.mxu0 0.0
  %347 = vmatpush1.msra.mxu0 0.0
  %348 = vmatprep.subr.mxu0 0.0
  %349 = vmatpush1.msra.mxu0 0.0
  %350 = vmatprep.subr.mxu0 0.0
  %351 = vmatpush1.msra.mxu0 0.0
  %352 = vmatprep.subr.mxu0 0.0
  %353 = vmatpush1.msra.mxu0 0.0
  %354 = vmatprep.subr.mxu0 0.0
  %355 = vmatpush1.msra.mxu0 0.0
  %356 = vmatprep.subr.mxu0 0.0
  %357 = vmatpush1.msra.mxu0 0.0
  %358 = vmatprep.subr.mxu0 0.0
  %359 = vmatpush1.msra.mxu0 0.0
  %360 = vmatprep.subr.mxu0 0.0
  %361 = vmatpush1.msra.mxu0 0.0
  %362 = vmatprep.subr.mxu0 0.0
  %363 = vmatpush1.msra.mxu0 0.0
  %364 = vmatprep.subr.mxu0 0.0
  %365 = vmatpush1.msra.mxu0 0.0
  %366 = vmatprep.subr.mxu0 0.0
  %367 = vmatpush1.msra.mxu0 0.0
  %368 = vmatprep.subr.mxu0 0.0
  %369 = vmatpush1.msra.mxu0 0.0
  %370 = vmatprep.subr.mxu0 0.0
  %371 = vmatpush1.msra.mxu0 0.0
  %372 = vmatprep.subr.mxu0 0.0
  %373 = vmatpush1.msra.mxu0 0.0
  %374 = vmatprep.subr.mxu0 0.0
  %375 = vmatpush1.msra.mxu0 0.0
  %376 = vmatprep.subr.mxu0 0.0
  %377 = vmatpush1.msra.mxu0 0.0
  %378 = vmatprep.subr.mxu0 0.0
  %379 = vmatpush1.msra.mxu0 0.0
  %380 = vmatprep.subr.mxu0 0.0
  %381 = vmatpush1.msra.mxu0 0.0
  %382 = vmatprep.mubr.f32.mxu0 0.0
  %383 = vmatmul.mubr.f32.gmra.mrb[0].mxu0 %v93
  %v384 = vpop.f32.mrb[0].mxu0
  %v385 = vadd.f32 %v316, %v384
  %v386 = vpop.f32.mrb[0].mxu0
  %387 = vmatprep.mubr.f32.mxu0 0.0
  %388 = vmatmul.mubr.f32.gmra.mrb[0].mxu0 %v96
  %v389 = vpop.f32.mrb[0].mxu0
  %v390 = vadd.f32 %v315, %v389
  %v391 = vpop.f32.mrb[0].mxu0
  %392 = vmatprep.mubr.f32.mxu0 0.0
  %393 = vmatmul.mubr.f32.gmra.mrb[0].mxu0 %v99
  %v394 = vpop.f32.mrb[0].mxu0
  %v395 = vadd.f32 %v314, %v394
  %v396 = vpop.f32.mrb[0].mxu0
  %397 = vmatprep.mubr.f32.mxu0 0.0
  %398 = vmatmul.mubr.f32.gmra.mrb[0].mxu0 %v102
  %v399 = vpop.f32.mrb[0].mxu0
  %v400 = vadd.f32 %v313, %v399
  %v401 = vpop.f32.mrb[0].mxu0
  %402 = vmatprep.mubr.f32.mxu0 0.0
  %403 = vmatmul.mubr.f32.gmra.mrb[0].mxu0 %v105
  %v404 = vpop.f32.mrb[0].mxu0
  %v405 = vadd.f32 %v312, %v404
  %v406 = vpop.f32.mrb[0].mxu0
  %407 = vmatprep.mubr.f32.mxu0 0.0
  %408 = vmatmul.mubr.f32.gmra.mrb[0].mxu0 %v108
  %v409 = vpop.f32.mrb[0].mxu0
  %v410 = vadd.f32 %v311, %v409
  %v411 = vpop.f32.mrb[0].mxu0
  %412 = vmatprep.mubr.f32.mxu0 0.0
  %413 = vmatmul.mubr.f32.gmra.mrb[0].mxu0 %v111
  %v414 = vpop.f32.mrb[0].mxu0
  %v415 = vadd.f32 %v310, %v414
  %v416 = vpop.f32.mrb[0].mxu0
  %417 = vmatprep.mubr.f32.mxu0 0.0
  %418 = vmatmul.mubr.f32.gmra.mrb[0].mxu0 %v114
  %v419 = vpop.f32.mrb[0].mxu0
  %v420 = vadd.f32 %v309, %v419
  %v421 = vpop.f32.mrb[0].mxu0
  %422 = vmatprep.mubr.f32.mxu0 0.0
  %423 = vmatmul.mubr.f32.gmra.mrb[0].mxu0 %v117
  %v424 = vpop.f32.mrb[0].mxu0
  %v425 = vadd.f32 %v308, %v424
  %v426 = vpop.f32.mrb[0].mxu0
  %427 = vmatprep.mubr.f32.mxu0 0.0
  %428 = vmatmul.mubr.f32.gmra.mrb[0].mxu0 %v120
  %v429 = vpop.f32.mrb[0].mxu0
  %v430 = vadd.f32 %v307, %v429
  %v431 = vpop.f32.mrb[0].mxu0
  %432 = vmatprep.mubr.f32.mxu0 0.0
  %433 = vmatmul.mubr.f32.gmra.mrb[0].mxu0 %v123
  %v434 = vpop.f32.mrb[0].mxu0
  %v435 = vadd.f32 %v306, %v434
  %v436 = vpop.f32.mrb[0].mxu0
  %437 = vmatprep.mubr.f32.mxu0 0.0
  %438 = vmatmul.mubr.f32.gmra.mrb[0].mxu0 %v126
  %v439 = vpop.f32.mrb[0].mxu0
  %v440 = vadd.f32 %v305, %v439
  %v441 = vpop.f32.mrb[0].mxu0
  %442 = vmatprep.mubr.f32.mxu0 0.0
  %443 = vmatmul.mubr.f32.gmra.mrb[0].mxu0 %v129
  %v444 = vpop.f32.mrb[0].mxu0
  %v445 = vadd.f32 %v304, %v444
  %v446 = vpop.f32.mrb[0].mxu0
  %447 = vmatprep.mubr.f32.mxu0 0.0
  %448 = vmatmul.mubr.f32.gmra.mrb[0].mxu0 %v132
  %v449 = vpop.f32.mrb[0].mxu0
  %v450 = vadd.f32 %v303, %v449
  %v451 = vpop.f32.mrb[0].mxu0
  %452 = vmatprep.mubr.f32.mxu0 0.0
  %453 = vmatmul.mubr.f32.gmra.mrb[0].mxu0 %v135
  %v454 = vpop.f32.mrb[0].mxu0
  %v455 = vadd.f32 %v302, %v454
  %v456 = vpop.f32.mrb[0].mxu0
  %457 = vmatprep.mubr.f32.mxu0 0.0
  %458 = vmatmul.mubr.f32.gmra.mrb[0].mxu0 %v138
  %v459 = vpop.f32.mrb[0].mxu0
  %v460 = vadd.f32 %v317, %v459
  %v461 = vpop.f32.mrb[0].mxu0
  %462 = vdwg.mxu0
  %s463 = scalar_lea.vmem %s1, 64
  %v464 = vld [vmem:[%s463] sm:$0xff]
  %v465 = vld [vmem:[%s463 + $0x8] sm:$0xff]
  %v466 = vld [vmem:[%s463 + $0x10] sm:$0xff]
  %v467 = vld [vmem:[%s463 + $0x18] sm:$0xff]
  %468 = vmatprep.subr.mxu0 0.0
  %469 = vmatpush1.msra.mxu0 %v464
  %470 = vmatprep.subr.mxu0 0.0
  %471 = vmatpush1.msra.mxu0 %v465
  %472 = vmatprep.subr.mxu0 0.0
  %473 = vmatpush1.msra.mxu0 %v466
  %474 = vmatprep.subr.mxu0 0.0
  %475 = vmatpush1.msra.mxu0 %v467
  %476 = vmatprep.subr.mxu0 0.0
  %477 = vmatpush1.msra.mxu0 0.0
  %478 = vmatprep.subr.mxu0 0.0
  %479 = vmatpush1.msra.mxu0 0.0
  %480 = vmatprep.subr.mxu0 0.0
  %481 = vmatpush1.msra.mxu0 0.0
  %482 = vmatprep.subr.mxu0 0.0
  %483 = vmatpush1.msra.mxu0 0.0
  %484 = vmatprep.subr.mxu0 0.0
  %485 = vmatpush1.msra.mxu0 0.0
  %486 = vmatprep.subr.mxu0 0.0
  %487 = vmatpush1.msra.mxu0 0.0
  %488 = vmatprep.subr.mxu0 0.0
  %489 = vmatpush1.msra.mxu0 0.0
  %490 = vmatprep.subr.mxu0 0.0
  %491 = vmatpush1.msra.mxu0 0.0
  %492 = vmatprep.subr.mxu0 0.0
  %493 = vmatpush1.msra.mxu0 0.0
  %494 = vmatprep.subr.mxu0 0.0
  %495 = vmatpush1.msra.mxu0 0.0
  %496 = vmatprep.subr.mxu0 0.0
  %497 = vmatpush1.msra.mxu0 0.0
  %498 = vmatprep.subr.mxu0 0.0
  %499 = vmatpush1.msra.mxu0 0.0
  %500 = vmatprep.subr.mxu0 0.0
  %501 = vmatpush1.msra.mxu0 0.0
  %502 = vmatprep.subr.mxu0 0.0
  %503 = vmatpush1.msra.mxu0 0.0
  %504 = vmatprep.subr.mxu0 0.0
  %505 = vmatpush1.msra.mxu0 0.0
  %506 = vmatprep.subr.mxu0 0.0
  %507 = vmatpush1.msra.mxu0 0.0
  %508 = vmatprep.subr.mxu0 0.0
  %509 = vmatpush1.msra.mxu0 0.0
  %510 = vmatprep.subr.mxu0 0.0
  %511 = vmatpush1.msra.mxu0 0.0
  %512 = vmatprep.subr.mxu0 0.0
  %513 = vmatpush1.msra.mxu0 0.0
  %514 = vmatprep.subr.mxu0 0.0
  %515 = vmatpush1.msra.mxu0 0.0
  %516 = vmatprep.subr.mxu0 0.0
  %517 = vmatpush1.msra.mxu0 0.0
  %518 = vmatprep.subr.mxu0 0.0
  %519 = vmatpush1.msra.mxu0 0.0
  %520 = vmatprep.subr.mxu0 0.0
  %521 = vmatpush1.msra.mxu0 0.0
  %522 = vmatprep.subr.mxu0 0.0
  %523 = vmatpush1.msra.mxu0 0.0
  %524 = vmatprep.subr.mxu0 0.0
  %525 = vmatpush1.msra.mxu0 0.0
  %526 = vmatprep.subr.mxu0 0.0
  %527 = vmatpush1.msra.mxu0 0.0
  %528 = vmatprep.subr.mxu0 0.0
  %529 = vmatpush1.msra.mxu0 0.0
  %530 = vmatprep.subr.mxu0 0.0
  %531 = vmatpush1.msra.mxu0 0.0
  %532 = vmatprep.mubr.f32.mxu0 0.0
  %533 = vmatmul.mubr.f32.gmra.mrb[0].mxu0 %v93
  %v534 = vpop.f32.mrb[0].mxu0
  %v535 = vadd.f32 0.0, %v534
  %v536 = vpop.f32.mrb[0].mxu0
  %537 = vmatprep.mubr.f32.mxu0 0.0
  %538 = vmatmul.mubr.f32.gmra.mrb[0].mxu0 %v96
  %v539 = vpop.f32.mrb[0].mxu0
  %v540 = vadd.f32 0.0, %v539
  %v541 = vpop.f32.mrb[0].mxu0
  %542 = vmatprep.mubr.f32.mxu0 0.0
  %543 = vmatmul.mubr.f32.gmra.mrb[0].mxu0 %v99
  %v544 = vpop.f32.mrb[0].mxu0
  %v545 = vadd.f32 0.0, %v544
  %v546 = vpop.f32.mrb[0].mxu0
  %547 = vmatprep.mubr.f32.mxu0 0.0
  %548 = vmatmul.mubr.f32.gmra.mrb[0].mxu0 %v102
  %v549 = vpop.f32.mrb[0].mxu0
  %v550 = vadd.f32 0.0, %v549
  %v551 = vpop.f32.mrb[0].mxu0
  %552 = vmatprep.mubr.f32.mxu0 0.0
  %553 = vmatmul.mubr.f32.gmra.mrb[0].mxu0 %v105
  %v554 = vpop.f32.mrb[0].mxu0
  %v555 = vadd.f32 0.0, %v554
  %v556 = vpop.f32.mrb[0].mxu0
  %557 = vmatprep.mubr.f32.mxu0 0.0
  %558 = vmatmul.mubr.f32.gmra.mrb[0].mxu0 %v108
  %v559 = vpop.f32.mrb[0].mxu0
  %v560 = vadd.f32 0.0, %v559
  %v561 = vpop.f32.mrb[0].mxu0
  %562 = vmatprep.mubr.f32.mxu0 0.0
  %563 = vmatmul.mubr.f32.gmra.mrb[0].mxu0 %v111
  %v564 = vpop.f32.mrb[0].mxu0
  %v565 = vadd.f32 0.0, %v564
  %v566 = vpop.f32.mrb[0].mxu0
  %567 = vmatprep.mubr.f32.mxu0 0.0
  %568 = vmatmul.mubr.f32.gmra.mrb[0].mxu0 %v114
  %v569 = vpop.f32.mrb[0].mxu0
  %v570 = vadd.f32 0.0, %v569
  %v571 = vpop.f32.mrb[0].mxu0
  %572 = vmatprep.mubr.f32.mxu0 0.0
  %573 = vmatmul.mubr.f32.gmra.mrb[0].mxu0 %v117
  %v574 = vpop.f32.mrb[0].mxu0
  %v575 = vadd.f32 0.0, %v574
  %v576 = vpop.f32.mrb[0].mxu0
  %577 = vmatprep.mubr.f32.mxu0 0.0
  %578 = vmatmul.mubr.f32.gmra.mrb[0].mxu0 %v120
  %v579 = vpop.f32.mrb[0].mxu0
  %v580 = vadd.f32 0.0, %v579
  %v581 = vpop.f32.mrb[0].mxu0
  %582 = vmatprep.mubr.f32.mxu0 0.0
  %583 = vmatmul.mubr.f32.gmra.mrb[0].mxu0 %v123
  %v584 = vpop.f32.mrb[0].mxu0
  %v585 = vadd.f32 0.0, %v584
  %v586 = vpop.f32.mrb[0].mxu0
  %587 = vmatprep.mubr.f32.mxu0 0.0
  %588 = vmatmul.mubr.f32.gmra.mrb[0].mxu0 %v126
  %v589 = vpop.f32.mrb[0].mxu0
  %v590 = vadd.f32 0.0, %v589
  %v591 = vpop.f32.mrb[0].mxu0
  %592 = vmatprep.mubr.f32.mxu0 0.0
  %593 = vmatmul.mubr.f32.gmra.mrb[0].mxu0 %v129
  %v594 = vpop.f32.mrb[0].mxu0
  %v595 = vadd.f32 0.0, %v594
  %v596 = vpop.f32.mrb[0].mxu0
  %597 = vmatprep.mubr.f32.mxu0 0.0
  %598 = vmatmul.mubr.f32.gmra.mrb[0].mxu0 %v132
  %v599 = vpop.f32.mrb[0].mxu0
  %v600 = vadd.f32 0.0, %v599
  %v601 = vpop.f32.mrb[0].mxu0
  %602 = vmatprep.mubr.f32.mxu0 0.0
  %603 = vmatmul.mubr.f32.gmra.mrb[0].mxu0 %v135
  %v604 = vpop.f32.mrb[0].mxu0
  %v605 = vadd.f32 0.0, %v604
  %v606 = vpop.f32.mrb[0].mxu0
  %607 = vmatprep.mubr.f32.mxu0 0.0
  %608 = vmatmul.mubr.f32.gmra.mrb[0].mxu0 %v138
  %v609 = vpop.f32.mrb[0].mxu0
  %v610 = vadd.f32 0.0, %v609
  %v611 = vpop.f32.mrb[0].mxu0
  %612 = vdwg.mxu0
  %v613 = vrot.slane %v535, 2
  %v614 = vrot.slane %v540, 2
  %v615 = vrot.slane %v545, 2
  %v616 = vrot.slane %v550, 2
  %v617 = vrot.slane %v555, 2
  %v618 = vrot.slane %v560, 2
  %v619 = vrot.slane %v565, 2
  %v620 = vrot.slane %v570, 2
  %v621 = vrot.slane %v575, 2
  %v622 = vrot.slane %v580, 2
  %v623 = vrot.slane %v585, 2
  %v624 = vrot.slane %v590, 2
  %v625 = vrot.slane %v595, 2
  %v626 = vrot.slane %v600, 2
  %v627 = vrot.slane %v605, 2
  %v628 = vrot.slane %v610, 2
  %vm629 = vcmp.lt.s32.totalorder %v34, 6
  %v630 = vsel %vm629, %v627, %v628
  %v631 = vsel %vm629, %v626, %v627
  %v632 = vsel %vm629, %v625, %v626
  %v633 = vsel %vm629, %v624, %v625
  %v634 = vsel %vm629, %v623, %v624
  %v635 = vsel %vm629, %v622, %v623
  %v636 = vsel %vm629, %v621, %v622
  %v637 = vsel %vm629, %v620, %v621
  %v638 = vsel %vm629, %v619, %v620
  %v639 = vsel %vm629, %v618, %v619
  %v640 = vsel %vm629, %v617, %v618
  %v641 = vsel %vm629, %v616, %v617
  %v642 = vsel %vm629, %v615, %v616
  %v643 = vsel %vm629, %v614, %v615
  %v644 = vsel %vm629, %v613, %v614
  %v645 = vsel %vm629, %v628, %v613
  %v646 = vadd.f32 %v385, %v644
  %v647 = vadd.f32 %v390, %v643
  %v648 = vadd.f32 %v395, %v642
  %v649 = vadd.f32 %v400, %v641
  %v650 = vadd.f32 %v405, %v640
  %v651 = vadd.f32 %v410, %v639
  %v652 = vadd.f32 %v415, %v638
  %v653 = vadd.f32 %v420, %v637
  %v654 = vadd.f32 %v425, %v636
  %v655 = vadd.f32 %v430, %v635
  %v656 = vadd.f32 %v435, %v634
  %v657 = vadd.f32 %v440, %v633
  %v658 = vadd.f32 %v445, %v632
  %v659 = vadd.f32 %v450, %v631
  %v660 = vadd.f32 %v455, %v630
  %v661 = vadd.f32 %v460, %v645
  %vm662 = vcmp.lt.s32.totalorder %v50, 8
  %vm663 = vcmp.lt.s32.totalorder %v51, 8
  %vm664 = vcmp.lt.s32.totalorder %v52, 8
  %vm665 = vcmp.lt.s32.totalorder %v53, 8
  %vm666 = vcmp.lt.s32.totalorder %v54, 8
  %vm667 = vcmp.lt.s32.totalorder %v55, 8
  %vm668 = vcmp.lt.s32.totalorder %v56, 8
  %vm669 = vcmp.lt.s32.totalorder %v57, 8
  %vm670 = vcmp.lt.s32.totalorder %v58, 8
  %vm671 = vcmp.lt.s32.totalorder %v59, 8
  %vm672 = vcmp.lt.s32.totalorder %v60, 8
  %vm673 = vcmp.lt.s32.totalorder %v61, 8
  %vm674 = vcmp.lt.s32.totalorder %v62, 8
  %vm675 = vcmp.lt.s32.totalorder %v63, 8
  %vm676 = vcmp.lt.s32.totalorder %v64, 8
  %vm677 = vcmp.lt.s32.totalorder %v65, 8
  %v678 = vsel %vm662, %v646, -3e+38
  %v679 = vsel %vm663, %v647, -3e+38
  %v680 = vsel %vm664, %v648, -3e+38
  %v681 = vsel %vm665, %v649, -3e+38
  %v682 = vsel %vm666, %v650, -3e+38
  %v683 = vsel %vm667, %v651, -3e+38
  %v684 = vsel %vm668, %v652, -3e+38
  %v685 = vsel %vm669, %v653, -3e+38
  %v686 = vsel %vm670, %v654, -3e+38
  %v687 = vsel %vm671, %v655, -3e+38
  %v688 = vsel %vm672, %v656, -3e+38
  %v689 = vsel %vm673, %v657, -3e+38
  %v690 = vsel %vm674, %v658, -3e+38
  %v691 = vsel %vm675, %v659, -3e+38
  %v692 = vsel %vm676, %v660, -3e+38
  %v693 = vsel %vm677, %v661, -3e+38
  %v694 = vmax.f32 %v678, %v679
  %v695 = vrot.slane %v694, 4
  %v696 = vmax.f32 %v694, %v695
  %v697 = vrot.slane %v696, 2
  %v698 = vmax.f32 %v696, %v697
  %v699 = vrot.slane %v698, 1
  %v700 = vmax.f32 %v698, %v699
  %v701 = vmax.f32 %v680, %v681
  %v702 = vrot.slane %v701, 4
  %v703 = vmax.f32 %v701, %v702
  %v704 = vrot.slane %v703, 2
  %v705 = vmax.f32 %v703, %v704
  %v706 = vrot.slane %v705, 1
  %v707 = vmax.f32 %v705, %v706
  %v708 = vmax.f32 %v682, %v683
  %v709 = vrot.slane %v708, 4
  %v710 = vmax.f32 %v708, %v709
  %v711 = vrot.slane %v710, 2
  %v712 = vmax.f32 %v710, %v711
  %v713 = vrot.slane %v712, 1
  %v714 = vmax.f32 %v712, %v713
  %v715 = vmax.f32 %v684, %v685
  %v716 = vrot.slane %v715, 4
  %v717 = vmax.f32 %v715, %v716
  %v718 = vrot.slane %v717, 2
  %v719 = vmax.f32 %v717, %v718
  %v720 = vrot.slane %v719, 1
  %v721 = vmax.f32 %v719, %v720
  %v722 = vmax.f32 %v686, %v687
  %v723 = vrot.slane %v722, 4
  %v724 = vmax.f32 %v722, %v723
  %v725 = vrot.slane %v724, 2
  %v726 = vmax.f32 %v724, %v725
  %v727 = vrot.slane %v726, 1
  %v728 = vmax.f32 %v726, %v727
  %v729 = vmax.f32 %v688, %v689
  %v730 = vrot.slane %v729, 4
  %v731 = vmax.f32 %v729, %v730
  %v732 = vrot.slane %v731, 2
  %v733 = vmax.f32 %v731, %v732
  %v734 = vrot.slane %v733, 1
  %v735 = vmax.f32 %v733, %v734
  %v736 = vmax.f32 %v690, %v691
  %v737 = vrot.slane %v736, 4
  %v738 = vmax.f32 %v736, %v737
  %v739 = vrot.slane %v738, 2
  %v740 = vmax.f32 %v738, %v739
  %v741 = vrot.slane %v740, 1
  %v742 = vmax.f32 %v740, %v741
  %v743 = vmax.f32 %v692, %v693
  %v744 = vrot.slane %v743, 4
  %v745 = vmax.f32 %v743, %v744
  %v746 = vrot.slane %v745, 2
  %v747 = vmax.f32 %v745, %v746
  %v748 = vrot.slane %v747, 1
  %v749 = vmax.f32 %v747, %v748
  %s750 = scalar_lea.vmem %s0, 128
  %v751 = vld [vmem:[%s750] sm:$0xff]
  %v752 = vld [vmem:[%s750 + $0x8] sm:$0xff]
  %v753 = vld [vmem:[%s750 + $0x10] sm:$0xff]
  %v754 = vld [vmem:[%s750 + $0x18] sm:$0xff]
  %v755 = vld [vmem:[%s750 + $0x20] sm:$0xff]
  %v756 = vld [vmem:[%s750 + $0x28] sm:$0xff]
  %v757 = vld [vmem:[%s750 + $0x30] sm:$0xff]
  %v758 = vld [vmem:[%s750 + $0x38] sm:$0xff]
  %v759 = vld [vmem:[%s750 + $0x40] sm:$0xff]
  %v760 = vld [vmem:[%s750 + $0x48] sm:$0xff]
  %v761 = vld [vmem:[%s750 + $0x50] sm:$0xff]
  %v762 = vld [vmem:[%s750 + $0x58] sm:$0xff]
  %v763 = vld [vmem:[%s750 + $0x60] sm:$0xff]
  %v764 = vld [vmem:[%s750 + $0x68] sm:$0xff]
  %v765 = vld [vmem:[%s750 + $0x70] sm:$0xff]
  %v766 = vld [vmem:[%s750 + $0x78] sm:$0xff]
  %s767 = scalar_lea.vmem %s1, 96
  %v768 = vld [vmem:[%s767] sm:$0xff]
  %v769 = vld [vmem:[%s767 + $0x8] sm:$0xff]
  %v770 = vld [vmem:[%s767 + $0x10] sm:$0xff]
  %v771 = vld [vmem:[%s767 + $0x18] sm:$0xff]
  %s772 = scalar_lea.vmem %s1, 128
  %v773 = vld [vmem:[%s772] sm:$0xff]
  %v774 = vld [vmem:[%s772 + $0x8] sm:$0xff]
  %v775 = vld [vmem:[%s772 + $0x10] sm:$0xff]
  %v776 = vld [vmem:[%s772 + $0x18] sm:$0xff]
  %v778 = vsel %vm91, %v751, 0
  %v781 = vsel %vm91, %v752, 0
  %v784 = vsel %vm91, %v753, 0
  %v787 = vsel %vm91, %v754, 0
  %v790 = vsel %vm91, %v755, 0
  %v793 = vsel %vm91, %v756, 0
  %v796 = vsel %vm91, %v757, 0
  %v799 = vsel %vm91, %v758, 0
  %v802 = vsel %vm91, %v759, 0
  %v805 = vsel %vm91, %v760, 0
  %v808 = vsel %vm91, %v761, 0
  %v811 = vsel %vm91, %v762, 0
  %v814 = vsel %vm91, %v763, 0
  %v817 = vsel %vm91, %v764, 0
  %v820 = vsel %vm91, %v765, 0
  %v823 = vsel %vm91, %v766, 0
  %825 = vmatprep.subr.mxu0 0.0
  %826 = vmatpush1.msra.mxu0 %v773
  %827 = vmatprep.subr.mxu0 0.0
  %828 = vmatpush1.msra.mxu0 %v774
  %829 = vmatprep.subr.mxu0 0.0
  %830 = vmatpush1.msra.mxu0 %v775
  %831 = vmatprep.subr.mxu0 0.0
  %832 = vmatpush1.msra.mxu0 %v776
  %833 = vmatprep.subr.mxu0 0.0
  %834 = vmatpush1.msra.mxu0 0.0
  %835 = vmatprep.subr.mxu0 0.0
  %836 = vmatpush1.msra.mxu0 0.0
  %837 = vmatprep.subr.mxu0 0.0
  %838 = vmatpush1.msra.mxu0 0.0
  %839 = vmatprep.subr.mxu0 0.0
  %840 = vmatpush1.msra.mxu0 0.0
  %841 = vmatprep.subr.mxu0 0.0
  %842 = vmatpush1.msra.mxu0 0.0
  %843 = vmatprep.subr.mxu0 0.0
  %844 = vmatpush1.msra.mxu0 0.0
  %845 = vmatprep.subr.mxu0 0.0
  %846 = vmatpush1.msra.mxu0 0.0
  %847 = vmatprep.subr.mxu0 0.0
  %848 = vmatpush1.msra.mxu0 0.0
  %849 = vmatprep.subr.mxu0 0.0
  %850 = vmatpush1.msra.mxu0 0.0
  %851 = vmatprep.subr.mxu0 0.0
  %852 = vmatpush1.msra.mxu0 0.0
  %853 = vmatprep.subr.mxu0 0.0
  %854 = vmatpush1.msra.mxu0 0.0
  %855 = vmatprep.subr.mxu0 0.0
  %856 = vmatpush1.msra.mxu0 0.0
  %857 = vmatprep.subr.mxu0 0.0
  %858 = vmatpush1.msra.mxu0 0.0
  %859 = vmatprep.subr.mxu0 0.0
  %860 = vmatpush1.msra.mxu0 0.0
  %861 = vmatprep.subr.mxu0 0.0
  %862 = vmatpush1.msra.mxu0 0.0
  %863 = vmatprep.subr.mxu0 0.0
  %864 = vmatpush1.msra.mxu0 0.0
  %865 = vmatprep.subr.mxu0 0.0
  %866 = vmatpush1.msra.mxu0 0.0
  %867 = vmatprep.subr.mxu0 0.0
  %868 = vmatpush1.msra.mxu0 0.0
  %869 = vmatprep.subr.mxu0 0.0
  %870 = vmatpush1.msra.mxu0 0.0
  %871 = vmatprep.subr.mxu0 0.0
  %872 = vmatpush1.msra.mxu0 0.0
  %873 = vmatprep.subr.mxu0 0.0
  %874 = vmatpush1.msra.mxu0 0.0
  %875 = vmatprep.subr.mxu0 0.0
  %876 = vmatpush1.msra.mxu0 0.0
  %877 = vmatprep.subr.mxu0 0.0
  %878 = vmatpush1.msra.mxu0 0.0
  %879 = vmatprep.subr.mxu0 0.0
  %880 = vmatpush1.msra.mxu0 0.0
  %881 = vmatprep.subr.mxu0 0.0
  %882 = vmatpush1.msra.mxu0 0.0
  %883 = vmatprep.subr.mxu0 0.0
  %884 = vmatpush1.msra.mxu0 0.0
  %885 = vmatprep.subr.mxu0 0.0
  %886 = vmatpush1.msra.mxu0 0.0
  %887 = vmatprep.subr.mxu0 0.0
  %888 = vmatpush1.msra.mxu0 0.0
  %889 = vmatprep.mubr.f32.mxu0 0.0
  %890 = vmatmul.mubr.f32.gmra.mrb[0].mxu0 %v778
  %v891 = vpop.f32.mrb[0].mxu0
  %v892 = vadd.f32 0.0, %v891
  %v893 = vpop.f32.mrb[0].mxu0
  %894 = vmatprep.mubr.f32.mxu0 0.0
  %895 = vmatmul.mubr.f32.gmra.mrb[0].mxu0 %v781
  %v896 = vpop.f32.mrb[0].mxu0
  %v897 = vadd.f32 0.0, %v896
  %v898 = vpop.f32.mrb[0].mxu0
  %899 = vmatprep.mubr.f32.mxu0 0.0
  %900 = vmatmul.mubr.f32.gmra.mrb[0].mxu0 %v784
  %v901 = vpop.f32.mrb[0].mxu0
  %v902 = vadd.f32 0.0, %v901
  %v903 = vpop.f32.mrb[0].mxu0
  %904 = vmatprep.mubr.f32.mxu0 0.0
  %905 = vmatmul.mubr.f32.gmra.mrb[0].mxu0 %v787
  %v906 = vpop.f32.mrb[0].mxu0
  %v907 = vadd.f32 0.0, %v906
  %v908 = vpop.f32.mrb[0].mxu0
  %909 = vmatprep.mubr.f32.mxu0 0.0
  %910 = vmatmul.mubr.f32.gmra.mrb[0].mxu0 %v790
  %v911 = vpop.f32.mrb[0].mxu0
  %v912 = vadd.f32 0.0, %v911
  %v913 = vpop.f32.mrb[0].mxu0
  %914 = vmatprep.mubr.f32.mxu0 0.0
  %915 = vmatmul.mubr.f32.gmra.mrb[0].mxu0 %v793
  %v916 = vpop.f32.mrb[0].mxu0
  %v917 = vadd.f32 0.0, %v916
  %v918 = vpop.f32.mrb[0].mxu0
  %919 = vmatprep.mubr.f32.mxu0 0.0
  %920 = vmatmul.mubr.f32.gmra.mrb[0].mxu0 %v796
  %v921 = vpop.f32.mrb[0].mxu0
  %v922 = vadd.f32 0.0, %v921
  %v923 = vpop.f32.mrb[0].mxu0
  %924 = vmatprep.mubr.f32.mxu0 0.0
  %925 = vmatmul.mubr.f32.gmra.mrb[0].mxu0 %v799
  %v926 = vpop.f32.mrb[0].mxu0
  %v927 = vadd.f32 0.0, %v926
  %v928 = vpop.f32.mrb[0].mxu0
  %929 = vmatprep.mubr.f32.mxu0 0.0
  %930 = vmatmul.mubr.f32.gmra.mrb[0].mxu0 %v802
  %v931 = vpop.f32.mrb[0].mxu0
  %v932 = vadd.f32 0.0, %v931
  %v933 = vpop.f32.mrb[0].mxu0
  %934 = vmatprep.mubr.f32.mxu0 0.0
  %935 = vmatmul.mubr.f32.gmra.mrb[0].mxu0 %v805
  %v936 = vpop.f32.mrb[0].mxu0
  %v937 = vadd.f32 0.0, %v936
  %v938 = vpop.f32.mrb[0].mxu0
  %939 = vmatprep.mubr.f32.mxu0 0.0
  %940 = vmatmul.mubr.f32.gmra.mrb[0].mxu0 %v808
  %v941 = vpop.f32.mrb[0].mxu0
  %v942 = vadd.f32 0.0, %v941
  %v943 = vpop.f32.mrb[0].mxu0
  %944 = vmatprep.mubr.f32.mxu0 0.0
  %945 = vmatmul.mubr.f32.gmra.mrb[0].mxu0 %v811
  %v946 = vpop.f32.mrb[0].mxu0
  %v947 = vadd.f32 0.0, %v946
  %v948 = vpop.f32.mrb[0].mxu0
  %949 = vmatprep.mubr.f32.mxu0 0.0
  %950 = vmatmul.mubr.f32.gmra.mrb[0].mxu0 %v814
  %v951 = vpop.f32.mrb[0].mxu0
  %v952 = vadd.f32 0.0, %v951
  %v953 = vpop.f32.mrb[0].mxu0
  %954 = vmatprep.mubr.f32.mxu0 0.0
  %955 = vmatmul.mubr.f32.gmra.mrb[0].mxu0 %v817
  %v956 = vpop.f32.mrb[0].mxu0
  %v957 = vadd.f32 0.0, %v956
  %v958 = vpop.f32.mrb[0].mxu0
  %959 = vmatprep.mubr.f32.mxu0 0.0
  %960 = vmatmul.mubr.f32.gmra.mrb[0].mxu0 %v820
  %v961 = vpop.f32.mrb[0].mxu0
  %v962 = vadd.f32 0.0, %v961
  %v963 = vpop.f32.mrb[0].mxu0
  %964 = vmatprep.mubr.f32.mxu0 0.0
  %965 = vmatmul.mubr.f32.gmra.mrb[0].mxu0 %v823
  %v966 = vpop.f32.mrb[0].mxu0
  %v967 = vadd.f32 0.0, %v966
  %v968 = vpop.f32.mrb[0].mxu0
  %969 = vdwg.mxu0
  %v970 = vrot.slane %v892, 1
  %v971 = vrot.slane %v897, 1
  %v972 = vrot.slane %v902, 1
  %v973 = vrot.slane %v907, 1
  %v974 = vrot.slane %v912, 1
  %v975 = vrot.slane %v917, 1
  %v976 = vrot.slane %v922, 1
  %v977 = vrot.slane %v927, 1
  %v978 = vrot.slane %v932, 1
  %v979 = vrot.slane %v937, 1
  %v980 = vrot.slane %v942, 1
  %v981 = vrot.slane %v947, 1
  %v982 = vrot.slane %v952, 1
  %v983 = vrot.slane %v957, 1
  %v984 = vrot.slane %v962, 1
  %v985 = vrot.slane %v967, 1
  %v986 = vsel %vm301, %v984, %v985
  %v987 = vsel %vm301, %v983, %v984
  %v988 = vsel %vm301, %v982, %v983
  %v989 = vsel %vm301, %v981, %v982
  %v990 = vsel %vm301, %v980, %v981
  %v991 = vsel %vm301, %v979, %v980
  %v992 = vsel %vm301, %v978, %v979
  %v993 = vsel %vm301, %v977, %v978
  %v994 = vsel %vm301, %v976, %v977
  %v995 = vsel %vm301, %v975, %v976
  %v996 = vsel %vm301, %v974, %v975
  %v997 = vsel %vm301, %v973, %v974
  %v998 = vsel %vm301, %v972, %v973
  %v999 = vsel %vm301, %v971, %v972
  %v1000 = vsel %vm301, %v970, %v971
  %v1001 = vsel %vm301, %v985, %v970
  %1002 = vmatprep.subr.mxu0 0.0
  %1003 = vmatpush1.msra.mxu0 %v768
  %1004 = vmatprep.subr.mxu0 0.0
  %1005 = vmatpush1.msra.mxu0 %v769
  %1006 = vmatprep.subr.mxu0 0.0
  %1007 = vmatpush1.msra.mxu0 %v770
  %1008 = vmatprep.subr.mxu0 0.0
  %1009 = vmatpush1.msra.mxu0 %v771
  %1010 = vmatprep.subr.mxu0 0.0
  %1011 = vmatpush1.msra.mxu0 0.0
  %1012 = vmatprep.subr.mxu0 0.0
  %1013 = vmatpush1.msra.mxu0 0.0
  %1014 = vmatprep.subr.mxu0 0.0
  %1015 = vmatpush1.msra.mxu0 0.0
  %1016 = vmatprep.subr.mxu0 0.0
  %1017 = vmatpush1.msra.mxu0 0.0
  %1018 = vmatprep.subr.mxu0 0.0
  %1019 = vmatpush1.msra.mxu0 0.0
  %1020 = vmatprep.subr.mxu0 0.0
  %1021 = vmatpush1.msra.mxu0 0.0
  %1022 = vmatprep.subr.mxu0 0.0
  %1023 = vmatpush1.msra.mxu0 0.0
  %1024 = vmatprep.subr.mxu0 0.0
  %1025 = vmatpush1.msra.mxu0 0.0
  %1026 = vmatprep.subr.mxu0 0.0
  %1027 = vmatpush1.msra.mxu0 0.0
  %1028 = vmatprep.subr.mxu0 0.0
  %1029 = vmatpush1.msra.mxu0 0.0
  %1030 = vmatprep.subr.mxu0 0.0
  %1031 = vmatpush1.msra.mxu0 0.0
  %1032 = vmatprep.subr.mxu0 0.0
  %1033 = vmatpush1.msra.mxu0 0.0
  %1034 = vmatprep.subr.mxu0 0.0
  %1035 = vmatpush1.msra.mxu0 0.0
  %1036 = vmatprep.subr.mxu0 0.0
  %1037 = vmatpush1.msra.mxu0 0.0
  %1038 = vmatprep.subr.mxu0 0.0
  %1039 = vmatpush1.msra.mxu0 0.0
  %1040 = vmatprep.subr.mxu0 0.0
  %1041 = vmatpush1.msra.mxu0 0.0
  %1042 = vmatprep.subr.mxu0 0.0
  %1043 = vmatpush1.msra.mxu0 0.0
  %1044 = vmatprep.subr.mxu0 0.0
  %1045 = vmatpush1.msra.mxu0 0.0
  %1046 = vmatprep.subr.mxu0 0.0
  %1047 = vmatpush1.msra.mxu0 0.0
  %1048 = vmatprep.subr.mxu0 0.0
  %1049 = vmatpush1.msra.mxu0 0.0
  %1050 = vmatprep.subr.mxu0 0.0
  %1051 = vmatpush1.msra.mxu0 0.0
  %1052 = vmatprep.subr.mxu0 0.0
  %1053 = vmatpush1.msra.mxu0 0.0
  %1054 = vmatprep.subr.mxu0 0.0
  %1055 = vmatpush1.msra.mxu0 0.0
  %1056 = vmatprep.subr.mxu0 0.0
  %1057 = vmatpush1.msra.mxu0 0.0
  %1058 = vmatprep.subr.mxu0 0.0
  %1059 = vmatpush1.msra.mxu0 0.0
  %1060 = vmatprep.subr.mxu0 0.0
  %1061 = vmatpush1.msra.mxu0 0.0
  %1062 = vmatprep.subr.mxu0 0.0
  %1063 = vmatpush1.msra.mxu0 0.0
  %1064 = vmatprep.subr.mxu0 0.0
  %1065 = vmatpush1.msra.mxu0 0.0
  %1066 = vmatprep.mubr.f32.mxu0 0.0
  %1067 = vmatmul.mubr.f32.gmra.mrb[0].mxu0 %v778
  %v1068 = vpop.f32.mrb[0].mxu0
  %v1069 = vadd.f32 %v1000, %v1068
  %v1070 = vpop.f32.mrb[0].mxu0
  %1071 = vmatprep.mubr.f32.mxu0 0.0
  %1072 = vmatmul.mubr.f32.gmra.mrb[0].mxu0 %v781
  %v1073 = vpop.f32.mrb[0].mxu0
  %v1074 = vadd.f32 %v999, %v1073
  %v1075 = vpop.f32.mrb[0].mxu0
  %1076 = vmatprep.mubr.f32.mxu0 0.0
  %1077 = vmatmul.mubr.f32.gmra.mrb[0].mxu0 %v784
  %v1078 = vpop.f32.mrb[0].mxu0
  %v1079 = vadd.f32 %v998, %v1078
  %v1080 = vpop.f32.mrb[0].mxu0
  %1081 = vmatprep.mubr.f32.mxu0 0.0
  %1082 = vmatmul.mubr.f32.gmra.mrb[0].mxu0 %v787
  %v1083 = vpop.f32.mrb[0].mxu0
  %v1084 = vadd.f32 %v997, %v1083
  %v1085 = vpop.f32.mrb[0].mxu0
  %1086 = vmatprep.mubr.f32.mxu0 0.0
  %1087 = vmatmul.mubr.f32.gmra.mrb[0].mxu0 %v790
  %v1088 = vpop.f32.mrb[0].mxu0
  %v1089 = vadd.f32 %v996, %v1088
  %v1090 = vpop.f32.mrb[0].mxu0
  %1091 = vmatprep.mubr.f32.mxu0 0.0
  %1092 = vmatmul.mubr.f32.gmra.mrb[0].mxu0 %v793
  %v1093 = vpop.f32.mrb[0].mxu0
  %v1094 = vadd.f32 %v995, %v1093
  %v1095 = vpop.f32.mrb[0].mxu0
  %1096 = vmatprep.mubr.f32.mxu0 0.0
  %1097 = vmatmul.mubr.f32.gmra.mrb[0].mxu0 %v796
  %v1098 = vpop.f32.mrb[0].mxu0
  %v1099 = vadd.f32 %v994, %v1098
  %v1100 = vpop.f32.mrb[0].mxu0
  %1101 = vmatprep.mubr.f32.mxu0 0.0
  %1102 = vmatmul.mubr.f32.gmra.mrb[0].mxu0 %v799
  %v1103 = vpop.f32.mrb[0].mxu0
  %v1104 = vadd.f32 %v993, %v1103
  %v1105 = vpop.f32.mrb[0].mxu0
  %1106 = vmatprep.mubr.f32.mxu0 0.0
  %1107 = vmatmul.mubr.f32.gmra.mrb[0].mxu0 %v802
  %v1108 = vpop.f32.mrb[0].mxu0
  %v1109 = vadd.f32 %v992, %v1108
  %v1110 = vpop.f32.mrb[0].mxu0
  %1111 = vmatprep.mubr.f32.mxu0 0.0
  %1112 = vmatmul.mubr.f32.gmra.mrb[0].mxu0 %v805
  %v1113 = vpop.f32.mrb[0].mxu0
  %v1114 = vadd.f32 %v991, %v1113
  %v1115 = vpop.f32.mrb[0].mxu0
  %1116 = vmatprep.mubr.f32.mxu0 0.0
  %1117 = vmatmul.mubr.f32.gmra.mrb[0].mxu0 %v808
  %v1118 = vpop.f32.mrb[0].mxu0
  %v1119 = vadd.f32 %v990, %v1118
  %v1120 = vpop.f32.mrb[0].mxu0
  %1121 = vmatprep.mubr.f32.mxu0 0.0
  %1122 = vmatmul.mubr.f32.gmra.mrb[0].mxu0 %v811
  %v1123 = vpop.f32.mrb[0].mxu0
  %v1124 = vadd.f32 %v989, %v1123
  %v1125 = vpop.f32.mrb[0].mxu0
  %1126 = vmatprep.mubr.f32.mxu0 0.0
  %1127 = vmatmul.mubr.f32.gmra.mrb[0].mxu0 %v814
  %v1128 = vpop.f32.mrb[0].mxu0
  %v1129 = vadd.f32 %v988, %v1128
  %v1130 = vpop.f32.mrb[0].mxu0
  %1131 = vmatprep.mubr.f32.mxu0 0.0
  %1132 = vmatmul.mubr.f32.gmra.mrb[0].mxu0 %v817
  %v1133 = vpop.f32.mrb[0].mxu0
  %v1134 = vadd.f32 %v987, %v1133
  %v1135 = vpop.f32.mrb[0].mxu0
  %1136 = vmatprep.mubr.f32.mxu0 0.0
  %1137 = vmatmul.mubr.f32.gmra.mrb[0].mxu0 %v820
  %v1138 = vpop.f32.mrb[0].mxu0
  %v1139 = vadd.f32 %v986, %v1138
  %v1140 = vpop.f32.mrb[0].mxu0
  %1141 = vmatprep.mubr.f32.mxu0 0.0
  %1142 = vmatmul.mubr.f32.gmra.mrb[0].mxu0 %v823
  %v1143 = vpop.f32.mrb[0].mxu0
  %v1144 = vadd.f32 %v1001, %v1143
  %v1145 = vpop.f32.mrb[0].mxu0
  %1146 = vdwg.mxu0
  %s1147 = scalar_lea.vmem %s1, 160
  %v1148 = vld [vmem:[%s1147] sm:$0xff]
  %v1149 = vld [vmem:[%s1147 + $0x8] sm:$0xff]
  %v1150 = vld [vmem:[%s1147 + $0x10] sm:$0xff]
  %v1151 = vld [vmem:[%s1147 + $0x18] sm:$0xff]
  %1152 = vmatprep.subr.mxu0 0.0
  %1153 = vmatpush1.msra.mxu0 %v1148
  %1154 = vmatprep.subr.mxu0 0.0
  %1155 = vmatpush1.msra.mxu0 %v1149
  %1156 = vmatprep.subr.mxu0 0.0
  %1157 = vmatpush1.msra.mxu0 %v1150
  %1158 = vmatprep.subr.mxu0 0.0
  %1159 = vmatpush1.msra.mxu0 %v1151
  %1160 = vmatprep.subr.mxu0 0.0
  %1161 = vmatpush1.msra.mxu0 0.0
  %1162 = vmatprep.subr.mxu0 0.0
  %1163 = vmatpush1.msra.mxu0 0.0
  %1164 = vmatprep.subr.mxu0 0.0
  %1165 = vmatpush1.msra.mxu0 0.0
  %1166 = vmatprep.subr.mxu0 0.0
  %1167 = vmatpush1.msra.mxu0 0.0
  %1168 = vmatprep.subr.mxu0 0.0
  %1169 = vmatpush1.msra.mxu0 0.0
  %1170 = vmatprep.subr.mxu0 0.0
  %1171 = vmatpush1.msra.mxu0 0.0
  %1172 = vmatprep.subr.mxu0 0.0
  %1173 = vmatpush1.msra.mxu0 0.0
  %1174 = vmatprep.subr.mxu0 0.0
  %1175 = vmatpush1.msra.mxu0 0.0
  %1176 = vmatprep.subr.mxu0 0.0
  %1177 = vmatpush1.msra.mxu0 0.0
  %1178 = vmatprep.subr.mxu0 0.0
  %1179 = vmatpush1.msra.mxu0 0.0
  %1180 = vmatprep.subr.mxu0 0.0
  %1181 = vmatpush1.msra.mxu0 0.0
  %1182 = vmatprep.subr.mxu0 0.0
  %1183 = vmatpush1.msra.mxu0 0.0
  %1184 = vmatprep.subr.mxu0 0.0
  %1185 = vmatpush1.msra.mxu0 0.0
  %1186 = vmatprep.subr.mxu0 0.0
  %1187 = vmatpush1.msra.mxu0 0.0
  %1188 = vmatprep.subr.mxu0 0.0
  %1189 = vmatpush1.msra.mxu0 0.0
  %1190 = vmatprep.subr.mxu0 0.0
  %1191 = vmatpush1.msra.mxu0 0.0
  %1192 = vmatprep.subr.mxu0 0.0
  %1193 = vmatpush1.msra.mxu0 0.0
  %1194 = vmatprep.subr.mxu0 0.0
  %1195 = vmatpush1.msra.mxu0 0.0
  %1196 = vmatprep.subr.mxu0 0.0
  %1197 = vmatpush1.msra.mxu0 0.0
  %1198 = vmatprep.subr.mxu0 0.0
  %1199 = vmatpush1.msra.mxu0 0.0
  %1200 = vmatprep.subr.mxu0 0.0
  %1201 = vmatpush1.msra.mxu0 0.0
  %1202 = vmatprep.subr.mxu0 0.0
  %1203 = vmatpush1.msra.mxu0 0.0
  %1204 = vmatprep.subr.mxu0 0.0
  %1205 = vmatpush1.msra.mxu0 0.0
  %1206 = vmatprep.subr.mxu0 0.0
  %1207 = vmatpush1.msra.mxu0 0.0
  %1208 = vmatprep.subr.mxu0 0.0
  %1209 = vmatpush1.msra.mxu0 0.0
  %1210 = vmatprep.subr.mxu0 0.0
  %1211 = vmatpush1.msra.mxu0 0.0
  %1212 = vmatprep.subr.mxu0 0.0
  %1213 = vmatpush1.msra.mxu0 0.0
  %1214 = vmatprep.subr.mxu0 0.0
  %1215 = vmatpush1.msra.mxu0 0.0
  %1216 = vmatprep.mubr.f32.mxu0 0.0
  %1217 = vmatmul.mubr.f32.gmra.mrb[0].mxu0 %v778
  %v1218 = vpop.f32.mrb[0].mxu0
  %v1219 = vadd.f32 0.0, %v1218
  %v1220 = vpop.f32.mrb[0].mxu0
  %1221 = vmatprep.mubr.f32.mxu0 0.0
  %1222 = vmatmul.mubr.f32.gmra.mrb[0].mxu0 %v781
  %v1223 = vpop.f32.mrb[0].mxu0
  %v1224 = vadd.f32 0.0, %v1223
  %v1225 = vpop.f32.mrb[0].mxu0
  %1226 = vmatprep.mubr.f32.mxu0 0.0
  %1227 = vmatmul.mubr.f32.gmra.mrb[0].mxu0 %v784
  %v1228 = vpop.f32.mrb[0].mxu0
  %v1229 = vadd.f32 0.0, %v1228
  %v1230 = vpop.f32.mrb[0].mxu0
  %1231 = vmatprep.mubr.f32.mxu0 0.0
  %1232 = vmatmul.mubr.f32.gmra.mrb[0].mxu0 %v787
  %v1233 = vpop.f32.mrb[0].mxu0
  %v1234 = vadd.f32 0.0, %v1233
  %v1235 = vpop.f32.mrb[0].mxu0
  %1236 = vmatprep.mubr.f32.mxu0 0.0
  %1237 = vmatmul.mubr.f32.gmra.mrb[0].mxu0 %v790
  %v1238 = vpop.f32.mrb[0].mxu0
  %v1239 = vadd.f32 0.0, %v1238
  %v1240 = vpop.f32.mrb[0].mxu0
  %1241 = vmatprep.mubr.f32.mxu0 0.0
  %1242 = vmatmul.mubr.f32.gmra.mrb[0].mxu0 %v793
  %v1243 = vpop.f32.mrb[0].mxu0
  %v1244 = vadd.f32 0.0, %v1243
  %v1245 = vpop.f32.mrb[0].mxu0
  %1246 = vmatprep.mubr.f32.mxu0 0.0
  %1247 = vmatmul.mubr.f32.gmra.mrb[0].mxu0 %v796
  %v1248 = vpop.f32.mrb[0].mxu0
  %v1249 = vadd.f32 0.0, %v1248
  %v1250 = vpop.f32.mrb[0].mxu0
  %1251 = vmatprep.mubr.f32.mxu0 0.0
  %1252 = vmatmul.mubr.f32.gmra.mrb[0].mxu0 %v799
  %v1253 = vpop.f32.mrb[0].mxu0
  %v1254 = vadd.f32 0.0, %v1253
  %v1255 = vpop.f32.mrb[0].mxu0
  %1256 = vmatprep.mubr.f32.mxu0 0.0
  %1257 = vmatmul.mubr.f32.gmra.mrb[0].mxu0 %v802
  %v1258 = vpop.f32.mrb[0].mxu0
  %v1259 = vadd.f32 0.0, %v1258
  %v1260 = vpop.f32.mrb[0].mxu0
  %1261 = vmatprep.mubr.f32.mxu0 0.0
  %1262 = vmatmul.mubr.f32.gmra.mrb[0].mxu0 %v805
  %v1263 = vpop.f32.mrb[0].mxu0
  %v1264 = vadd.f32 0.0, %v1263
  %v1265 = vpop.f32.mrb[0].mxu0
  %1266 = vmatprep.mubr.f32.mxu0 0.0
  %1267 = vmatmul.mubr.f32.gmra.mrb[0].mxu0 %v808
  %v1268 = vpop.f32.mrb[0].mxu0
  %v1269 = vadd.f32 0.0, %v1268
  %v1270 = vpop.f32.mrb[0].mxu0
  %1271 = vmatprep.mubr.f32.mxu0 0.0
  %1272 = vmatmul.mubr.f32.gmra.mrb[0].mxu0 %v811
  %v1273 = vpop.f32.mrb[0].mxu0
  %v1274 = vadd.f32 0.0, %v1273
  %v1275 = vpop.f32.mrb[0].mxu0
  %1276 = vmatprep.mubr.f32.mxu0 0.0
  %1277 = vmatmul.mubr.f32.gmra.mrb[0].mxu0 %v814
  %v1278 = vpop.f32.mrb[0].mxu0
  %v1279 = vadd.f32 0.0, %v1278
  %v1280 = vpop.f32.mrb[0].mxu0
  %1281 = vmatprep.mubr.f32.mxu0 0.0
  %1282 = vmatmul.mubr.f32.gmra.mrb[0].mxu0 %v817
  %v1283 = vpop.f32.mrb[0].mxu0
  %v1284 = vadd.f32 0.0, %v1283
  %v1285 = vpop.f32.mrb[0].mxu0
  %1286 = vmatprep.mubr.f32.mxu0 0.0
  %1287 = vmatmul.mubr.f32.gmra.mrb[0].mxu0 %v820
  %v1288 = vpop.f32.mrb[0].mxu0
  %v1289 = vadd.f32 0.0, %v1288
  %v1290 = vpop.f32.mrb[0].mxu0
  %1291 = vmatprep.mubr.f32.mxu0 0.0
  %1292 = vmatmul.mubr.f32.gmra.mrb[0].mxu0 %v823
  %v1293 = vpop.f32.mrb[0].mxu0
  %v1294 = vadd.f32 0.0, %v1293
  %v1295 = vpop.f32.mrb[0].mxu0
  %1296 = vdwg.mxu0
  %v1297 = vrot.slane %v1219, 2
  %v1298 = vrot.slane %v1224, 2
  %v1299 = vrot.slane %v1229, 2
  %v1300 = vrot.slane %v1234, 2
  %v1301 = vrot.slane %v1239, 2
  %v1302 = vrot.slane %v1244, 2
  %v1303 = vrot.slane %v1249, 2
  %v1304 = vrot.slane %v1254, 2
  %v1305 = vrot.slane %v1259, 2
  %v1306 = vrot.slane %v1264, 2
  %v1307 = vrot.slane %v1269, 2
  %v1308 = vrot.slane %v1274, 2
  %v1309 = vrot.slane %v1279, 2
  %v1310 = vrot.slane %v1284, 2
  %v1311 = vrot.slane %v1289, 2
  %v1312 = vrot.slane %v1294, 2
  %v1313 = vsel %vm629, %v1311, %v1312
  %v1314 = vsel %vm629, %v1310, %v1311
  %v1315 = vsel %vm629, %v1309, %v1310
  %v1316 = vsel %vm629, %v1308, %v1309
  %v1317 = vsel %vm629, %v1307, %v1308
  %v1318 = vsel %vm629, %v1306, %v1307
  %v1319 = vsel %vm629, %v1305, %v1306
  %v1320 = vsel %vm629, %v1304, %v1305
  %v1321 = vsel %vm629, %v1303, %v1304
  %v1322 = vsel %vm629, %v1302, %v1303
  %v1323 = vsel %vm629, %v1301, %v1302
  %v1324 = vsel %vm629, %v1300, %v1301
  %v1325 = vsel %vm629, %v1299, %v1300
  %v1326 = vsel %vm629, %v1298, %v1299
  %v1327 = vsel %vm629, %v1297, %v1298
  %v1328 = vsel %vm629, %v1312, %v1297
  %v1329 = vadd.f32 %v1069, %v1327
  %v1330 = vadd.f32 %v1074, %v1326
  %v1331 = vadd.f32 %v1079, %v1325
  %v1332 = vadd.f32 %v1084, %v1324
  %v1333 = vadd.f32 %v1089, %v1323
  %v1334 = vadd.f32 %v1094, %v1322
  %v1335 = vadd.f32 %v1099, %v1321
  %v1336 = vadd.f32 %v1104, %v1320
  %v1337 = vadd.f32 %v1109, %v1319
  %v1338 = vadd.f32 %v1114, %v1318
  %v1339 = vadd.f32 %v1119, %v1317
  %v1340 = vadd.f32 %v1124, %v1316
  %v1341 = vadd.f32 %v1129, %v1315
  %v1342 = vadd.f32 %v1134, %v1314
  %v1343 = vadd.f32 %v1139, %v1313
  %v1344 = vadd.f32 %v1144, %v1328
  %vm1345 = vcmp.lt.s32.totalorder %v50, 10
  %vm1346 = vcmp.lt.s32.totalorder %v51, 10
  %vm1347 = vcmp.lt.s32.totalorder %v52, 10
  %vm1348 = vcmp.lt.s32.totalorder %v53, 10
  %vm1349 = vcmp.lt.s32.totalorder %v54, 10
  %vm1350 = vcmp.lt.s32.totalorder %v55, 10
  %vm1351 = vcmp.lt.s32.totalorder %v56, 10
  %vm1352 = vcmp.lt.s32.totalorder %v57, 10
  %vm1353 = vcmp.lt.s32.totalorder %v58, 10
  %vm1354 = vcmp.lt.s32.totalorder %v59, 10
  %vm1355 = vcmp.lt.s32.totalorder %v60, 10
  %vm1356 = vcmp.lt.s32.totalorder %v61, 10
  %vm1357 = vcmp.lt.s32.totalorder %v62, 10
  %vm1358 = vcmp.lt.s32.totalorder %v63, 10
  %vm1359 = vcmp.lt.s32.totalorder %v64, 10
  %vm1360 = vcmp.lt.s32.totalorder %v65, 10
  %v1361 = vsel %vm1345, %v1329, -3e+38
  %v1362 = vsel %vm1346, %v1330, -3e+38
  %v1363 = vsel %vm1347, %v1331, -3e+38
  %v1364 = vsel %vm1348, %v1332, -3e+38
  %v1365 = vsel %vm1349, %v1333, -3e+38
  %v1366 = vsel %vm1350, %v1334, -3e+38
  %v1367 = vsel %vm1351, %v1335, -3e+38
  %v1368 = vsel %vm1352, %v1336, -3e+38
  %v1369 = vsel %vm1353, %v1337, -3e+38
  %v1370 = vsel %vm1354, %v1338, -3e+38
  %v1371 = vsel %vm1355, %v1339, -3e+38
  %v1372 = vsel %vm1356, %v1340, -3e+38
  %v1373 = vsel %vm1357, %v1341, -3e+38
  %v1374 = vsel %vm1358, %v1342, -3e+38
  %v1375 = vsel %vm1359, %v1343, -3e+38
  %v1376 = vsel %vm1360, %v1344, -3e+38
  %v1377 = vmax.f32 %v1361, %v1362
  %v1378 = vrot.slane %v1377, 4
  %v1379 = vmax.f32 %v1377, %v1378
  %v1380 = vrot.slane %v1379, 2
  %v1381 = vmax.f32 %v1379, %v1380
  %v1382 = vrot.slane %v1381, 1
  %v1383 = vmax.f32 %v1381, %v1382
  %v1384 = vmax.f32 %v1363, %v1364
  %v1385 = vrot.slane %v1384, 4
  %v1386 = vmax.f32 %v1384, %v1385
  %v1387 = vrot.slane %v1386, 2
  %v1388 = vmax.f32 %v1386, %v1387
  %v1389 = vrot.slane %v1388, 1
  %v1390 = vmax.f32 %v1388, %v1389
  %v1391 = vmax.f32 %v1365, %v1366
  %v1392 = vrot.slane %v1391, 4
  %v1393 = vmax.f32 %v1391, %v1392
  %v1394 = vrot.slane %v1393, 2
  %v1395 = vmax.f32 %v1393, %v1394
  %v1396 = vrot.slane %v1395, 1
  %v1397 = vmax.f32 %v1395, %v1396
  %v1398 = vmax.f32 %v1367, %v1368
  %v1399 = vrot.slane %v1398, 4
  %v1400 = vmax.f32 %v1398, %v1399
  %v1401 = vrot.slane %v1400, 2
  %v1402 = vmax.f32 %v1400, %v1401
  %v1403 = vrot.slane %v1402, 1
  %v1404 = vmax.f32 %v1402, %v1403
  %v1405 = vmax.f32 %v1369, %v1370
  %v1406 = vrot.slane %v1405, 4
  %v1407 = vmax.f32 %v1405, %v1406
  %v1408 = vrot.slane %v1407, 2
  %v1409 = vmax.f32 %v1407, %v1408
  %v1410 = vrot.slane %v1409, 1
  %v1411 = vmax.f32 %v1409, %v1410
  %v1412 = vmax.f32 %v1371, %v1372
  %v1413 = vrot.slane %v1412, 4
  %v1414 = vmax.f32 %v1412, %v1413
  %v1415 = vrot.slane %v1414, 2
  %v1416 = vmax.f32 %v1414, %v1415
  %v1417 = vrot.slane %v1416, 1
  %v1418 = vmax.f32 %v1416, %v1417
  %v1419 = vmax.f32 %v1373, %v1374
  %v1420 = vrot.slane %v1419, 4
  %v1421 = vmax.f32 %v1419, %v1420
  %v1422 = vrot.slane %v1421, 2
  %v1423 = vmax.f32 %v1421, %v1422
  %v1424 = vrot.slane %v1423, 1
  %v1425 = vmax.f32 %v1423, %v1424
  %v1426 = vmax.f32 %v1375, %v1376
  %v1427 = vrot.slane %v1426, 4
  %v1428 = vmax.f32 %v1426, %v1427
  %v1429 = vrot.slane %v1428, 2
  %v1430 = vmax.f32 %v1428, %v1429
  %v1431 = vrot.slane %v1430, 1
  %v1432 = vmax.f32 %v1430, %v1431
  %v1433 = vadd.f32 %v700, %v1383
  %v1434 = vadd.f32 %v707, %v1390
  %v1435 = vadd.f32 %v714, %v1397
  %v1436 = vadd.f32 %v721, %v1404
  %v1437 = vadd.f32 %v728, %v1411
  %v1438 = vadd.f32 %v735, %v1418
  %v1439 = vadd.f32 %v742, %v1425
  %v1440 = vadd.f32 %v749, %v1432
  %s1441 = scalar_lea.vmem %s0, 256
  %v1442 = vld [vmem:[%s1441] sm:$0xff]
  %v1443 = vld [vmem:[%s1441 + $0x8] sm:$0xff]
  %v1444 = vld [vmem:[%s1441 + $0x10] sm:$0xff]
  %v1445 = vld [vmem:[%s1441 + $0x18] sm:$0xff]
  %v1446 = vld [vmem:[%s1441 + $0x20] sm:$0xff]
  %v1447 = vld [vmem:[%s1441 + $0x28] sm:$0xff]
  %v1448 = vld [vmem:[%s1441 + $0x30] sm:$0xff]
  %v1449 = vld [vmem:[%s1441 + $0x38] sm:$0xff]
  %v1450 = vld [vmem:[%s1441 + $0x40] sm:$0xff]
  %v1451 = vld [vmem:[%s1441 + $0x48] sm:$0xff]
  %v1452 = vld [vmem:[%s1441 + $0x50] sm:$0xff]
  %v1453 = vld [vmem:[%s1441 + $0x58] sm:$0xff]
  %v1454 = vld [vmem:[%s1441 + $0x60] sm:$0xff]
  %v1455 = vld [vmem:[%s1441 + $0x68] sm:$0xff]
  %v1456 = vld [vmem:[%s1441 + $0x70] sm:$0xff]
  %v1457 = vld [vmem:[%s1441 + $0x78] sm:$0xff]
  %s1458 = scalar_lea.vmem %s1, 192
  %v1459 = vld [vmem:[%s1458] sm:$0xff]
  %v1460 = vld [vmem:[%s1458 + $0x8] sm:$0xff]
  %v1461 = vld [vmem:[%s1458 + $0x10] sm:$0xff]
  %v1462 = vld [vmem:[%s1458 + $0x18] sm:$0xff]
  %s1463 = scalar_lea.vmem %s1, 224
  %v1464 = vld [vmem:[%s1463] sm:$0xff]
  %v1465 = vld [vmem:[%s1463 + $0x8] sm:$0xff]
  %v1466 = vld [vmem:[%s1463 + $0x10] sm:$0xff]
  %v1467 = vld [vmem:[%s1463 + $0x18] sm:$0xff]
  %v1469 = vsel %vm91, %v1442, 0
  %v1472 = vsel %vm91, %v1443, 0
  %v1475 = vsel %vm91, %v1444, 0
  %v1478 = vsel %vm91, %v1445, 0
  %v1481 = vsel %vm91, %v1446, 0
  %v1484 = vsel %vm91, %v1447, 0
  %v1487 = vsel %vm91, %v1448, 0
  %v1490 = vsel %vm91, %v1449, 0
  %v1493 = vsel %vm91, %v1450, 0
  %v1496 = vsel %vm91, %v1451, 0
  %v1499 = vsel %vm91, %v1452, 0
  %v1502 = vsel %vm91, %v1453, 0
  %v1505 = vsel %vm91, %v1454, 0
  %v1508 = vsel %vm91, %v1455, 0
  %v1511 = vsel %vm91, %v1456, 0
  %v1514 = vsel %vm91, %v1457, 0
  %1516 = vmatprep.subr.mxu0 0.0
  %1517 = vmatpush1.msra.mxu0 %v1464
  %1518 = vmatprep.subr.mxu0 0.0
  %1519 = vmatpush1.msra.mxu0 %v1465
  %1520 = vmatprep.subr.mxu0 0.0
  %1521 = vmatpush1.msra.mxu0 %v1466
  %1522 = vmatprep.subr.mxu0 0.0
  %1523 = vmatpush1.msra.mxu0 %v1467
  %1524 = vmatprep.subr.mxu0 0.0
  %1525 = vmatpush1.msra.mxu0 0.0
  %1526 = vmatprep.subr.mxu0 0.0
  %1527 = vmatpush1.msra.mxu0 0.0
  %1528 = vmatprep.subr.mxu0 0.0
  %1529 = vmatpush1.msra.mxu0 0.0
  %1530 = vmatprep.subr.mxu0 0.0
  %1531 = vmatpush1.msra.mxu0 0.0
  %1532 = vmatprep.subr.mxu0 0.0
  %1533 = vmatpush1.msra.mxu0 0.0
  %1534 = vmatprep.subr.mxu0 0.0
  %1535 = vmatpush1.msra.mxu0 0.0
  %1536 = vmatprep.subr.mxu0 0.0
  %1537 = vmatpush1.msra.mxu0 0.0
  %1538 = vmatprep.subr.mxu0 0.0
  %1539 = vmatpush1.msra.mxu0 0.0
  %1540 = vmatprep.subr.mxu0 0.0
  %1541 = vmatpush1.msra.mxu0 0.0
  %1542 = vmatprep.subr.mxu0 0.0
  %1543 = vmatpush1.msra.mxu0 0.0
  %1544 = vmatprep.subr.mxu0 0.0
  %1545 = vmatpush1.msra.mxu0 0.0
  %1546 = vmatprep.subr.mxu0 0.0
  %1547 = vmatpush1.msra.mxu0 0.0
  %1548 = vmatprep.subr.mxu0 0.0
  %1549 = vmatpush1.msra.mxu0 0.0
  %1550 = vmatprep.subr.mxu0 0.0
  %1551 = vmatpush1.msra.mxu0 0.0
  %1552 = vmatprep.subr.mxu0 0.0
  %1553 = vmatpush1.msra.mxu0 0.0
  %1554 = vmatprep.subr.mxu0 0.0
  %1555 = vmatpush1.msra.mxu0 0.0
  %1556 = vmatprep.subr.mxu0 0.0
  %1557 = vmatpush1.msra.mxu0 0.0
  %1558 = vmatprep.subr.mxu0 0.0
  %1559 = vmatpush1.msra.mxu0 0.0
  %1560 = vmatprep.subr.mxu0 0.0
  %1561 = vmatpush1.msra.mxu0 0.0
  %1562 = vmatprep.subr.mxu0 0.0
  %1563 = vmatpush1.msra.mxu0 0.0
  %1564 = vmatprep.subr.mxu0 0.0
  %1565 = vmatpush1.msra.mxu0 0.0
  %1566 = vmatprep.subr.mxu0 0.0
  %1567 = vmatpush1.msra.mxu0 0.0
  %1568 = vmatprep.subr.mxu0 0.0
  %1569 = vmatpush1.msra.mxu0 0.0
  %1570 = vmatprep.subr.mxu0 0.0
  %1571 = vmatpush1.msra.mxu0 0.0
  %1572 = vmatprep.subr.mxu0 0.0
  %1573 = vmatpush1.msra.mxu0 0.0
  %1574 = vmatprep.subr.mxu0 0.0
  %1575 = vmatpush1.msra.mxu0 0.0
  %1576 = vmatprep.subr.mxu0 0.0
  %1577 = vmatpush1.msra.mxu0 0.0
  %1578 = vmatprep.subr.mxu0 0.0
  %1579 = vmatpush1.msra.mxu0 0.0
  %1580 = vmatprep.mubr.f32.mxu0 0.0
  %1581 = vmatmul.mubr.f32.gmra.mrb[0].mxu0 %v1469
  %v1582 = vpop.f32.mrb[0].mxu0
  %v1583 = vadd.f32 0.0, %v1582
  %v1584 = vpop.f32.mrb[0].mxu0
  %1585 = vmatprep.mubr.f32.mxu0 0.0
  %1586 = vmatmul.mubr.f32.gmra.mrb[0].mxu0 %v1472
  %v1587 = vpop.f32.mrb[0].mxu0
  %v1588 = vadd.f32 0.0, %v1587
  %v1589 = vpop.f32.mrb[0].mxu0
  %1590 = vmatprep.mubr.f32.mxu0 0.0
  %1591 = vmatmul.mubr.f32.gmra.mrb[0].mxu0 %v1475
  %v1592 = vpop.f32.mrb[0].mxu0
  %v1593 = vadd.f32 0.0, %v1592
  %v1594 = vpop.f32.mrb[0].mxu0
  %1595 = vmatprep.mubr.f32.mxu0 0.0
  %1596 = vmatmul.mubr.f32.gmra.mrb[0].mxu0 %v1478
  %v1597 = vpop.f32.mrb[0].mxu0
  %v1598 = vadd.f32 0.0, %v1597
  %v1599 = vpop.f32.mrb[0].mxu0
  %1600 = vmatprep.mubr.f32.mxu0 0.0
  %1601 = vmatmul.mubr.f32.gmra.mrb[0].mxu0 %v1481
  %v1602 = vpop.f32.mrb[0].mxu0
  %v1603 = vadd.f32 0.0, %v1602
  %v1604 = vpop.f32.mrb[0].mxu0
  %1605 = vmatprep.mubr.f32.mxu0 0.0
  %1606 = vmatmul.mubr.f32.gmra.mrb[0].mxu0 %v1484
  %v1607 = vpop.f32.mrb[0].mxu0
  %v1608 = vadd.f32 0.0, %v1607
  %v1609 = vpop.f32.mrb[0].mxu0
  %1610 = vmatprep.mubr.f32.mxu0 0.0
  %1611 = vmatmul.mubr.f32.gmra.mrb[0].mxu0 %v1487
  %v1612 = vpop.f32.mrb[0].mxu0
  %v1613 = vadd.f32 0.0, %v1612
  %v1614 = vpop.f32.mrb[0].mxu0
  %1615 = vmatprep.mubr.f32.mxu0 0.0
  %1616 = vmatmul.mubr.f32.gmra.mrb[0].mxu0 %v1490
  %v1617 = vpop.f32.mrb[0].mxu0
  %v1618 = vadd.f32 0.0, %v1617
  %v1619 = vpop.f32.mrb[0].mxu0
  %1620 = vmatprep.mubr.f32.mxu0 0.0
  %1621 = vmatmul.mubr.f32.gmra.mrb[0].mxu0 %v1493
  %v1622 = vpop.f32.mrb[0].mxu0
  %v1623 = vadd.f32 0.0, %v1622
  %v1624 = vpop.f32.mrb[0].mxu0
  %1625 = vmatprep.mubr.f32.mxu0 0.0
  %1626 = vmatmul.mubr.f32.gmra.mrb[0].mxu0 %v1496
  %v1627 = vpop.f32.mrb[0].mxu0
  %v1628 = vadd.f32 0.0, %v1627
  %v1629 = vpop.f32.mrb[0].mxu0
  %1630 = vmatprep.mubr.f32.mxu0 0.0
  %1631 = vmatmul.mubr.f32.gmra.mrb[0].mxu0 %v1499
  %v1632 = vpop.f32.mrb[0].mxu0
  %v1633 = vadd.f32 0.0, %v1632
  %v1634 = vpop.f32.mrb[0].mxu0
  %1635 = vmatprep.mubr.f32.mxu0 0.0
  %1636 = vmatmul.mubr.f32.gmra.mrb[0].mxu0 %v1502
  %v1637 = vpop.f32.mrb[0].mxu0
  %v1638 = vadd.f32 0.0, %v1637
  %v1639 = vpop.f32.mrb[0].mxu0
  %1640 = vmatprep.mubr.f32.mxu0 0.0
  %1641 = vmatmul.mubr.f32.gmra.mrb[0].mxu0 %v1505
  %v1642 = vpop.f32.mrb[0].mxu0
  %v1643 = vadd.f32 0.0, %v1642
  %v1644 = vpop.f32.mrb[0].mxu0
  %1645 = vmatprep.mubr.f32.mxu0 0.0
  %1646 = vmatmul.mubr.f32.gmra.mrb[0].mxu0 %v1508
  %v1647 = vpop.f32.mrb[0].mxu0
  %v1648 = vadd.f32 0.0, %v1647
  %v1649 = vpop.f32.mrb[0].mxu0
  %1650 = vmatprep.mubr.f32.mxu0 0.0
  %1651 = vmatmul.mubr.f32.gmra.mrb[0].mxu0 %v1511
  %v1652 = vpop.f32.mrb[0].mxu0
  %v1653 = vadd.f32 0.0, %v1652
  %v1654 = vpop.f32.mrb[0].mxu0
  %1655 = vmatprep.mubr.f32.mxu0 0.0
  %1656 = vmatmul.mubr.f32.gmra.mrb[0].mxu0 %v1514
  %v1657 = vpop.f32.mrb[0].mxu0
  %v1658 = vadd.f32 0.0, %v1657
  %v1659 = vpop.f32.mrb[0].mxu0
  %1660 = vdwg.mxu0
  %v1661 = vrot.slane %v1583, 1
  %v1662 = vrot.slane %v1588, 1
  %v1663 = vrot.slane %v1593, 1
  %v1664 = vrot.slane %v1598, 1
  %v1665 = vrot.slane %v1603, 1
  %v1666 = vrot.slane %v1608, 1
  %v1667 = vrot.slane %v1613, 1
  %v1668 = vrot.slane %v1618, 1
  %v1669 = vrot.slane %v1623, 1
  %v1670 = vrot.slane %v1628, 1
  %v1671 = vrot.slane %v1633, 1
  %v1672 = vrot.slane %v1638, 1
  %v1673 = vrot.slane %v1643, 1
  %v1674 = vrot.slane %v1648, 1
  %v1675 = vrot.slane %v1653, 1
  %v1676 = vrot.slane %v1658, 1
  %v1677 = vsel %vm301, %v1675, %v1676
  %v1678 = vsel %vm301, %v1674, %v1675
  %v1679 = vsel %vm301, %v1673, %v1674
  %v1680 = vsel %vm301, %v1672, %v1673
  %v1681 = vsel %vm301, %v1671, %v1672
  %v1682 = vsel %vm301, %v1670, %v1671
  %v1683 = vsel %vm301, %v1669, %v1670
  %v1684 = vsel %vm301, %v1668, %v1669
  %v1685 = vsel %vm301, %v1667, %v1668
  %v1686 = vsel %vm301, %v1666, %v1667
  %v1687 = vsel %vm301, %v1665, %v1666
  %v1688 = vsel %vm301, %v1664, %v1665
  %v1689 = vsel %vm301, %v1663, %v1664
  %v1690 = vsel %vm301, %v1662, %v1663
  %v1691 = vsel %vm301, %v1661, %v1662
  %v1692 = vsel %vm301, %v1676, %v1661
  %1693 = vmatprep.subr.mxu0 0.0
  %1694 = vmatpush1.msra.mxu0 %v1459
  %1695 = vmatprep.subr.mxu0 0.0
  %1696 = vmatpush1.msra.mxu0 %v1460
  %1697 = vmatprep.subr.mxu0 0.0
  %1698 = vmatpush1.msra.mxu0 %v1461
  %1699 = vmatprep.subr.mxu0 0.0
  %1700 = vmatpush1.msra.mxu0 %v1462
  %1701 = vmatprep.subr.mxu0 0.0
  %1702 = vmatpush1.msra.mxu0 0.0
  %1703 = vmatprep.subr.mxu0 0.0
  %1704 = vmatpush1.msra.mxu0 0.0
  %1705 = vmatprep.subr.mxu0 0.0
  %1706 = vmatpush1.msra.mxu0 0.0
  %1707 = vmatprep.subr.mxu0 0.0
  %1708 = vmatpush1.msra.mxu0 0.0
  %1709 = vmatprep.subr.mxu0 0.0
  %1710 = vmatpush1.msra.mxu0 0.0
  %1711 = vmatprep.subr.mxu0 0.0
  %1712 = vmatpush1.msra.mxu0 0.0
  %1713 = vmatprep.subr.mxu0 0.0
  %1714 = vmatpush1.msra.mxu0 0.0
  %1715 = vmatprep.subr.mxu0 0.0
  %1716 = vmatpush1.msra.mxu0 0.0
  %1717 = vmatprep.subr.mxu0 0.0
  %1718 = vmatpush1.msra.mxu0 0.0
  %1719 = vmatprep.subr.mxu0 0.0
  %1720 = vmatpush1.msra.mxu0 0.0
  %1721 = vmatprep.subr.mxu0 0.0
  %1722 = vmatpush1.msra.mxu0 0.0
  %1723 = vmatprep.subr.mxu0 0.0
  %1724 = vmatpush1.msra.mxu0 0.0
  %1725 = vmatprep.subr.mxu0 0.0
  %1726 = vmatpush1.msra.mxu0 0.0
  %1727 = vmatprep.subr.mxu0 0.0
  %1728 = vmatpush1.msra.mxu0 0.0
  %1729 = vmatprep.subr.mxu0 0.0
  %1730 = vmatpush1.msra.mxu0 0.0
  %1731 = vmatprep.subr.mxu0 0.0
  %1732 = vmatpush1.msra.mxu0 0.0
  %1733 = vmatprep.subr.mxu0 0.0
  %1734 = vmatpush1.msra.mxu0 0.0
  %1735 = vmatprep.subr.mxu0 0.0
  %1736 = vmatpush1.msra.mxu0 0.0
  %1737 = vmatprep.subr.mxu0 0.0
  %1738 = vmatpush1.msra.mxu0 0.0
  %1739 = vmatprep.subr.mxu0 0.0
  %1740 = vmatpush1.msra.mxu0 0.0
  %1741 = vmatprep.subr.mxu0 0.0
  %1742 = vmatpush1.msra.mxu0 0.0
  %1743 = vmatprep.subr.mxu0 0.0
  %1744 = vmatpush1.msra.mxu0 0.0
  %1745 = vmatprep.subr.mxu0 0.0
  %1746 = vmatpush1.msra.mxu0 0.0
  %1747 = vmatprep.subr.mxu0 0.0
  %1748 = vmatpush1.msra.mxu0 0.0
  %1749 = vmatprep.subr.mxu0 0.0
  %1750 = vmatpush1.msra.mxu0 0.0
  %1751 = vmatprep.subr.mxu0 0.0
  %1752 = vmatpush1.msra.mxu0 0.0
  %1753 = vmatprep.subr.mxu0 0.0
  %1754 = vmatpush1.msra.mxu0 0.0
  %1755 = vmatprep.subr.mxu0 0.0
  %1756 = vmatpush1.msra.mxu0 0.0
  %1757 = vmatprep.mubr.f32.mxu0 0.0
  %1758 = vmatmul.mubr.f32.gmra.mrb[0].mxu0 %v1469
  %v1759 = vpop.f32.mrb[0].mxu0
  %v1760 = vadd.f32 %v1691, %v1759
  %v1761 = vpop.f32.mrb[0].mxu0
  %1762 = vmatprep.mubr.f32.mxu0 0.0
  %1763 = vmatmul.mubr.f32.gmra.mrb[0].mxu0 %v1472
  %v1764 = vpop.f32.mrb[0].mxu0
  %v1765 = vadd.f32 %v1690, %v1764
  %v1766 = vpop.f32.mrb[0].mxu0
  %1767 = vmatprep.mubr.f32.mxu0 0.0
  %1768 = vmatmul.mubr.f32.gmra.mrb[0].mxu0 %v1475
  %v1769 = vpop.f32.mrb[0].mxu0
  %v1770 = vadd.f32 %v1689, %v1769
  %v1771 = vpop.f32.mrb[0].mxu0
  %1772 = vmatprep.mubr.f32.mxu0 0.0
  %1773 = vmatmul.mubr.f32.gmra.mrb[0].mxu0 %v1478
  %v1774 = vpop.f32.mrb[0].mxu0
  %v1775 = vadd.f32 %v1688, %v1774
  %v1776 = vpop.f32.mrb[0].mxu0
  %1777 = vmatprep.mubr.f32.mxu0 0.0
  %1778 = vmatmul.mubr.f32.gmra.mrb[0].mxu0 %v1481
  %v1779 = vpop.f32.mrb[0].mxu0
  %v1780 = vadd.f32 %v1687, %v1779
  %v1781 = vpop.f32.mrb[0].mxu0
  %1782 = vmatprep.mubr.f32.mxu0 0.0
  %1783 = vmatmul.mubr.f32.gmra.mrb[0].mxu0 %v1484
  %v1784 = vpop.f32.mrb[0].mxu0
  %v1785 = vadd.f32 %v1686, %v1784
  %v1786 = vpop.f32.mrb[0].mxu0
  %1787 = vmatprep.mubr.f32.mxu0 0.0
  %1788 = vmatmul.mubr.f32.gmra.mrb[0].mxu0 %v1487
  %v1789 = vpop.f32.mrb[0].mxu0
  %v1790 = vadd.f32 %v1685, %v1789
  %v1791 = vpop.f32.mrb[0].mxu0
  %1792 = vmatprep.mubr.f32.mxu0 0.0
  %1793 = vmatmul.mubr.f32.gmra.mrb[0].mxu0 %v1490
  %v1794 = vpop.f32.mrb[0].mxu0
  %v1795 = vadd.f32 %v1684, %v1794
  %v1796 = vpop.f32.mrb[0].mxu0
  %1797 = vmatprep.mubr.f32.mxu0 0.0
  %1798 = vmatmul.mubr.f32.gmra.mrb[0].mxu0 %v1493
  %v1799 = vpop.f32.mrb[0].mxu0
  %v1800 = vadd.f32 %v1683, %v1799
  %v1801 = vpop.f32.mrb[0].mxu0
  %1802 = vmatprep.mubr.f32.mxu0 0.0
  %1803 = vmatmul.mubr.f32.gmra.mrb[0].mxu0 %v1496
  %v1804 = vpop.f32.mrb[0].mxu0
  %v1805 = vadd.f32 %v1682, %v1804
  %v1806 = vpop.f32.mrb[0].mxu0
  %1807 = vmatprep.mubr.f32.mxu0 0.0
  %1808 = vmatmul.mubr.f32.gmra.mrb[0].mxu0 %v1499
  %v1809 = vpop.f32.mrb[0].mxu0
  %v1810 = vadd.f32 %v1681, %v1809
  %v1811 = vpop.f32.mrb[0].mxu0
  %1812 = vmatprep.mubr.f32.mxu0 0.0
  %1813 = vmatmul.mubr.f32.gmra.mrb[0].mxu0 %v1502
  %v1814 = vpop.f32.mrb[0].mxu0
  %v1815 = vadd.f32 %v1680, %v1814
  %v1816 = vpop.f32.mrb[0].mxu0
  %1817 = vmatprep.mubr.f32.mxu0 0.0
  %1818 = vmatmul.mubr.f32.gmra.mrb[0].mxu0 %v1505
  %v1819 = vpop.f32.mrb[0].mxu0
  %v1820 = vadd.f32 %v1679, %v1819
  %v1821 = vpop.f32.mrb[0].mxu0
  %1822 = vmatprep.mubr.f32.mxu0 0.0
  %1823 = vmatmul.mubr.f32.gmra.mrb[0].mxu0 %v1508
  %v1824 = vpop.f32.mrb[0].mxu0
  %v1825 = vadd.f32 %v1678, %v1824
  %v1826 = vpop.f32.mrb[0].mxu0
  %1827 = vmatprep.mubr.f32.mxu0 0.0
  %1828 = vmatmul.mubr.f32.gmra.mrb[0].mxu0 %v1511
  %v1829 = vpop.f32.mrb[0].mxu0
  %v1830 = vadd.f32 %v1677, %v1829
  %v1831 = vpop.f32.mrb[0].mxu0
  %1832 = vmatprep.mubr.f32.mxu0 0.0
  %1833 = vmatmul.mubr.f32.gmra.mrb[0].mxu0 %v1514
  %v1834 = vpop.f32.mrb[0].mxu0
  %v1835 = vadd.f32 %v1692, %v1834
  %v1836 = vpop.f32.mrb[0].mxu0
  %1837 = vdwg.mxu0
  %s1838 = scalar_lea.vmem %s1, 256
  %v1839 = vld [vmem:[%s1838] sm:$0xff]
  %v1840 = vld [vmem:[%s1838 + $0x8] sm:$0xff]
  %v1841 = vld [vmem:[%s1838 + $0x10] sm:$0xff]
  %v1842 = vld [vmem:[%s1838 + $0x18] sm:$0xff]
  %1843 = vmatprep.subr.mxu0 0.0
  %1844 = vmatpush1.msra.mxu0 %v1839
  %1845 = vmatprep.subr.mxu0 0.0
  %1846 = vmatpush1.msra.mxu0 %v1840
  %1847 = vmatprep.subr.mxu0 0.0
  %1848 = vmatpush1.msra.mxu0 %v1841
  %1849 = vmatprep.subr.mxu0 0.0
  %1850 = vmatpush1.msra.mxu0 %v1842
  %1851 = vmatprep.subr.mxu0 0.0
  %1852 = vmatpush1.msra.mxu0 0.0
  %1853 = vmatprep.subr.mxu0 0.0
  %1854 = vmatpush1.msra.mxu0 0.0
  %1855 = vmatprep.subr.mxu0 0.0
  %1856 = vmatpush1.msra.mxu0 0.0
  %1857 = vmatprep.subr.mxu0 0.0
  %1858 = vmatpush1.msra.mxu0 0.0
  %1859 = vmatprep.subr.mxu0 0.0
  %1860 = vmatpush1.msra.mxu0 0.0
  %1861 = vmatprep.subr.mxu0 0.0
  %1862 = vmatpush1.msra.mxu0 0.0
  %1863 = vmatprep.subr.mxu0 0.0
  %1864 = vmatpush1.msra.mxu0 0.0
  %1865 = vmatprep.subr.mxu0 0.0
  %1866 = vmatpush1.msra.mxu0 0.0
  %1867 = vmatprep.subr.mxu0 0.0
  %1868 = vmatpush1.msra.mxu0 0.0
  %1869 = vmatprep.subr.mxu0 0.0
  %1870 = vmatpush1.msra.mxu0 0.0
  %1871 = vmatprep.subr.mxu0 0.0
  %1872 = vmatpush1.msra.mxu0 0.0
  %1873 = vmatprep.subr.mxu0 0.0
  %1874 = vmatpush1.msra.mxu0 0.0
  %1875 = vmatprep.subr.mxu0 0.0
  %1876 = vmatpush1.msra.mxu0 0.0
  %1877 = vmatprep.subr.mxu0 0.0
  %1878 = vmatpush1.msra.mxu0 0.0
  %1879 = vmatprep.subr.mxu0 0.0
  %1880 = vmatpush1.msra.mxu0 0.0
  %1881 = vmatprep.subr.mxu0 0.0
  %1882 = vmatpush1.msra.mxu0 0.0
  %1883 = vmatprep.subr.mxu0 0.0
  %1884 = vmatpush1.msra.mxu0 0.0
  %1885 = vmatprep.subr.mxu0 0.0
  %1886 = vmatpush1.msra.mxu0 0.0
  %1887 = vmatprep.subr.mxu0 0.0
  %1888 = vmatpush1.msra.mxu0 0.0
  %1889 = vmatprep.subr.mxu0 0.0
  %1890 = vmatpush1.msra.mxu0 0.0
  %1891 = vmatprep.subr.mxu0 0.0
  %1892 = vmatpush1.msra.mxu0 0.0
  %1893 = vmatprep.subr.mxu0 0.0
  %1894 = vmatpush1.msra.mxu0 0.0
  %1895 = vmatprep.subr.mxu0 0.0
  %1896 = vmatpush1.msra.mxu0 0.0
  %1897 = vmatprep.subr.mxu0 0.0
  %1898 = vmatpush1.msra.mxu0 0.0
  %1899 = vmatprep.subr.mxu0 0.0
  %1900 = vmatpush1.msra.mxu0 0.0
  %1901 = vmatprep.subr.mxu0 0.0
  %1902 = vmatpush1.msra.mxu0 0.0
  %1903 = vmatprep.subr.mxu0 0.0
  %1904 = vmatpush1.msra.mxu0 0.0
  %1905 = vmatprep.subr.mxu0 0.0
  %1906 = vmatpush1.msra.mxu0 0.0
  %1907 = vmatprep.mubr.f32.mxu0 0.0
  %1908 = vmatmul.mubr.f32.gmra.mrb[0].mxu0 %v1469
  %v1909 = vpop.f32.mrb[0].mxu0
  %v1910 = vadd.f32 0.0, %v1909
  %v1911 = vpop.f32.mrb[0].mxu0
  %1912 = vmatprep.mubr.f32.mxu0 0.0
  %1913 = vmatmul.mubr.f32.gmra.mrb[0].mxu0 %v1472
  %v1914 = vpop.f32.mrb[0].mxu0
  %v1915 = vadd.f32 0.0, %v1914
  %v1916 = vpop.f32.mrb[0].mxu0
  %1917 = vmatprep.mubr.f32.mxu0 0.0
  %1918 = vmatmul.mubr.f32.gmra.mrb[0].mxu0 %v1475
  %v1919 = vpop.f32.mrb[0].mxu0
  %v1920 = vadd.f32 0.0, %v1919
  %v1921 = vpop.f32.mrb[0].mxu0
  %1922 = vmatprep.mubr.f32.mxu0 0.0
  %1923 = vmatmul.mubr.f32.gmra.mrb[0].mxu0 %v1478
  %v1924 = vpop.f32.mrb[0].mxu0
  %v1925 = vadd.f32 0.0, %v1924
  %v1926 = vpop.f32.mrb[0].mxu0
  %1927 = vmatprep.mubr.f32.mxu0 0.0
  %1928 = vmatmul.mubr.f32.gmra.mrb[0].mxu0 %v1481
  %v1929 = vpop.f32.mrb[0].mxu0
  %v1930 = vadd.f32 0.0, %v1929
  %v1931 = vpop.f32.mrb[0].mxu0
  %1932 = vmatprep.mubr.f32.mxu0 0.0
  %1933 = vmatmul.mubr.f32.gmra.mrb[0].mxu0 %v1484
  %v1934 = vpop.f32.mrb[0].mxu0
  %v1935 = vadd.f32 0.0, %v1934
  %v1936 = vpop.f32.mrb[0].mxu0
  %1937 = vmatprep.mubr.f32.mxu0 0.0
  %1938 = vmatmul.mubr.f32.gmra.mrb[0].mxu0 %v1487
  %v1939 = vpop.f32.mrb[0].mxu0
  %v1940 = vadd.f32 0.0, %v1939
  %v1941 = vpop.f32.mrb[0].mxu0
  %1942 = vmatprep.mubr.f32.mxu0 0.0
  %1943 = vmatmul.mubr.f32.gmra.mrb[0].mxu0 %v1490
  %v1944 = vpop.f32.mrb[0].mxu0
  %v1945 = vadd.f32 0.0, %v1944
  %v1946 = vpop.f32.mrb[0].mxu0
  %1947 = vmatprep.mubr.f32.mxu0 0.0
  %1948 = vmatmul.mubr.f32.gmra.mrb[0].mxu0 %v1493
  %v1949 = vpop.f32.mrb[0].mxu0
  %v1950 = vadd.f32 0.0, %v1949
  %v1951 = vpop.f32.mrb[0].mxu0
  %1952 = vmatprep.mubr.f32.mxu0 0.0
  %1953 = vmatmul.mubr.f32.gmra.mrb[0].mxu0 %v1496
  %v1954 = vpop.f32.mrb[0].mxu0
  %v1955 = vadd.f32 0.0, %v1954
  %v1956 = vpop.f32.mrb[0].mxu0
  %1957 = vmatprep.mubr.f32.mxu0 0.0
  %1958 = vmatmul.mubr.f32.gmra.mrb[0].mxu0 %v1499
  %v1959 = vpop.f32.mrb[0].mxu0
  %v1960 = vadd.f32 0.0, %v1959
  %v1961 = vpop.f32.mrb[0].mxu0
  %1962 = vmatprep.mubr.f32.mxu0 0.0
  %1963 = vmatmul.mubr.f32.gmra.mrb[0].mxu0 %v1502
  %v1964 = vpop.f32.mrb[0].mxu0
  %v1965 = vadd.f32 0.0, %v1964
  %v1966 = vpop.f32.mrb[0].mxu0
  %1967 = vmatprep.mubr.f32.mxu0 0.0
  %1968 = vmatmul.mubr.f32.gmra.mrb[0].mxu0 %v1505
  %v1969 = vpop.f32.mrb[0].mxu0
  %v1970 = vadd.f32 0.0, %v1969
  %v1971 = vpop.f32.mrb[0].mxu0
  %1972 = vmatprep.mubr.f32.mxu0 0.0
  %1973 = vmatmul.mubr.f32.gmra.mrb[0].mxu0 %v1508
  %v1974 = vpop.f32.mrb[0].mxu0
  %v1975 = vadd.f32 0.0, %v1974
  %v1976 = vpop.f32.mrb[0].mxu0
  %1977 = vmatprep.mubr.f32.mxu0 0.0
  %1978 = vmatmul.mubr.f32.gmra.mrb[0].mxu0 %v1511
  %v1979 = vpop.f32.mrb[0].mxu0
  %v1980 = vadd.f32 0.0, %v1979
  %v1981 = vpop.f32.mrb[0].mxu0
  %1982 = vmatprep.mubr.f32.mxu0 0.0
  %1983 = vmatmul.mubr.f32.gmra.mrb[0].mxu0 %v1514
  %v1984 = vpop.f32.mrb[0].mxu0
  %v1985 = vadd.f32 0.0, %v1984
  %v1986 = vpop.f32.mrb[0].mxu0
  %1987 = vdwg.mxu0
  %v1988 = vrot.slane %v1910, 2
  %v1989 = vrot.slane %v1915, 2
  %v1990 = vrot.slane %v1920, 2
  %v1991 = vrot.slane %v1925, 2
  %v1992 = vrot.slane %v1930, 2
  %v1993 = vrot.slane %v1935, 2
  %v1994 = vrot.slane %v1940, 2
  %v1995 = vrot.slane %v1945, 2
  %v1996 = vrot.slane %v1950, 2
  %v1997 = vrot.slane %v1955, 2
  %v1998 = vrot.slane %v1960, 2
  %v1999 = vrot.slane %v1965, 2
  %v2000 = vrot.slane %v1970, 2
  %v2001 = vrot.slane %v1975, 2
  %v2002 = vrot.slane %v1980, 2
  %v2003 = vrot.slane %v1985, 2
  %v2004 = vsel %vm629, %v2002, %v2003
  %v2005 = vsel %vm629, %v2001, %v2002
  %v2006 = vsel %vm629, %v2000, %v2001
  %v2007 = vsel %vm629, %v1999, %v2000
  %v2008 = vsel %vm629, %v1998, %v1999
  %v2009 = vsel %vm629, %v1997, %v1998
  %v2010 = vsel %vm629, %v1996, %v1997
  %v2011 = vsel %vm629, %v1995, %v1996
  %v2012 = vsel %vm629, %v1994, %v1995
  %v2013 = vsel %vm629, %v1993, %v1994
  %v2014 = vsel %vm629, %v1992, %v1993
  %v2015 = vsel %vm629, %v1991, %v1992
  %v2016 = vsel %vm629, %v1990, %v1991
  %v2017 = vsel %vm629, %v1989, %v1990
  %v2018 = vsel %vm629, %v1988, %v1989
  %v2019 = vsel %vm629, %v2003, %v1988
  %v2020 = vadd.f32 %v1760, %v2018
  %v2021 = vadd.f32 %v1765, %v2017
  %v2022 = vadd.f32 %v1770, %v2016
  %v2023 = vadd.f32 %v1775, %v2015
  %v2024 = vadd.f32 %v1780, %v2014
  %v2025 = vadd.f32 %v1785, %v2013
  %v2026 = vadd.f32 %v1790, %v2012
  %v2027 = vadd.f32 %v1795, %v2011
  %v2028 = vadd.f32 %v1800, %v2010
  %v2029 = vadd.f32 %v1805, %v2009
  %v2030 = vadd.f32 %v1810, %v2008
  %v2031 = vadd.f32 %v1815, %v2007
  %v2032 = vadd.f32 %v1820, %v2006
  %v2033 = vadd.f32 %v1825, %v2005
  %v2034 = vadd.f32 %v1830, %v2004
  %v2035 = vadd.f32 %v1835, %v2019
  %v2036 = vsel %vm1345, %v2020, -3e+38
  %v2037 = vsel %vm1346, %v2021, -3e+38
  %v2038 = vsel %vm1347, %v2022, -3e+38
  %v2039 = vsel %vm1348, %v2023, -3e+38
  %v2040 = vsel %vm1349, %v2024, -3e+38
  %v2041 = vsel %vm1350, %v2025, -3e+38
  %v2042 = vsel %vm1351, %v2026, -3e+38
  %v2043 = vsel %vm1352, %v2027, -3e+38
  %v2044 = vsel %vm1353, %v2028, -3e+38
  %v2045 = vsel %vm1354, %v2029, -3e+38
  %v2046 = vsel %vm1355, %v2030, -3e+38
  %v2047 = vsel %vm1356, %v2031, -3e+38
  %v2048 = vsel %vm1357, %v2032, -3e+38
  %v2049 = vsel %vm1358, %v2033, -3e+38
  %v2050 = vsel %vm1359, %v2034, -3e+38
  %v2051 = vsel %vm1360, %v2035, -3e+38
  %v2052 = vmax.f32 %v2036, %v2037
  %v2053 = vrot.slane %v2052, 4
  %v2054 = vmax.f32 %v2052, %v2053
  %v2055 = vrot.slane %v2054, 2
  %v2056 = vmax.f32 %v2054, %v2055
  %v2057 = vrot.slane %v2056, 1
  %v2058 = vmax.f32 %v2056, %v2057
  %v2059 = vmax.f32 %v2038, %v2039
  %v2060 = vrot.slane %v2059, 4
  %v2061 = vmax.f32 %v2059, %v2060
  %v2062 = vrot.slane %v2061, 2
  %v2063 = vmax.f32 %v2061, %v2062
  %v2064 = vrot.slane %v2063, 1
  %v2065 = vmax.f32 %v2063, %v2064
  %v2066 = vmax.f32 %v2040, %v2041
  %v2067 = vrot.slane %v2066, 4
  %v2068 = vmax.f32 %v2066, %v2067
  %v2069 = vrot.slane %v2068, 2
  %v2070 = vmax.f32 %v2068, %v2069
  %v2071 = vrot.slane %v2070, 1
  %v2072 = vmax.f32 %v2070, %v2071
  %v2073 = vmax.f32 %v2042, %v2043
  %v2074 = vrot.slane %v2073, 4
  %v2075 = vmax.f32 %v2073, %v2074
  %v2076 = vrot.slane %v2075, 2
  %v2077 = vmax.f32 %v2075, %v2076
  %v2078 = vrot.slane %v2077, 1
  %v2079 = vmax.f32 %v2077, %v2078
  %v2080 = vmax.f32 %v2044, %v2045
  %v2081 = vrot.slane %v2080, 4
  %v2082 = vmax.f32 %v2080, %v2081
  %v2083 = vrot.slane %v2082, 2
  %v2084 = vmax.f32 %v2082, %v2083
  %v2085 = vrot.slane %v2084, 1
  %v2086 = vmax.f32 %v2084, %v2085
  %v2087 = vmax.f32 %v2046, %v2047
  %v2088 = vrot.slane %v2087, 4
  %v2089 = vmax.f32 %v2087, %v2088
  %v2090 = vrot.slane %v2089, 2
  %v2091 = vmax.f32 %v2089, %v2090
  %v2092 = vrot.slane %v2091, 1
  %v2093 = vmax.f32 %v2091, %v2092
  %v2094 = vmax.f32 %v2048, %v2049
  %v2095 = vrot.slane %v2094, 4
  %v2096 = vmax.f32 %v2094, %v2095
  %v2097 = vrot.slane %v2096, 2
  %v2098 = vmax.f32 %v2096, %v2097
  %v2099 = vrot.slane %v2098, 1
  %v2100 = vmax.f32 %v2098, %v2099
  %v2101 = vmax.f32 %v2050, %v2051
  %v2102 = vrot.slane %v2101, 4
  %v2103 = vmax.f32 %v2101, %v2102
  %v2104 = vrot.slane %v2103, 2
  %v2105 = vmax.f32 %v2103, %v2104
  %v2106 = vrot.slane %v2105, 1
  %v2107 = vmax.f32 %v2105, %v2106
  %v2108 = vadd.f32 %v1433, %v2058
  %v2109 = vadd.f32 %v1434, %v2065
  %v2110 = vadd.f32 %v1435, %v2072
  %v2111 = vadd.f32 %v1436, %v2079
  %v2112 = vadd.f32 %v1437, %v2086
  %v2113 = vadd.f32 %v1438, %v2093
  %v2114 = vadd.f32 %v1439, %v2100
  %v2115 = vadd.f32 %v1440, %v2107
  %s2116 = scalar_lea.vmem %s0, 384
  %v2117 = vld [vmem:[%s2116] sm:$0xff]
  %v2118 = vld [vmem:[%s2116 + $0x8] sm:$0xff]
  %v2119 = vld [vmem:[%s2116 + $0x10] sm:$0xff]
  %v2120 = vld [vmem:[%s2116 + $0x18] sm:$0xff]
  %v2121 = vld [vmem:[%s2116 + $0x20] sm:$0xff]
  %v2122 = vld [vmem:[%s2116 + $0x28] sm:$0xff]
  %v2123 = vld [vmem:[%s2116 + $0x30] sm:$0xff]
  %v2124 = vld [vmem:[%s2116 + $0x38] sm:$0xff]
  %v2125 = vld [vmem:[%s2116 + $0x40] sm:$0xff]
  %v2126 = vld [vmem:[%s2116 + $0x48] sm:$0xff]
  %v2127 = vld [vmem:[%s2116 + $0x50] sm:$0xff]
  %v2128 = vld [vmem:[%s2116 + $0x58] sm:$0xff]
  %v2129 = vld [vmem:[%s2116 + $0x60] sm:$0xff]
  %v2130 = vld [vmem:[%s2116 + $0x68] sm:$0xff]
  %v2131 = vld [vmem:[%s2116 + $0x70] sm:$0xff]
  %v2132 = vld [vmem:[%s2116 + $0x78] sm:$0xff]
  %s2133 = scalar_lea.vmem %s1, 288
  %v2134 = vld [vmem:[%s2133] sm:$0xff]
  %v2135 = vld [vmem:[%s2133 + $0x8] sm:$0xff]
  %v2136 = vld [vmem:[%s2133 + $0x10] sm:$0xff]
  %v2137 = vld [vmem:[%s2133 + $0x18] sm:$0xff]
  %s2138 = scalar_lea.vmem %s1, 320
  %v2139 = vld [vmem:[%s2138] sm:$0xff]
  %v2140 = vld [vmem:[%s2138 + $0x8] sm:$0xff]
  %v2141 = vld [vmem:[%s2138 + $0x10] sm:$0xff]
  %v2142 = vld [vmem:[%s2138 + $0x18] sm:$0xff]
  %v2144 = vsel %vm91, %v2117, 0
  %v2147 = vsel %vm91, %v2118, 0
  %v2150 = vsel %vm91, %v2119, 0
  %v2153 = vsel %vm91, %v2120, 0
  %v2156 = vsel %vm91, %v2121, 0
  %v2159 = vsel %vm91, %v2122, 0
  %v2162 = vsel %vm91, %v2123, 0
  %v2165 = vsel %vm91, %v2124, 0
  %v2168 = vsel %vm91, %v2125, 0
  %v2171 = vsel %vm91, %v2126, 0
  %v2174 = vsel %vm91, %v2127, 0
  %v2177 = vsel %vm91, %v2128, 0
  %v2180 = vsel %vm91, %v2129, 0
  %v2183 = vsel %vm91, %v2130, 0
  %v2186 = vsel %vm91, %v2131, 0
  %v2189 = vsel %vm91, %v2132, 0
  %2191 = vmatprep.subr.mxu0 0.0
  %2192 = vmatpush1.msra.mxu0 %v2139
  %2193 = vmatprep.subr.mxu0 0.0
  %2194 = vmatpush1.msra.mxu0 %v2140
  %2195 = vmatprep.subr.mxu0 0.0
  %2196 = vmatpush1.msra.mxu0 %v2141
  %2197 = vmatprep.subr.mxu0 0.0
  %2198 = vmatpush1.msra.mxu0 %v2142
  %2199 = vmatprep.subr.mxu0 0.0
  %2200 = vmatpush1.msra.mxu0 0.0
  %2201 = vmatprep.subr.mxu0 0.0
  %2202 = vmatpush1.msra.mxu0 0.0
  %2203 = vmatprep.subr.mxu0 0.0
  %2204 = vmatpush1.msra.mxu0 0.0
  %2205 = vmatprep.subr.mxu0 0.0
  %2206 = vmatpush1.msra.mxu0 0.0
  %2207 = vmatprep.subr.mxu0 0.0
  %2208 = vmatpush1.msra.mxu0 0.0
  %2209 = vmatprep.subr.mxu0 0.0
  %2210 = vmatpush1.msra.mxu0 0.0
  %2211 = vmatprep.subr.mxu0 0.0
  %2212 = vmatpush1.msra.mxu0 0.0
  %2213 = vmatprep.subr.mxu0 0.0
  %2214 = vmatpush1.msra.mxu0 0.0
  %2215 = vmatprep.subr.mxu0 0.0
  %2216 = vmatpush1.msra.mxu0 0.0
  %2217 = vmatprep.subr.mxu0 0.0
  %2218 = vmatpush1.msra.mxu0 0.0
  %2219 = vmatprep.subr.mxu0 0.0
  %2220 = vmatpush1.msra.mxu0 0.0
  %2221 = vmatprep.subr.mxu0 0.0
  %2222 = vmatpush1.msra.mxu0 0.0
  %2223 = vmatprep.subr.mxu0 0.0
  %2224 = vmatpush1.msra.mxu0 0.0
  %2225 = vmatprep.subr.mxu0 0.0
  %2226 = vmatpush1.msra.mxu0 0.0
  %2227 = vmatprep.subr.mxu0 0.0
  %2228 = vmatpush1.msra.mxu0 0.0
  %2229 = vmatprep.subr.mxu0 0.0
  %2230 = vmatpush1.msra.mxu0 0.0
  %2231 = vmatprep.subr.mxu0 0.0
  %2232 = vmatpush1.msra.mxu0 0.0
  %2233 = vmatprep.subr.mxu0 0.0
  %2234 = vmatpush1.msra.mxu0 0.0
  %2235 = vmatprep.subr.mxu0 0.0
  %2236 = vmatpush1.msra.mxu0 0.0
  %2237 = vmatprep.subr.mxu0 0.0
  %2238 = vmatpush1.msra.mxu0 0.0
  %2239 = vmatprep.subr.mxu0 0.0
  %2240 = vmatpush1.msra.mxu0 0.0
  %2241 = vmatprep.subr.mxu0 0.0
  %2242 = vmatpush1.msra.mxu0 0.0
  %2243 = vmatprep.subr.mxu0 0.0
  %2244 = vmatpush1.msra.mxu0 0.0
  %2245 = vmatprep.subr.mxu0 0.0
  %2246 = vmatpush1.msra.mxu0 0.0
  %2247 = vmatprep.subr.mxu0 0.0
  %2248 = vmatpush1.msra.mxu0 0.0
  %2249 = vmatprep.subr.mxu0 0.0
  %2250 = vmatpush1.msra.mxu0 0.0
  %2251 = vmatprep.subr.mxu0 0.0
  %2252 = vmatpush1.msra.mxu0 0.0
  %2253 = vmatprep.subr.mxu0 0.0
  %2254 = vmatpush1.msra.mxu0 0.0
  %2255 = vmatprep.mubr.f32.mxu0 0.0
  %2256 = vmatmul.mubr.f32.gmra.mrb[0].mxu0 %v2144
  %v2257 = vpop.f32.mrb[0].mxu0
  %v2258 = vadd.f32 0.0, %v2257
  %v2259 = vpop.f32.mrb[0].mxu0
  %2260 = vmatprep.mubr.f32.mxu0 0.0
  %2261 = vmatmul.mubr.f32.gmra.mrb[0].mxu0 %v2147
  %v2262 = vpop.f32.mrb[0].mxu0
  %v2263 = vadd.f32 0.0, %v2262
  %v2264 = vpop.f32.mrb[0].mxu0
  %2265 = vmatprep.mubr.f32.mxu0 0.0
  %2266 = vmatmul.mubr.f32.gmra.mrb[0].mxu0 %v2150
  %v2267 = vpop.f32.mrb[0].mxu0
  %v2268 = vadd.f32 0.0, %v2267
  %v2269 = vpop.f32.mrb[0].mxu0
  %2270 = vmatprep.mubr.f32.mxu0 0.0
  %2271 = vmatmul.mubr.f32.gmra.mrb[0].mxu0 %v2153
  %v2272 = vpop.f32.mrb[0].mxu0
  %v2273 = vadd.f32 0.0, %v2272
  %v2274 = vpop.f32.mrb[0].mxu0
  %2275 = vmatprep.mubr.f32.mxu0 0.0
  %2276 = vmatmul.mubr.f32.gmra.mrb[0].mxu0 %v2156
  %v2277 = vpop.f32.mrb[0].mxu0
  %v2278 = vadd.f32 0.0, %v2277
  %v2279 = vpop.f32.mrb[0].mxu0
  %2280 = vmatprep.mubr.f32.mxu0 0.0
  %2281 = vmatmul.mubr.f32.gmra.mrb[0].mxu0 %v2159
  %v2282 = vpop.f32.mrb[0].mxu0
  %v2283 = vadd.f32 0.0, %v2282
  %v2284 = vpop.f32.mrb[0].mxu0
  %2285 = vmatprep.mubr.f32.mxu0 0.0
  %2286 = vmatmul.mubr.f32.gmra.mrb[0].mxu0 %v2162
  %v2287 = vpop.f32.mrb[0].mxu0
  %v2288 = vadd.f32 0.0, %v2287
  %v2289 = vpop.f32.mrb[0].mxu0
  %2290 = vmatprep.mubr.f32.mxu0 0.0
  %2291 = vmatmul.mubr.f32.gmra.mrb[0].mxu0 %v2165
  %v2292 = vpop.f32.mrb[0].mxu0
  %v2293 = vadd.f32 0.0, %v2292
  %v2294 = vpop.f32.mrb[0].mxu0
  %2295 = vmatprep.mubr.f32.mxu0 0.0
  %2296 = vmatmul.mubr.f32.gmra.mrb[0].mxu0 %v2168
  %v2297 = vpop.f32.mrb[0].mxu0
  %v2298 = vadd.f32 0.0, %v2297
  %v2299 = vpop.f32.mrb[0].mxu0
  %2300 = vmatprep.mubr.f32.mxu0 0.0
  %2301 = vmatmul.mubr.f32.gmra.mrb[0].mxu0 %v2171
  %v2302 = vpop.f32.mrb[0].mxu0
  %v2303 = vadd.f32 0.0, %v2302
  %v2304 = vpop.f32.mrb[0].mxu0
  %2305 = vmatprep.mubr.f32.mxu0 0.0
  %2306 = vmatmul.mubr.f32.gmra.mrb[0].mxu0 %v2174
  %v2307 = vpop.f32.mrb[0].mxu0
  %v2308 = vadd.f32 0.0, %v2307
  %v2309 = vpop.f32.mrb[0].mxu0
  %2310 = vmatprep.mubr.f32.mxu0 0.0
  %2311 = vmatmul.mubr.f32.gmra.mrb[0].mxu0 %v2177
  %v2312 = vpop.f32.mrb[0].mxu0
  %v2313 = vadd.f32 0.0, %v2312
  %v2314 = vpop.f32.mrb[0].mxu0
  %2315 = vmatprep.mubr.f32.mxu0 0.0
  %2316 = vmatmul.mubr.f32.gmra.mrb[0].mxu0 %v2180
  %v2317 = vpop.f32.mrb[0].mxu0
  %v2318 = vadd.f32 0.0, %v2317
  %v2319 = vpop.f32.mrb[0].mxu0
  %2320 = vmatprep.mubr.f32.mxu0 0.0
  %2321 = vmatmul.mubr.f32.gmra.mrb[0].mxu0 %v2183
  %v2322 = vpop.f32.mrb[0].mxu0
  %v2323 = vadd.f32 0.0, %v2322
  %v2324 = vpop.f32.mrb[0].mxu0
  %2325 = vmatprep.mubr.f32.mxu0 0.0
  %2326 = vmatmul.mubr.f32.gmra.mrb[0].mxu0 %v2186
  %v2327 = vpop.f32.mrb[0].mxu0
  %v2328 = vadd.f32 0.0, %v2327
  %v2329 = vpop.f32.mrb[0].mxu0
  %2330 = vmatprep.mubr.f32.mxu0 0.0
  %2331 = vmatmul.mubr.f32.gmra.mrb[0].mxu0 %v2189
  %v2332 = vpop.f32.mrb[0].mxu0
  %v2333 = vadd.f32 0.0, %v2332
  %v2334 = vpop.f32.mrb[0].mxu0
  %2335 = vdwg.mxu0
  %v2336 = vrot.slane %v2258, 1
  %v2337 = vrot.slane %v2263, 1
  %v2338 = vrot.slane %v2268, 1
  %v2339 = vrot.slane %v2273, 1
  %v2340 = vrot.slane %v2278, 1
  %v2341 = vrot.slane %v2283, 1
  %v2342 = vrot.slane %v2288, 1
  %v2343 = vrot.slane %v2293, 1
  %v2344 = vrot.slane %v2298, 1
  %v2345 = vrot.slane %v2303, 1
  %v2346 = vrot.slane %v2308, 1
  %v2347 = vrot.slane %v2313, 1
  %v2348 = vrot.slane %v2318, 1
  %v2349 = vrot.slane %v2323, 1
  %v2350 = vrot.slane %v2328, 1
  %v2351 = vrot.slane %v2333, 1
  %v2352 = vsel %vm301, %v2350, %v2351
  %v2353 = vsel %vm301, %v2349, %v2350
  %v2354 = vsel %vm301, %v2348, %v2349
  %v2355 = vsel %vm301, %v2347, %v2348
  %v2356 = vsel %vm301, %v2346, %v2347
  %v2357 = vsel %vm301, %v2345, %v2346
  %v2358 = vsel %vm301, %v2344, %v2345
  %v2359 = vsel %vm301, %v2343, %v2344
  %v2360 = vsel %vm301, %v2342, %v2343
  %v2361 = vsel %vm301, %v2341, %v2342
  %v2362 = vsel %vm301, %v2340, %v2341
  %v2363 = vsel %vm301, %v2339, %v2340
  %v2364 = vsel %vm301, %v2338, %v2339
  %v2365 = vsel %vm301, %v2337, %v2338
  %v2366 = vsel %vm301, %v2336, %v2337
  %v2367 = vsel %vm301, %v2351, %v2336
  %2368 = vmatprep.subr.mxu0 0.0
  %2369 = vmatpush1.msra.mxu0 %v2134
  %2370 = vmatprep.subr.mxu0 0.0
  %2371 = vmatpush1.msra.mxu0 %v2135
  %2372 = vmatprep.subr.mxu0 0.0
  %2373 = vmatpush1.msra.mxu0 %v2136
  %2374 = vmatprep.subr.mxu0 0.0
  %2375 = vmatpush1.msra.mxu0 %v2137
  %2376 = vmatprep.subr.mxu0 0.0
  %2377 = vmatpush1.msra.mxu0 0.0
  %2378 = vmatprep.subr.mxu0 0.0
  %2379 = vmatpush1.msra.mxu0 0.0
  %2380 = vmatprep.subr.mxu0 0.0
  %2381 = vmatpush1.msra.mxu0 0.0
  %2382 = vmatprep.subr.mxu0 0.0
  %2383 = vmatpush1.msra.mxu0 0.0
  %2384 = vmatprep.subr.mxu0 0.0
  %2385 = vmatpush1.msra.mxu0 0.0
  %2386 = vmatprep.subr.mxu0 0.0
  %2387 = vmatpush1.msra.mxu0 0.0
  %2388 = vmatprep.subr.mxu0 0.0
  %2389 = vmatpush1.msra.mxu0 0.0
  %2390 = vmatprep.subr.mxu0 0.0
  %2391 = vmatpush1.msra.mxu0 0.0
  %2392 = vmatprep.subr.mxu0 0.0
  %2393 = vmatpush1.msra.mxu0 0.0
  %2394 = vmatprep.subr.mxu0 0.0
  %2395 = vmatpush1.msra.mxu0 0.0
  %2396 = vmatprep.subr.mxu0 0.0
  %2397 = vmatpush1.msra.mxu0 0.0
  %2398 = vmatprep.subr.mxu0 0.0
  %2399 = vmatpush1.msra.mxu0 0.0
  %2400 = vmatprep.subr.mxu0 0.0
  %2401 = vmatpush1.msra.mxu0 0.0
  %2402 = vmatprep.subr.mxu0 0.0
  %2403 = vmatpush1.msra.mxu0 0.0
  %2404 = vmatprep.subr.mxu0 0.0
  %2405 = vmatpush1.msra.mxu0 0.0
  %2406 = vmatprep.subr.mxu0 0.0
  %2407 = vmatpush1.msra.mxu0 0.0
  %2408 = vmatprep.subr.mxu0 0.0
  %2409 = vmatpush1.msra.mxu0 0.0
  %2410 = vmatprep.subr.mxu0 0.0
  %2411 = vmatpush1.msra.mxu0 0.0
  %2412 = vmatprep.subr.mxu0 0.0
  %2413 = vmatpush1.msra.mxu0 0.0
  %2414 = vmatprep.subr.mxu0 0.0
  %2415 = vmatpush1.msra.mxu0 0.0
  %2416 = vmatprep.subr.mxu0 0.0
  %2417 = vmatpush1.msra.mxu0 0.0
  %2418 = vmatprep.subr.mxu0 0.0
  %2419 = vmatpush1.msra.mxu0 0.0
  %2420 = vmatprep.subr.mxu0 0.0
  %2421 = vmatpush1.msra.mxu0 0.0
  %2422 = vmatprep.subr.mxu0 0.0
  %2423 = vmatpush1.msra.mxu0 0.0
  %2424 = vmatprep.subr.mxu0 0.0
  %2425 = vmatpush1.msra.mxu0 0.0
  %2426 = vmatprep.subr.mxu0 0.0
  %2427 = vmatpush1.msra.mxu0 0.0
  %2428 = vmatprep.subr.mxu0 0.0
  %2429 = vmatpush1.msra.mxu0 0.0
  %2430 = vmatprep.subr.mxu0 0.0
  %2431 = vmatpush1.msra.mxu0 0.0
  %2432 = vmatprep.mubr.f32.mxu0 0.0
  %2433 = vmatmul.mubr.f32.gmra.mrb[0].mxu0 %v2144
  %v2434 = vpop.f32.mrb[0].mxu0
  %v2435 = vadd.f32 %v2366, %v2434
  %v2436 = vpop.f32.mrb[0].mxu0
  %2437 = vmatprep.mubr.f32.mxu0 0.0
  %2438 = vmatmul.mubr.f32.gmra.mrb[0].mxu0 %v2147
  %v2439 = vpop.f32.mrb[0].mxu0
  %v2440 = vadd.f32 %v2365, %v2439
  %v2441 = vpop.f32.mrb[0].mxu0
  %2442 = vmatprep.mubr.f32.mxu0 0.0
  %2443 = vmatmul.mubr.f32.gmra.mrb[0].mxu0 %v2150
  %v2444 = vpop.f32.mrb[0].mxu0
  %v2445 = vadd.f32 %v2364, %v2444
  %v2446 = vpop.f32.mrb[0].mxu0
  %2447 = vmatprep.mubr.f32.mxu0 0.0
  %2448 = vmatmul.mubr.f32.gmra.mrb[0].mxu0 %v2153
  %v2449 = vpop.f32.mrb[0].mxu0
  %v2450 = vadd.f32 %v2363, %v2449
  %v2451 = vpop.f32.mrb[0].mxu0
  %2452 = vmatprep.mubr.f32.mxu0 0.0
  %2453 = vmatmul.mubr.f32.gmra.mrb[0].mxu0 %v2156
  %v2454 = vpop.f32.mrb[0].mxu0
  %v2455 = vadd.f32 %v2362, %v2454
  %v2456 = vpop.f32.mrb[0].mxu0
  %2457 = vmatprep.mubr.f32.mxu0 0.0
  %2458 = vmatmul.mubr.f32.gmra.mrb[0].mxu0 %v2159
  %v2459 = vpop.f32.mrb[0].mxu0
  %v2460 = vadd.f32 %v2361, %v2459
  %v2461 = vpop.f32.mrb[0].mxu0
  %2462 = vmatprep.mubr.f32.mxu0 0.0
  %2463 = vmatmul.mubr.f32.gmra.mrb[0].mxu0 %v2162
  %v2464 = vpop.f32.mrb[0].mxu0
  %v2465 = vadd.f32 %v2360, %v2464
  %v2466 = vpop.f32.mrb[0].mxu0
  %2467 = vmatprep.mubr.f32.mxu0 0.0
  %2468 = vmatmul.mubr.f32.gmra.mrb[0].mxu0 %v2165
  %v2469 = vpop.f32.mrb[0].mxu0
  %v2470 = vadd.f32 %v2359, %v2469
  %v2471 = vpop.f32.mrb[0].mxu0
  %2472 = vmatprep.mubr.f32.mxu0 0.0
  %2473 = vmatmul.mubr.f32.gmra.mrb[0].mxu0 %v2168
  %v2474 = vpop.f32.mrb[0].mxu0
  %v2475 = vadd.f32 %v2358, %v2474
  %v2476 = vpop.f32.mrb[0].mxu0
  %2477 = vmatprep.mubr.f32.mxu0 0.0
  %2478 = vmatmul.mubr.f32.gmra.mrb[0].mxu0 %v2171
  %v2479 = vpop.f32.mrb[0].mxu0
  %v2480 = vadd.f32 %v2357, %v2479
  %v2481 = vpop.f32.mrb[0].mxu0
  %2482 = vmatprep.mubr.f32.mxu0 0.0
  %2483 = vmatmul.mubr.f32.gmra.mrb[0].mxu0 %v2174
  %v2484 = vpop.f32.mrb[0].mxu0
  %v2485 = vadd.f32 %v2356, %v2484
  %v2486 = vpop.f32.mrb[0].mxu0
  %2487 = vmatprep.mubr.f32.mxu0 0.0
  %2488 = vmatmul.mubr.f32.gmra.mrb[0].mxu0 %v2177
  %v2489 = vpop.f32.mrb[0].mxu0
  %v2490 = vadd.f32 %v2355, %v2489
  %v2491 = vpop.f32.mrb[0].mxu0
  %2492 = vmatprep.mubr.f32.mxu0 0.0
  %2493 = vmatmul.mubr.f32.gmra.mrb[0].mxu0 %v2180
  %v2494 = vpop.f32.mrb[0].mxu0
  %v2495 = vadd.f32 %v2354, %v2494
  %v2496 = vpop.f32.mrb[0].mxu0
  %2497 = vmatprep.mubr.f32.mxu0 0.0
  %2498 = vmatmul.mubr.f32.gmra.mrb[0].mxu0 %v2183
  %v2499 = vpop.f32.mrb[0].mxu0
  %v2500 = vadd.f32 %v2353, %v2499
  %v2501 = vpop.f32.mrb[0].mxu0
  %2502 = vmatprep.mubr.f32.mxu0 0.0
  %2503 = vmatmul.mubr.f32.gmra.mrb[0].mxu0 %v2186
  %v2504 = vpop.f32.mrb[0].mxu0
  %v2505 = vadd.f32 %v2352, %v2504
  %v2506 = vpop.f32.mrb[0].mxu0
  %2507 = vmatprep.mubr.f32.mxu0 0.0
  %2508 = vmatmul.mubr.f32.gmra.mrb[0].mxu0 %v2189
  %v2509 = vpop.f32.mrb[0].mxu0
  %v2510 = vadd.f32 %v2367, %v2509
  %v2511 = vpop.f32.mrb[0].mxu0
  %2512 = vdwg.mxu0
  %s2513 = scalar_lea.vmem %s1, 352
  %v2514 = vld [vmem:[%s2513] sm:$0xff]
  %v2515 = vld [vmem:[%s2513 + $0x8] sm:$0xff]
  %v2516 = vld [vmem:[%s2513 + $0x10] sm:$0xff]
  %v2517 = vld [vmem:[%s2513 + $0x18] sm:$0xff]
  %2518 = vmatprep.subr.mxu0 0.0
  %2519 = vmatpush1.msra.mxu0 %v2514
  %2520 = vmatprep.subr.mxu0 0.0
  %2521 = vmatpush1.msra.mxu0 %v2515
  %2522 = vmatprep.subr.mxu0 0.0
  %2523 = vmatpush1.msra.mxu0 %v2516
  %2524 = vmatprep.subr.mxu0 0.0
  %2525 = vmatpush1.msra.mxu0 %v2517
  %2526 = vmatprep.subr.mxu0 0.0
  %2527 = vmatpush1.msra.mxu0 0.0
  %2528 = vmatprep.subr.mxu0 0.0
  %2529 = vmatpush1.msra.mxu0 0.0
  %2530 = vmatprep.subr.mxu0 0.0
  %2531 = vmatpush1.msra.mxu0 0.0
  %2532 = vmatprep.subr.mxu0 0.0
  %2533 = vmatpush1.msra.mxu0 0.0
  %2534 = vmatprep.subr.mxu0 0.0
  %2535 = vmatpush1.msra.mxu0 0.0
  %2536 = vmatprep.subr.mxu0 0.0
  %2537 = vmatpush1.msra.mxu0 0.0
  %2538 = vmatprep.subr.mxu0 0.0
  %2539 = vmatpush1.msra.mxu0 0.0
  %2540 = vmatprep.subr.mxu0 0.0
  %2541 = vmatpush1.msra.mxu0 0.0
  %2542 = vmatprep.subr.mxu0 0.0
  %2543 = vmatpush1.msra.mxu0 0.0
  %2544 = vmatprep.subr.mxu0 0.0
  %2545 = vmatpush1.msra.mxu0 0.0
  %2546 = vmatprep.subr.mxu0 0.0
  %2547 = vmatpush1.msra.mxu0 0.0
  %2548 = vmatprep.subr.mxu0 0.0
  %2549 = vmatpush1.msra.mxu0 0.0
  %2550 = vmatprep.subr.mxu0 0.0
  %2551 = vmatpush1.msra.mxu0 0.0
  %2552 = vmatprep.subr.mxu0 0.0
  %2553 = vmatpush1.msra.mxu0 0.0
  %2554 = vmatprep.subr.mxu0 0.0
  %2555 = vmatpush1.msra.mxu0 0.0
  %2556 = vmatprep.subr.mxu0 0.0
  %2557 = vmatpush1.msra.mxu0 0.0
  %2558 = vmatprep.subr.mxu0 0.0
  %2559 = vmatpush1.msra.mxu0 0.0
  %2560 = vmatprep.subr.mxu0 0.0
  %2561 = vmatpush1.msra.mxu0 0.0
  %2562 = vmatprep.subr.mxu0 0.0
  %2563 = vmatpush1.msra.mxu0 0.0
  %2564 = vmatprep.subr.mxu0 0.0
  %2565 = vmatpush1.msra.mxu0 0.0
  %2566 = vmatprep.subr.mxu0 0.0
  %2567 = vmatpush1.msra.mxu0 0.0
  %2568 = vmatprep.subr.mxu0 0.0
  %2569 = vmatpush1.msra.mxu0 0.0
  %2570 = vmatprep.subr.mxu0 0.0
  %2571 = vmatpush1.msra.mxu0 0.0
  %2572 = vmatprep.subr.mxu0 0.0
  %2573 = vmatpush1.msra.mxu0 0.0
  %2574 = vmatprep.subr.mxu0 0.0
  %2575 = vmatpush1.msra.mxu0 0.0
  %2576 = vmatprep.subr.mxu0 0.0
  %2577 = vmatpush1.msra.mxu0 0.0
  %2578 = vmatprep.subr.mxu0 0.0
  %2579 = vmatpush1.msra.mxu0 0.0
  %2580 = vmatprep.subr.mxu0 0.0
  %2581 = vmatpush1.msra.mxu0 0.0
  %2582 = vmatprep.mubr.f32.mxu0 0.0
  %2583 = vmatmul.mubr.f32.gmra.mrb[0].mxu0 %v2144
  %v2584 = vpop.f32.mrb[0].mxu0
  %v2585 = vadd.f32 0.0, %v2584
  %v2586 = vpop.f32.mrb[0].mxu0
  %2587 = vmatprep.mubr.f32.mxu0 0.0
  %2588 = vmatmul.mubr.f32.gmra.mrb[0].mxu0 %v2147
  %v2589 = vpop.f32.mrb[0].mxu0
  %v2590 = vadd.f32 0.0, %v2589
  %v2591 = vpop.f32.mrb[0].mxu0
  %2592 = vmatprep.mubr.f32.mxu0 0.0
  %2593 = vmatmul.mubr.f32.gmra.mrb[0].mxu0 %v2150
  %v2594 = vpop.f32.mrb[0].mxu0
  %v2595 = vadd.f32 0.0, %v2594
  %v2596 = vpop.f32.mrb[0].mxu0
  %2597 = vmatprep.mubr.f32.mxu0 0.0
  %2598 = vmatmul.mubr.f32.gmra.mrb[0].mxu0 %v2153
  %v2599 = vpop.f32.mrb[0].mxu0
  %v2600 = vadd.f32 0.0, %v2599
  %v2601 = vpop.f32.mrb[0].mxu0
  %2602 = vmatprep.mubr.f32.mxu0 0.0
  %2603 = vmatmul.mubr.f32.gmra.mrb[0].mxu0 %v2156
  %v2604 = vpop.f32.mrb[0].mxu0
  %v2605 = vadd.f32 0.0, %v2604
  %v2606 = vpop.f32.mrb[0].mxu0
  %2607 = vmatprep.mubr.f32.mxu0 0.0
  %2608 = vmatmul.mubr.f32.gmra.mrb[0].mxu0 %v2159
  %v2609 = vpop.f32.mrb[0].mxu0
  %v2610 = vadd.f32 0.0, %v2609
  %v2611 = vpop.f32.mrb[0].mxu0
  %2612 = vmatprep.mubr.f32.mxu0 0.0
  %2613 = vmatmul.mubr.f32.gmra.mrb[0].mxu0 %v2162
  %v2614 = vpop.f32.mrb[0].mxu0
  %v2615 = vadd.f32 0.0, %v2614
  %v2616 = vpop.f32.mrb[0].mxu0
  %2617 = vmatprep.mubr.f32.mxu0 0.0
  %2618 = vmatmul.mubr.f32.gmra.mrb[0].mxu0 %v2165
  %v2619 = vpop.f32.mrb[0].mxu0
  %v2620 = vadd.f32 0.0, %v2619
  %v2621 = vpop.f32.mrb[0].mxu0
  %2622 = vmatprep.mubr.f32.mxu0 0.0
  %2623 = vmatmul.mubr.f32.gmra.mrb[0].mxu0 %v2168
  %v2624 = vpop.f32.mrb[0].mxu0
  %v2625 = vadd.f32 0.0, %v2624
  %v2626 = vpop.f32.mrb[0].mxu0
  %2627 = vmatprep.mubr.f32.mxu0 0.0
  %2628 = vmatmul.mubr.f32.gmra.mrb[0].mxu0 %v2171
  %v2629 = vpop.f32.mrb[0].mxu0
  %v2630 = vadd.f32 0.0, %v2629
  %v2631 = vpop.f32.mrb[0].mxu0
  %2632 = vmatprep.mubr.f32.mxu0 0.0
  %2633 = vmatmul.mubr.f32.gmra.mrb[0].mxu0 %v2174
  %v2634 = vpop.f32.mrb[0].mxu0
  %v2635 = vadd.f32 0.0, %v2634
  %v2636 = vpop.f32.mrb[0].mxu0
  %2637 = vmatprep.mubr.f32.mxu0 0.0
  %2638 = vmatmul.mubr.f32.gmra.mrb[0].mxu0 %v2177
  %v2639 = vpop.f32.mrb[0].mxu0
  %v2640 = vadd.f32 0.0, %v2639
  %v2641 = vpop.f32.mrb[0].mxu0
  %2642 = vmatprep.mubr.f32.mxu0 0.0
  %2643 = vmatmul.mubr.f32.gmra.mrb[0].mxu0 %v2180
  %v2644 = vpop.f32.mrb[0].mxu0
  %v2645 = vadd.f32 0.0, %v2644
  %v2646 = vpop.f32.mrb[0].mxu0
  %2647 = vmatprep.mubr.f32.mxu0 0.0
  %2648 = vmatmul.mubr.f32.gmra.mrb[0].mxu0 %v2183
  %v2649 = vpop.f32.mrb[0].mxu0
  %v2650 = vadd.f32 0.0, %v2649
  %v2651 = vpop.f32.mrb[0].mxu0
  %2652 = vmatprep.mubr.f32.mxu0 0.0
  %2653 = vmatmul.mubr.f32.gmra.mrb[0].mxu0 %v2186
  %v2654 = vpop.f32.mrb[0].mxu0
  %v2655 = vadd.f32 0.0, %v2654
  %v2656 = vpop.f32.mrb[0].mxu0
  %2657 = vmatprep.mubr.f32.mxu0 0.0
  %2658 = vmatmul.mubr.f32.gmra.mrb[0].mxu0 %v2189
  %v2659 = vpop.f32.mrb[0].mxu0
  %v2660 = vadd.f32 0.0, %v2659
  %v2661 = vpop.f32.mrb[0].mxu0
  %2662 = vdwg.mxu0
  %v2663 = vrot.slane %v2585, 2
  %v2664 = vrot.slane %v2590, 2
  %v2665 = vrot.slane %v2595, 2
  %v2666 = vrot.slane %v2600, 2
  %v2667 = vrot.slane %v2605, 2
  %v2668 = vrot.slane %v2610, 2
  %v2669 = vrot.slane %v2615, 2
  %v2670 = vrot.slane %v2620, 2
  %v2671 = vrot.slane %v2625, 2
  %v2672 = vrot.slane %v2630, 2
  %v2673 = vrot.slane %v2635, 2
  %v2674 = vrot.slane %v2640, 2
  %v2675 = vrot.slane %v2645, 2
  %v2676 = vrot.slane %v2650, 2
  %v2677 = vrot.slane %v2655, 2
  %v2678 = vrot.slane %v2660, 2
  %v2679 = vsel %vm629, %v2677, %v2678
  %v2680 = vsel %vm629, %v2676, %v2677
  %v2681 = vsel %vm629, %v2675, %v2676
  %v2682 = vsel %vm629, %v2674, %v2675
  %v2683 = vsel %vm629, %v2673, %v2674
  %v2684 = vsel %vm629, %v2672, %v2673
  %v2685 = vsel %vm629, %v2671, %v2672
  %v2686 = vsel %vm629, %v2670, %v2671
  %v2687 = vsel %vm629, %v2669, %v2670
  %v2688 = vsel %vm629, %v2668, %v2669
  %v2689 = vsel %vm629, %v2667, %v2668
  %v2690 = vsel %vm629, %v2666, %v2667
  %v2691 = vsel %vm629, %v2665, %v2666
  %v2692 = vsel %vm629, %v2664, %v2665
  %v2693 = vsel %vm629, %v2663, %v2664
  %v2694 = vsel %vm629, %v2678, %v2663
  %v2695 = vadd.f32 %v2435, %v2693
  %v2696 = vadd.f32 %v2440, %v2692
  %v2697 = vadd.f32 %v2445, %v2691
  %v2698 = vadd.f32 %v2450, %v2690
  %v2699 = vadd.f32 %v2455, %v2689
  %v2700 = vadd.f32 %v2460, %v2688
  %v2701 = vadd.f32 %v2465, %v2687
  %v2702 = vadd.f32 %v2470, %v2686
  %v2703 = vadd.f32 %v2475, %v2685
  %v2704 = vadd.f32 %v2480, %v2684
  %v2705 = vadd.f32 %v2485, %v2683
  %v2706 = vadd.f32 %v2490, %v2682
  %v2707 = vadd.f32 %v2495, %v2681
  %v2708 = vadd.f32 %v2500, %v2680
  %v2709 = vadd.f32 %v2505, %v2679
  %v2710 = vadd.f32 %v2510, %v2694
  %v2711 = vsel %vm662, %v2695, -3e+38
  %v2712 = vsel %vm663, %v2696, -3e+38
  %v2713 = vsel %vm664, %v2697, -3e+38
  %v2714 = vsel %vm665, %v2698, -3e+38
  %v2715 = vsel %vm666, %v2699, -3e+38
  %v2716 = vsel %vm667, %v2700, -3e+38
  %v2717 = vsel %vm668, %v2701, -3e+38
  %v2718 = vsel %vm669, %v2702, -3e+38
  %v2719 = vsel %vm670, %v2703, -3e+38
  %v2720 = vsel %vm671, %v2704, -3e+38
  %v2721 = vsel %vm672, %v2705, -3e+38
  %v2722 = vsel %vm673, %v2706, -3e+38
  %v2723 = vsel %vm674, %v2707, -3e+38
  %v2724 = vsel %vm675, %v2708, -3e+38
  %v2725 = vsel %vm676, %v2709, -3e+38
  %v2726 = vsel %vm677, %v2710, -3e+38
  %v2727 = vmax.f32 %v2711, %v2712
  %v2728 = vrot.slane %v2727, 4
  %v2729 = vmax.f32 %v2727, %v2728
  %v2730 = vrot.slane %v2729, 2
  %v2731 = vmax.f32 %v2729, %v2730
  %v2732 = vrot.slane %v2731, 1
  %v2733 = vmax.f32 %v2731, %v2732
  %v2734 = vmax.f32 %v2713, %v2714
  %v2735 = vrot.slane %v2734, 4
  %v2736 = vmax.f32 %v2734, %v2735
  %v2737 = vrot.slane %v2736, 2
  %v2738 = vmax.f32 %v2736, %v2737
  %v2739 = vrot.slane %v2738, 1
  %v2740 = vmax.f32 %v2738, %v2739
  %v2741 = vmax.f32 %v2715, %v2716
  %v2742 = vrot.slane %v2741, 4
  %v2743 = vmax.f32 %v2741, %v2742
  %v2744 = vrot.slane %v2743, 2
  %v2745 = vmax.f32 %v2743, %v2744
  %v2746 = vrot.slane %v2745, 1
  %v2747 = vmax.f32 %v2745, %v2746
  %v2748 = vmax.f32 %v2717, %v2718
  %v2749 = vrot.slane %v2748, 4
  %v2750 = vmax.f32 %v2748, %v2749
  %v2751 = vrot.slane %v2750, 2
  %v2752 = vmax.f32 %v2750, %v2751
  %v2753 = vrot.slane %v2752, 1
  %v2754 = vmax.f32 %v2752, %v2753
  %v2755 = vmax.f32 %v2719, %v2720
  %v2756 = vrot.slane %v2755, 4
  %v2757 = vmax.f32 %v2755, %v2756
  %v2758 = vrot.slane %v2757, 2
  %v2759 = vmax.f32 %v2757, %v2758
  %v2760 = vrot.slane %v2759, 1
  %v2761 = vmax.f32 %v2759, %v2760
  %v2762 = vmax.f32 %v2721, %v2722
  %v2763 = vrot.slane %v2762, 4
  %v2764 = vmax.f32 %v2762, %v2763
  %v2765 = vrot.slane %v2764, 2
  %v2766 = vmax.f32 %v2764, %v2765
  %v2767 = vrot.slane %v2766, 1
  %v2768 = vmax.f32 %v2766, %v2767
  %v2769 = vmax.f32 %v2723, %v2724
  %v2770 = vrot.slane %v2769, 4
  %v2771 = vmax.f32 %v2769, %v2770
  %v2772 = vrot.slane %v2771, 2
  %v2773 = vmax.f32 %v2771, %v2772
  %v2774 = vrot.slane %v2773, 1
  %v2775 = vmax.f32 %v2773, %v2774
  %v2776 = vmax.f32 %v2725, %v2726
  %v2777 = vrot.slane %v2776, 4
  %v2778 = vmax.f32 %v2776, %v2777
  %v2779 = vrot.slane %v2778, 2
  %v2780 = vmax.f32 %v2778, %v2779
  %v2781 = vrot.slane %v2780, 1
  %v2782 = vmax.f32 %v2780, %v2781
  %v2783 = vadd.f32 %v2108, %v2733
  %v2784 = vadd.f32 %v2109, %v2740
  %v2785 = vadd.f32 %v2110, %v2747
  %v2786 = vadd.f32 %v2111, %v2754
  %v2787 = vadd.f32 %v2112, %v2761
  %v2788 = vadd.f32 %v2113, %v2768
  %v2789 = vadd.f32 %v2114, %v2775
  %v2790 = vadd.f32 %v2115, %v2782
  %v2791 = vld [vmem:[%s2] sm:$0x1]
  %v2793 = vlaneseq
  %v2794 = vshrl.u32 %v2793, 7
  %v2795 = vsub.s32 0, %v2794
  %v2796 = vrot.slane %v2791, %v2795
  %v2798 = vadd.f32 %v2783, %v2796
  %v2799 = vadd.f32 %v2784, %v2796
  %v2800 = vadd.f32 %v2785, %v2796
  %v2801 = vadd.f32 %v2786, %v2796
  %v2802 = vadd.f32 %v2787, %v2796
  %v2803 = vadd.f32 %v2788, %v2796
  %v2804 = vadd.f32 %v2789, %v2796
  %v2805 = vadd.f32 %v2790, %v2796
  %v2814 = vrot.slane %v2799, 7
  %vm2815 = vcmask 1041409
  %v2816 = vsel %vm2815, %v2814, %v2798
  %v2817 = vrot.slane %v2800, 6
  %vm2818 = vcmask 1042434
  %v2819 = vsel %vm2818, %v2817, %v2816
  %v2820 = vrot.slane %v2801, 5
  %vm2821 = vcmask 1043459
  %v2822 = vsel %vm2821, %v2820, %v2819
  %v2823 = vrot.slane %v2802, 4
  %vm2824 = vcmask 1044484
  %v2825 = vsel %vm2824, %v2823, %v2822
  %v2826 = vrot.slane %v2803, 3
  %vm2827 = vcmask 1045509
  %v2828 = vsel %vm2827, %v2826, %v2825
  %v2829 = vrot.slane %v2804, 2
  %vm2830 = vcmask 1046534
  %v2831 = vsel %vm2830, %v2829, %v2828
  %v2832 = vrot.slane %v2805, 1
  %vm2833 = vcmask 1047559
  %v2834 = vsel %vm2833, %v2832, %v2831
  %2836 = vst [vmem:[%s8] sm:$0xff] %v2834
  %v2837 = vld [vmem:[%s3] sm:$0xff]
  %v2838 = vld [vmem:[%s3 + $0x8] sm:$0xff]
  %v2839 = vld [vmem:[%s3 + $0x10] sm:$0xff]
  %v2840 = vld [vmem:[%s3 + $0x18] sm:$0xff]
  %v2841 = vld [vmem:[%s3 + $0x20] sm:$0xff]
  %v2842 = vld [vmem:[%s3 + $0x28] sm:$0xff]
  %v2843 = vld [vmem:[%s3 + $0x30] sm:$0xff]
  %v2844 = vld [vmem:[%s3 + $0x38] sm:$0xff]
  %v2845 = vld [vmem:[%s3 + $0x40] sm:$0xff]
  %v2846 = vld [vmem:[%s3 + $0x48] sm:$0xff]
  %v2847 = vld [vmem:[%s3 + $0x50] sm:$0xff]
  %v2848 = vld [vmem:[%s3 + $0x58] sm:$0xff]
  %v2849 = vld [vmem:[%s3 + $0x60] sm:$0xff]
  %v2850 = vld [vmem:[%s3 + $0x68] sm:$0xff]
  %v2851 = vld [vmem:[%s3 + $0x70] sm:$0xff]
  %v2852 = vld [vmem:[%s3 + $0x78] sm:$0xff]
  %v2853 = vld [vmem:[%s5] sm:$0x1]
  %v2855 = vlaneseq
  %v2856 = vshrl.u32 %v2855, 7
  %v2857 = vsub.s32 0, %v2856
  %v2858 = vrot.slane %v2853, %v2857
  %2860 = vmatprep.subr.mxu0 0.0
  %2861 = vmatpush1.msra.mxu0 %v2837
  %2862 = vmatprep.subr.mxu0 0.0
  %2863 = vmatpush1.msra.mxu0 %v2838
  %2864 = vmatprep.subr.mxu0 0.0
  %2865 = vmatpush1.msra.mxu0 %v2839
  %2866 = vmatprep.subr.mxu0 0.0
  %2867 = vmatpush1.msra.mxu0 %v2840
  %2868 = vmatprep.subr.mxu0 0.0
  %2869 = vmatpush1.msra.mxu0 %v2841
  %2870 = vmatprep.subr.mxu0 0.0
  %2871 = vmatpush1.msra.mxu0 %v2842
  %2872 = vmatprep.subr.mxu0 0.0
  %2873 = vmatpush1.msra.mxu0 %v2843
  %2874 = vmatprep.subr.mxu0 0.0
  %2875 = vmatpush1.msra.mxu0 %v2844
  %2876 = vmatprep.subr.mxu0 0.0
  %2877 = vmatpush1.msra.mxu0 %v2845
  %2878 = vmatprep.subr.mxu0 0.0
  %2879 = vmatpush1.msra.mxu0 %v2846
  %2880 = vmatprep.subr.mxu0 0.0
  %2881 = vmatpush1.msra.mxu0 %v2847
  %2882 = vmatprep.subr.mxu0 0.0
  %2883 = vmatpush1.msra.mxu0 %v2848
  %2884 = vmatprep.subr.mxu0 0.0
  %2885 = vmatpush1.msra.mxu0 %v2849
  %2886 = vmatprep.subr.mxu0 0.0
  %2887 = vmatpush1.msra.mxu0 %v2850
  %2888 = vmatprep.subr.mxu0 0.0
  %2889 = vmatpush1.msra.mxu0 %v2851
  %2890 = vmatprep.subr.mxu0 0.0
  %2891 = vmatpush1.msra.mxu0 %v2852
  %2892 = vmatprep.subr.mxu0 0.0
  %2893 = vmatpush1.msra.mxu0 0.0
  %2894 = vmatprep.subr.mxu0 0.0
  %2895 = vmatpush1.msra.mxu0 0.0
  %2896 = vmatprep.subr.mxu0 0.0
  %2897 = vmatpush1.msra.mxu0 0.0
  %2898 = vmatprep.subr.mxu0 0.0
  %2899 = vmatpush1.msra.mxu0 0.0
  %2900 = vmatprep.subr.mxu0 0.0
  %2901 = vmatpush1.msra.mxu0 0.0
  %2902 = vmatprep.subr.mxu0 0.0
  %2903 = vmatpush1.msra.mxu0 0.0
  %2904 = vmatprep.subr.mxu0 0.0
  %2905 = vmatpush1.msra.mxu0 0.0
  %2906 = vmatprep.subr.mxu0 0.0
  %2907 = vmatpush1.msra.mxu0 0.0
  %2908 = vmatprep.subr.mxu0 0.0
  %2909 = vmatpush1.msra.mxu0 0.0
  %2910 = vmatprep.subr.mxu0 0.0
  %2911 = vmatpush1.msra.mxu0 0.0
  %2912 = vmatprep.subr.mxu0 0.0
  %2913 = vmatpush1.msra.mxu0 0.0
  %2914 = vmatprep.subr.mxu0 0.0
  %2915 = vmatpush1.msra.mxu0 0.0
  %2916 = vmatprep.subr.mxu0 0.0
  %2917 = vmatpush1.msra.mxu0 0.0
  %2918 = vmatprep.subr.mxu0 0.0
  %2919 = vmatpush1.msra.mxu0 0.0
  %2920 = vmatprep.subr.mxu0 0.0
  %2921 = vmatpush1.msra.mxu0 0.0
  %2922 = vmatprep.subr.mxu0 0.0
  %2923 = vmatpush1.msra.mxu0 0.0
  %2924 = vmatprep.mubr.f32.mxu0 0.0
  %2925 = vmatmul.mubr.f32.gmra.mrb[0].mxu0 %v2834
  %v2926 = vpop.f32.mrb[0].mxu0
  %v2927 = vadd.f32 %v2858, %v2926
  %v2928 = vpop.f32.mrb[0].mxu0
  %2929 = vdwg.mxu0
  %v2930 = vmax.f32 %v2927, 0.0
  %v2931 = vld [vmem:[%s4] sm:$0xff]
  %v2932 = vld [vmem:[%s4 + $0x8] sm:$0xff]
  %v2933 = vld [vmem:[%s4 + $0x10] sm:$0xff]
  %v2934 = vld [vmem:[%s4 + $0x18] sm:$0xff]
  %s2935 = scalar_lea.vmem %s5, 1
  %v2936 = vld [vmem:[%s2935] sm:$0x1]
  %v2938 = vlaneseq
  %v2939 = vshrl.u32 %v2938, 7
  %v2940 = vsub.s32 0, %v2939
  %v2941 = vrot.slane %v2936, %v2940
  %v2944 = vsel %vm91, %v2930, 0
  %2946 = vmatprep.subr.mxu0 0.0
  %2947 = vmatpush1.msra.mxu0 %v2931
  %2948 = vmatprep.subr.mxu0 0.0
  %2949 = vmatpush1.msra.mxu0 %v2932
  %2950 = vmatprep.subr.mxu0 0.0
  %2951 = vmatpush1.msra.mxu0 %v2933
  %2952 = vmatprep.subr.mxu0 0.0
  %2953 = vmatpush1.msra.mxu0 %v2934
  %2954 = vmatprep.subr.mxu0 0.0
  %2955 = vmatpush1.msra.mxu0 0.0
  %2956 = vmatprep.subr.mxu0 0.0
  %2957 = vmatpush1.msra.mxu0 0.0
  %2958 = vmatprep.subr.mxu0 0.0
  %2959 = vmatpush1.msra.mxu0 0.0
  %2960 = vmatprep.subr.mxu0 0.0
  %2961 = vmatpush1.msra.mxu0 0.0
  %2962 = vmatprep.subr.mxu0 0.0
  %2963 = vmatpush1.msra.mxu0 0.0
  %2964 = vmatprep.subr.mxu0 0.0
  %2965 = vmatpush1.msra.mxu0 0.0
  %2966 = vmatprep.subr.mxu0 0.0
  %2967 = vmatpush1.msra.mxu0 0.0
  %2968 = vmatprep.subr.mxu0 0.0
  %2969 = vmatpush1.msra.mxu0 0.0
  %2970 = vmatprep.subr.mxu0 0.0
  %2971 = vmatpush1.msra.mxu0 0.0
  %2972 = vmatprep.subr.mxu0 0.0
  %2973 = vmatpush1.msra.mxu0 0.0
  %2974 = vmatprep.subr.mxu0 0.0
  %2975 = vmatpush1.msra.mxu0 0.0
  %2976 = vmatprep.subr.mxu0 0.0
  %2977 = vmatpush1.msra.mxu0 0.0
  %2978 = vmatprep.subr.mxu0 0.0
  %2979 = vmatpush1.msra.mxu0 0.0
  %2980 = vmatprep.subr.mxu0 0.0
  %2981 = vmatpush1.msra.mxu0 0.0
  %2982 = vmatprep.subr.mxu0 0.0
  %2983 = vmatpush1.msra.mxu0 0.0
  %2984 = vmatprep.subr.mxu0 0.0
  %2985 = vmatpush1.msra.mxu0 0.0
  %2986 = vmatprep.subr.mxu0 0.0
  %2987 = vmatpush1.msra.mxu0 0.0
  %2988 = vmatprep.subr.mxu0 0.0
  %2989 = vmatpush1.msra.mxu0 0.0
  %2990 = vmatprep.subr.mxu0 0.0
  %2991 = vmatpush1.msra.mxu0 0.0
  %2992 = vmatprep.subr.mxu0 0.0
  %2993 = vmatpush1.msra.mxu0 0.0
  %2994 = vmatprep.subr.mxu0 0.0
  %2995 = vmatpush1.msra.mxu0 0.0
  %2996 = vmatprep.subr.mxu0 0.0
  %2997 = vmatpush1.msra.mxu0 0.0
  %2998 = vmatprep.subr.mxu0 0.0
  %2999 = vmatpush1.msra.mxu0 0.0
  %3000 = vmatprep.subr.mxu0 0.0
  %3001 = vmatpush1.msra.mxu0 0.0
  %3002 = vmatprep.subr.mxu0 0.0
  %3003 = vmatpush1.msra.mxu0 0.0
  %3004 = vmatprep.subr.mxu0 0.0
  %3005 = vmatpush1.msra.mxu0 0.0
  %3006 = vmatprep.subr.mxu0 0.0
  %3007 = vmatpush1.msra.mxu0 0.0
  %3008 = vmatprep.subr.mxu0 0.0
  %3009 = vmatpush1.msra.mxu0 0.0
  %3010 = vmatprep.mubr.f32.mxu0 0.0
  %3011 = vmatmul.mubr.f32.gmra.mrb[0].mxu0 %v2944
  %v3012 = vpop.f32.mrb[0].mxu0
  %v3013 = vadd.f32 %v2941, %v3012
  %v3014 = vpop.f32.mrb[0].mxu0
  %3015 = vdwg.mxu0
  %v3016 = vmax.f32 %v3013, 0.0
  %v3017 = vld [vmem:[%s6] sm:$0x1]
  %v3019 = vlaneseq
  %v3020 = vshrl.u32 %v3019, 7
  %v3021 = vsub.s32 0, %v3020
  %v3022 = vrot.slane %v3017, %v3021
  %v3024 = vmul.f32 %v3016, %v3022
  %v3025 = vsel %vm91, %v3024, 0.0
  %3026 = vadd.xlane.f32.xlu0 %v3025
  %v3027 = vpop.xlane.xlu0 %3026
  %v3028 = vld [vmem:[#allocation2] sm:$0x1]
  %v3030 = vlaneseq
  %v3031 = vshrl.u32 %v3030, 7
  %v3032 = vsub.s32 0, %v3031
  %v3033 = vrot.slane %v3028, %v3032
  %v3035 = vadd.f32 %v3027, %v3033
  %v3036 = vxor.u32 %v3035, 2147483648
  %v3037 = vmul.f32 %v3036, 1.442695
  %v3038 = vpow.pop %v3037
  %v3039 = vadd.f32 %v3038, 1.0
  %v3040 = vrcp.pop %v3039
  %v3041 = vmul.f32 1.0, %v3040
  %vm3042 = vcmask 7168
  %3043 = vst.msk [vmem:[%s9] sm:$0xff] %vm3042, %v3041
  // Predicated region
  $region34: #{comvex_conv_forward.1} parent=0 // pred_check
    _
  $region35: #{comvex_conv_forward.1} parent=0 // pred_check_branch
    %3045 = sbr.rel (0) target = $region37
  $region36: #{comvex_conv_forward.1} parent=0 // pred_region
    _
  $region37: #{comvex_conv_forward.1} parent=0 // pred_fallthru
    _
  // Predicated region
  $region38: #{comvex_conv_forward.1} parent=0 // pred_check
    _
  $region39: #{comvex_conv_forward.1} parent=0 // pred_check_branch
    %3047 = sbr.rel (0) target = $region41
  $region40: #{comvex_conv_forward.1} parent=0 // pred_region
    _
  $region41: #{comvex_conv_forward.1} parent=0 // pred_fallthru
    _
  // Predicated region
  $region42: #{comvex_conv_forward.1} parent=0 // pred_check
    _
  $region43: #{comvex_conv_forward.1} parent=0 // pred_check_branch
    %3049 = sbr.rel (0) target = $region45
  $region44: #{comvex_conv_forward.1} parent=0 // pred_region
    _
  $region45: #{comvex_conv_forward.1} parent=0 // pred_fallthru
    _
  // Predicated region
  $region46: #{comvex_conv_forward.1} parent=0 // pred_check
    _
  $region47: #{comvex_conv_forward.1} parent=0 // pred_check_branch
    %3051 = sbr.rel (0) target = $region49
  $region48: #{comvex_conv_forward.1} parent=0 // pred_region
    _
  $region49: #{comvex_conv_forward.1} parent=0 // pred_fallthru
    _

</llo_original>
